<compile_context>
chip_gen: v7x
topology: tpu7x:2x2x1
jax: 0.10.0
libtpu: 0.0.40
codegen_flags: <defaults>
</compile_context>

<pallas_src>
import math

import jax
import jax.numpy as jnp
from jax.experimental import pallas as pl
from jax.experimental.pallas import tpu as pltpu

# ----------------------------- model config ---------------------------------
B = 2          # batch
S = 8          # sequence length
H = 32         # hidden size
NH = 4         # attention heads
DH = H // NH   # head dim
I = 64         # FFN intermediate size
V = 128        # vocab size (lane-dense)
L = 2          # number of encoder layers
MAX_POS = 16
LN_EPS = 1e-12
IGNORE_INDEX = -100
ATT_SCALE = 1.0 / math.sqrt(DH)


# ----------------------------- in-kernel helpers ------------------------------
def _layernorm(x, g, b):
    mean = jnp.mean(x, axis=-1, keepdims=True)
    var = jnp.mean((x - mean) ** 2, axis=-1, keepdims=True)
    return (x - mean) * jax.lax.rsqrt(var + LN_EPS) * g + b


def _gelu(x):
    # exact (erf) GELU, as used by bert-base-uncased
    return 0.5 * x * (1.0 + jax.lax.erf(x * 0.7071067811865476))


def _softmax_rows(s):
    m = jnp.max(s, axis=-1, keepdims=True)
    p = jnp.exp(s - m)
    return p * pl.reciprocal(jnp.sum(p, axis=-1, keepdims=True), approx=True)


# ----------------------------- fused model kernel -----------------------------
def _model_kernel(labels_ref,                         # SMEM (B, S) int32 (scalar prefetch)
                  x_ref,                              # (1, S, H)  inputs_embeds (this batch)
                  posty_ref,                          # (S, H)     pos + token-type embeddings
                  maskb_ref,                          # (1, 1, S)  additive attention bias
                  emb_g_ref, emb_b_ref,               # (1, H)
                  wqkv_ref, bqkv_ref,                 # (L, H, 3H), (L, 1, 3H)
                  wo_ref, bo_ref,                     # (L, H, H),  (L, 1, H)
                  ln1g_ref, ln1b_ref,                 # (L, 1, H)
                  w1_ref, b1_ref,                     # (L, H, I),  (L, 1, I)
                  w2_ref, b2_ref,                     # (L, I, H),  (L, 1, H)
                  ln2g_ref, ln2b_ref,                 # (L, 1, H)
                  wt_ref, bt_ref,                     # (H, H), (1, H)
                  hg_ref, hb_ref,                     # (1, H)
                  wdec_ref, bdec_ref,                 # (H, V), (1, V)
                  logits_ref,                         # out: (1, S, V)
                  stats_ref):                         # out: (1, 1, 128) [loss_sum, valid_cnt]
    b = pl.program_id(0)

    # --- BERT embeddings: inputs_embeds + position + token_type(0), LayerNorm
    x = x_ref[0].astype(jnp.float32) + posty_ref[...]
    x = _layernorm(x, emb_g_ref[...], emb_b_ref[...])

    bias = maskb_ref[0]                               # (1, S) over key positions

    # --- L encoder layers (QKV fused, per-head static slices, residual+LN, FFN)
    for l in range(L):
        qkv = jnp.dot(x, wqkv_ref[l], preferred_element_type=jnp.float32) + bqkv_ref[l]
        ctx_heads = []
        for h in range(NH):
            qh = qkv[:, h * DH:(h + 1) * DH]
            kh = qkv[:, H + h * DH:H + (h + 1) * DH]
            vh = qkv[:, 2 * H + h * DH:2 * H + (h + 1) * DH]
            scores = jax.lax.dot_general(
                qh, kh, (((1,), (1,)), ((), ())),
                preferred_element_type=jnp.float32) * ATT_SCALE
            p = _softmax_rows(scores + bias)
            ctx_heads.append(jnp.dot(p, vh, preferred_element_type=jnp.float32))
        ctx = jnp.concatenate(ctx_heads, axis=-1)     # (S, H)
        attn = jnp.dot(ctx, wo_ref[l], preferred_element_type=jnp.float32) + bo_ref[l]
        x = _layernorm(attn + x, ln1g_ref[l], ln1b_ref[l])

        hid = _gelu(jnp.dot(x, w1_ref[l], preferred_element_type=jnp.float32) + b1_ref[l])
        ffn = jnp.dot(hid, w2_ref[l], preferred_element_type=jnp.float32) + b2_ref[l]
        x = _layernorm(ffn + x, ln2g_ref[l], ln2b_ref[l])

    # --- MLM head: dense + gelu + LayerNorm + decoder (lane-dense V=128)
    t = _gelu(jnp.dot(x, wt_ref[...], preferred_element_type=jnp.float32) + bt_ref[...])
    t = _layernorm(t, hg_ref[...], hb_ref[...])
    logits = jnp.dot(t, wdec_ref[...], preferred_element_type=jnp.float32) + bdec_ref[...]
    logits_ref[0] = logits.astype(logits_ref.dtype)

    # --- cross-entropy partial sums for this batch (ignore_index = -100)
    m = jnp.max(logits, axis=-1, keepdims=True)
    lse = m + jnp.log(jnp.sum(jnp.exp(logits - m), axis=-1, keepdims=True))   # (S, 1)
    lanes = jax.lax.broadcasted_iota(jnp.int32, (S, V), 1)
    rows = jax.lax.broadcasted_iota(jnp.int32, (S, V), 0)
    rowcol = jax.lax.broadcasted_iota(jnp.int32, (S, 1), 0)
    onehot = jnp.zeros((S, V), jnp.float32)
    valid = jnp.zeros((S, 1), jnp.float32)
    for s in range(S):                                # S=8, labels read from SMEM scalars
        lab = labels_ref[b, s]
        onehot = jnp.where(jnp.logical_and(rows == s, lanes == lab), 1.0, onehot)
        valid = jnp.where(rowcol == s,
                          (lab != IGNORE_INDEX).astype(jnp.float32), valid)
    picked = jnp.sum(logits * onehot, axis=-1, keepdims=True)
    per_tok = (lse - picked) * valid
    total = jnp.sum(per_tok)
    count = jnp.sum(valid)
    lane1 = jax.lax.broadcasted_iota(jnp.int32, (1, 128), 1)
    stats_ref[0] = jnp.where(lane1 == 0, total, jnp.where(lane1 == 1, count, 0.0))


# ----------------------------- parameters ------------------------------------
def init_params(key):
    def nrm(key, shape, scale=0.02):
        return scale * jax.random.normal(key, shape, dtype=jnp.float32)

    keys = iter(jax.random.split(key, 8 + L * 8))
    params = {
        "pos_emb": nrm(next(keys), (MAX_POS, H)),
        "type_emb": nrm(next(keys), (2, H)),
        "emb_ln_g": jnp.ones((H,), jnp.float32),
        "emb_ln_b": jnp.zeros((H,), jnp.float32),
        # MLM head (transform dense + LN + decoder)
        "w_t": nrm(next(keys), (H, H)),
        "b_t": jnp.zeros((H,), jnp.float32),
        "head_ln_g": jnp.ones((H,), jnp.float32),
        "head_ln_b": jnp.zeros((H,), jnp.float32),
        "w_dec": nrm(next(keys), (H, V)),
        "b_dec": jnp.zeros((V,), jnp.float32),
        "layers": [],
    }
    for _ in range(L):
        lp = {
            "wq": nrm(next(keys), (H, H)), "bq": jnp.zeros((H,), jnp.float32),
            "wk": nrm(next(keys), (H, H)), "bk": jnp.zeros((H,), jnp.float32),
            "wv": nrm(next(keys), (H, H)), "bv": jnp.zeros((H,), jnp.float32),
            "wo": nrm(next(keys), (H, H)), "bo": jnp.zeros((H,), jnp.float32),
            "ln1_g": jnp.ones((H,), jnp.float32), "ln1_b": jnp.zeros((H,), jnp.float32),
            "w1": nrm(next(keys), (H, I)), "b1": jnp.zeros((I,), jnp.float32),
            "w2": nrm(next(keys), (I, H)), "b2": jnp.zeros((H,), jnp.float32),
            "ln2_g": jnp.ones((H,), jnp.float32), "ln2_b": jnp.zeros((H,), jnp.float32),
        }
        params["layers"].append(lp)
    return params


def pack_params(params):
    """One-time preprocessing: fuse QKV, stack layers, pre-shape biases as (1, N)."""
    layers = params["layers"]
    stack = lambda name: jnp.stack([lp[name] for lp in layers])
    stack_row = lambda name: jnp.stack([lp[name][None, :] for lp in layers])
    return {
        "posty": params["pos_emb"][:S] + params["type_emb"][0][None, :],
        "emb_g": params["emb_ln_g"][None, :], "emb_b": params["emb_ln_b"][None, :],
        "wqkv": jnp.stack([jnp.concatenate([lp["wq"], lp["wk"], lp["wv"]], axis=1)
                           for lp in layers]),
        "bqkv": jnp.stack([jnp.concatenate([lp["bq"], lp["bk"], lp["bv"]])[None, :]
                           for lp in layers]),
        "wo": stack("wo"), "bo": stack_row("bo"),
        "ln1g": stack_row("ln1_g"), "ln1b": stack_row("ln1_b"),
        "w1": stack("w1"), "b1": stack_row("b1"),
        "w2": stack("w2"), "b2": stack_row("b2"),
        "ln2g": stack_row("ln2_g"), "ln2b": stack_row("ln2_b"),
        "wt": params["w_t"], "bt": params["b_t"][None, :],
        "hg": params["head_ln_g"][None, :], "hb": params["head_ln_b"][None, :],
        "wdec": params["w_dec"], "bdec": params["b_dec"][None, :],
    }


# ----------------------------- forward (single pallas_call) -------------------
def inversion_plm_forward(packed, inputs_embeds, labels, attention_mask):
    """Mirrors InversionPLM.forward: returns (logits [B,S,V], scalar loss)."""
    Bb, Ss, Hh = inputs_embeds.shape
    # HF uses (1 - mask) * finfo.min; -1e9 is equivalent post-softmax
    mask_bias = ((1.0 - attention_mask.astype(jnp.float32)) * (-1e9)).reshape(Bb, 1, Ss)
    labels_i32 = labels.astype(jnp.int32)

    def full(*shape):                      # whole-array block (weights / shared params)
        return pl.BlockSpec(shape, lambda b, *_: (0,) * len(shape))

    def per_batch(*shape):                 # one batch row per grid step
        return pl.BlockSpec((1,) + shape, lambda b, *_: (b,) + (0,) * len(shape))

    grid_spec = pltpu.PrefetchScalarGridSpec(
        num_scalar_prefetch=1,             # labels -> SMEM
        grid=(Bb,),
        in_specs=[
            per_batch(Ss, Hh),                             # inputs_embeds
            full(Ss, Hh),                                  # pos + type embeddings
            per_batch(1, Ss),                              # attention mask bias
            full(1, Hh), full(1, Hh),                      # embedding LN
            full(L, Hh, 3 * Hh), full(L, 1, 3 * Hh),       # fused QKV
            full(L, Hh, Hh), full(L, 1, Hh),               # attn out proj
            full(L, 1, Hh), full(L, 1, Hh),                # LN1
            full(L, Hh, I), full(L, 1, I),                 # FFN up
            full(L, I, Hh), full(L, 1, Hh),                # FFN down
            full(L, 1, Hh), full(L, 1, Hh),                # LN2
            full(Hh, Hh), full(1, Hh),                     # head transform
            full(1, Hh), full(1, Hh),                      # head LN
            full(Hh, V), full(1, V),                       # decoder
        ],
        out_specs=[
            pl.BlockSpec((1, Ss, V), lambda b, *_: (b, 0, 0)),     # logits (lane-dense)
            pl.BlockSpec((1, 1, 128), lambda b, *_: (b, 0, 0)),    # CE partial sums
        ],
    )

    logits, stats = pl.pallas_call(
        _model_kernel,
        out_shape=(jax.ShapeDtypeStruct((Bb, Ss, V), jnp.float32),
                   jax.ShapeDtypeStruct((Bb, 1, 128), jnp.float32)),
        grid_spec=grid_spec,
        compiler_params=pltpu.CompilerParams(
            dimension_semantics=("parallel",)),            # 2 TCs on v7x; no-op on v5e/v6e
    )(labels_i32, inputs_embeds, packed["posty"], mask_bias,
      packed["emb_g"], packed["emb_b"],
      packed["wqkv"], packed["bqkv"], packed["wo"], packed["bo"],
      packed["ln1g"], packed["ln1b"], packed["w1"], packed["b1"],
      packed["w2"], packed["b2"], packed["ln2g"], packed["ln2b"],
      packed["wt"], packed["bt"], packed["hg"], packed["hb"],
      packed["wdec"], packed["bdec"])

    # Combine per-batch partial sums into the scalar mean CE loss.
    # (PyTorch returns NaN when ALL labels are ignored; this returns 0 in that case.)
    loss = jnp.sum(stats[:, 0, 0]) / jnp.maximum(jnp.sum(stats[:, 0, 1]), 1.0)
    return logits, loss

# TODO(synk): pretrained 'bert-base-uncased' weights (AutoModelForMaskedLM) are
# not loadable here; parameters are synthetic deterministic initializations.
# TODO(synk): at real bert-base scale (V=30522) the decoder/CE path would need a
# vocab-tiled grid with an online LSE reduction to fit v7x's 64 MiB VMEM.


# ----------------------------- driver -----------------------------------------
if __name__ == "__main__":
    key = jax.random.PRNGKey(0)
    kp, kx, kl = jax.random.split(key, 3)

    params = init_params(kp)
    packed = pack_params(params)

    x = jax.random.normal(kx, (B, S, H), dtype=jnp.float32)     # inputs_embeds
    labels = jax.random.randint(kl, (B, S), 0, V, dtype=jnp.int32)
    labels = labels.at[0, 0].set(IGNORE_INDEX)                  # exercise ignore_index
    attention_mask = jnp.ones((B, S), dtype=jnp.int32)
    attention_mask = attention_mask.at[1, S - 1].set(0)         # exercise masking

    fwd = jax.jit(inversion_plm_forward)
    logits, loss = fwd(packed, x, labels, attention_mask)
    jax.block_until_ready((logits, loss))

    assert logits.shape == (B, S, V)
    assert bool(jnp.isfinite(loss))
    print("KERNEL_OK")
</pallas_src>

<mosaic_0001>
module attributes {stable_mosaic.version = 11 : i64} {
  func.func @_model_kernel(%arg0: i32, %arg1: memref<2x8xi32, #tpu.memory_space<smem>>, %arg2: memref<1x8x32xf32, #tpu.memory_space<vmem>>, %arg3: memref<8x32xf32, #tpu.memory_space<vmem>>, %arg4: memref<1x1x8xf32, #tpu.memory_space<vmem>>, %arg5: memref<1x32xf32, #tpu.memory_space<vmem>>, %arg6: memref<1x32xf32, #tpu.memory_space<vmem>>, %arg7: memref<2x32x96xf32, #tpu.memory_space<vmem>>, %arg8: memref<2x1x96xf32, #tpu.memory_space<vmem>>, %arg9: memref<2x32x32xf32, #tpu.memory_space<vmem>>, %arg10: memref<2x1x32xf32, #tpu.memory_space<vmem>>, %arg11: memref<2x1x32xf32, #tpu.memory_space<vmem>>, %arg12: memref<2x1x32xf32, #tpu.memory_space<vmem>>, %arg13: memref<2x32x64xf32, #tpu.memory_space<vmem>>, %arg14: memref<2x1x64xf32, #tpu.memory_space<vmem>>, %arg15: memref<2x64x32xf32, #tpu.memory_space<vmem>>, %arg16: memref<2x1x32xf32, #tpu.memory_space<vmem>>, %arg17: memref<2x1x32xf32, #tpu.memory_space<vmem>>, %arg18: memref<2x1x32xf32, #tpu.memory_space<vmem>>, %arg19: memref<32x32xf32, #tpu.memory_space<vmem>>, %arg20: memref<1x32xf32, #tpu.memory_space<vmem>>, %arg21: memref<1x32xf32, #tpu.memory_space<vmem>>, %arg22: memref<1x32xf32, #tpu.memory_space<vmem>>, %arg23: memref<32x128xf32, #tpu.memory_space<vmem>>, %arg24: memref<1x128xf32, #tpu.memory_space<vmem>>, %arg25: memref<1x8x128xf32, #tpu.memory_space<vmem>>, %arg26: memref<1x1x128xf32, #tpu.memory_space<vmem>>) attributes {dimension_semantics = [#tpu.dimension_semantics<parallel>], iteration_bounds = array<i64: 2>, scalar_prefetch = 1 : i64, scratch_operands = 0 : i64, tpu.core_type = #tpu.core_type<tc>, window_params = [{transform_indices = @transform_0, window_bounds = array<i64: 1, 8, 32>}, {pipeline_mode = #tpu.pipeline_mode<synchronous>, transform_indices = @transform_1, window_bounds = array<i64: 8, 32>}, {transform_indices = @transform_2, window_bounds = array<i64: 1, 1, 8>}, {pipeline_mode = #tpu.pipeline_mode<synchronous>, transform_indices = @transform_3, window_bounds = array<i64: 1, 32>}, {pipeline_mode = #tpu.pipeline_mode<synchronous>, transform_indices = @transform_4, window_bounds = array<i64: 1, 32>}, {pipeline_mode = #tpu.pipeline_mode<synchronous>, transform_indices = @transform_5, window_bounds = array<i64: 2, 32, 96>}, {pipeline_mode = #tpu.pipeline_mode<synchronous>, transform_indices = @transform_6, window_bounds = array<i64: 2, 1, 96>}, {pipeline_mode = #tpu.pipeline_mode<synchronous>, transform_indices = @transform_7, window_bounds = array<i64: 2, 32, 32>}, {pipeline_mode = #tpu.pipeline_mode<synchronous>, transform_indices = @transform_8, window_bounds = array<i64: 2, 1, 32>}, {pipeline_mode = #tpu.pipeline_mode<synchronous>, transform_indices = @transform_9, window_bounds = array<i64: 2, 1, 32>}, {pipeline_mode = #tpu.pipeline_mode<synchronous>, transform_indices = @transform_10, window_bounds = array<i64: 2, 1, 32>}, {pipeline_mode = #tpu.pipeline_mode<synchronous>, transform_indices = @transform_11, window_bounds = array<i64: 2, 32, 64>}, {pipeline_mode = #tpu.pipeline_mode<synchronous>, transform_indices = @transform_12, window_bounds = array<i64: 2, 1, 64>}, {pipeline_mode = #tpu.pipeline_mode<synchronous>, transform_indices = @transform_13, window_bounds = array<i64: 2, 64, 32>}, {pipeline_mode = #tpu.pipeline_mode<synchronous>, transform_indices = @transform_14, window_bounds = array<i64: 2, 1, 32>}, {pipeline_mode = #tpu.pipeline_mode<synchronous>, transform_indices = @transform_15, window_bounds = array<i64: 2, 1, 32>}, {pipeline_mode = #tpu.pipeline_mode<synchronous>, transform_indices = @transform_16, window_bounds = array<i64: 2, 1, 32>}, {pipeline_mode = #tpu.pipeline_mode<synchronous>, transform_indices = @transform_17, window_bounds = array<i64: 32, 32>}, {pipeline_mode = #tpu.pipeline_mode<synchronous>, transform_indices = @transform_18, window_bounds = array<i64: 1, 32>}, {pipeline_mode = #tpu.pipeline_mode<synchronous>, transform_indices = @transform_19, window_bounds = array<i64: 1, 32>}, {pipeline_mode = #tpu.pipeline_mode<synchronous>, transform_indices = @transform_20, window_bounds = array<i64: 1, 32>}, {pipeline_mode = #tpu.pipeline_mode<synchronous>, transform_indices = @transform_21, window_bounds = array<i64: 32, 128>}, {pipeline_mode = #tpu.pipeline_mode<synchronous>, transform_indices = @transform_22, window_bounds = array<i64: 1, 128>}, {transform_indices = @transform_23, window_bounds = array<i64: 1, 8, 128>}, {transform_indices = @transform_24, window_bounds = array<i64: 1, 1, 128>}]} {
    %c0 = arith.constant 0 : index
    %c0_0 = arith.constant 0 : index
    %c0_1 = arith.constant 0 : index
    %0 = vector.load %arg2[%c0, %c0_0, %c0_1] : memref<1x8x32xf32, #tpu.memory_space<vmem>>, vector<1x8x32xf32>
    %1 = vector.shape_cast %0 : vector<1x8x32xf32> to vector<8x32xf32>
    %c0_2 = arith.constant 0 : index
    %c0_3 = arith.constant 0 : index
    %2 = vector.load %arg3[%c0_2, %c0_3] : memref<8x32xf32, #tpu.memory_space<vmem>>, vector<8x32xf32>
    %3 = arith.addf %1, %2 : vector<8x32xf32>
    %c0_4 = arith.constant 0 : index
    %c0_5 = arith.constant 0 : index
    %4 = vector.load %arg5[%c0_4, %c0_5] : memref<1x32xf32, #tpu.memory_space<vmem>>, vector<1x32xf32>
    %c0_6 = arith.constant 0 : index
    %c0_7 = arith.constant 0 : index
    %5 = vector.load %arg6[%c0_6, %c0_7] : memref<1x32xf32, #tpu.memory_space<vmem>>, vector<1x32xf32>
    %cst = arith.constant dense<0.000000e+00> : vector<8xf32>
    %6 = vector.multi_reduction <add>, %3, %cst [1] : vector<8x32xf32> to vector<8xf32>
    %7 = vector.shape_cast %6 : vector<8xf32> to vector<8x1xf32>
    %cst_8 = arith.constant 3.200000e+01 : f32
    %8 = vector.broadcast %cst_8 : f32 to vector<8x1xf32>
    %9 = arith.divf %7, %8 : vector<8x1xf32>
    %10 = vector.broadcast %9 : vector<8x1xf32> to vector<8x32xf32>
    %11 = arith.subf %3, %10 : vector<8x32xf32>
    %12 = arith.mulf %11, %11 : vector<8x32xf32>
    %cst_9 = arith.constant dense<0.000000e+00> : vector<8xf32>
    %13 = vector.multi_reduction <add>, %12, %cst_9 [1] : vector<8x32xf32> to vector<8xf32>
    %14 = vector.shape_cast %13 : vector<8xf32> to vector<8x1xf32>
    %cst_10 = arith.constant 3.200000e+01 : f32
    %15 = vector.broadcast %cst_10 : f32 to vector<8x1xf32>
    %16 = arith.divf %14, %15 : vector<8x1xf32>
    %17 = vector.broadcast %9 : vector<8x1xf32> to vector<8x32xf32>
    %18 = arith.subf %3, %17 : vector<8x32xf32>
    %cst_11 = arith.constant 9.99999996E-13 : f32
    %19 = vector.broadcast %cst_11 : f32 to vector<8x1xf32>
    %20 = arith.addf %16, %19 : vector<8x1xf32>
    %21 = math.rsqrt %20 : vector<8x1xf32>
    %22 = vector.broadcast %21 : vector<8x1xf32> to vector<8x32xf32>
    %23 = arith.mulf %18, %22 : vector<8x32xf32>
    %24 = vector.broadcast %4 : vector<1x32xf32> to vector<8x32xf32>
    %25 = arith.mulf %23, %24 : vector<8x32xf32>
    %26 = vector.broadcast %5 : vector<1x32xf32> to vector<8x32xf32>
    %27 = arith.addf %25, %26 : vector<8x32xf32>
    %c0_12 = arith.constant 0 : index
    %c0_13 = arith.constant 0 : index
    %c0_14 = arith.constant 0 : index
    %28 = vector.load %arg4[%c0_12, %c0_13, %c0_14] : memref<1x1x8xf32, #tpu.memory_space<vmem>>, vector<1x1x8xf32>
    %29 = vector.shape_cast %28 : vector<1x1x8xf32> to vector<1x8xf32>
    %c0_15 = arith.constant 0 : index
    %c0_16 = arith.constant 0 : index
    %c0_17 = arith.constant 0 : index
    %30 = vector.load %arg7[%c0_15, %c0_16, %c0_17] : memref<2x32x96xf32, #tpu.memory_space<vmem>>, vector<1x32x96xf32>
    %31 = vector.shape_cast %30 : vector<1x32x96xf32> to vector<32x96xf32>
    %cst_18 = arith.constant dense<0.000000e+00> : vector<8x96xf32>
    %32 = tpu.matmul %27, %31, %cst_18 {dimension_numbers = #tpu.dot_dimension_numbers<[1], [0], [0], [1], [0, 0, 1, 1], [], []>} : vector<8x32xf32>, vector<32x96xf32>, vector<8x96xf32> -> vector<8x96xf32>
    %c0_19 = arith.constant 0 : index
    %c0_20 = arith.constant 0 : index
    %c0_21 = arith.constant 0 : index
    %33 = vector.load %arg8[%c0_19, %c0_20, %c0_21] : memref<2x1x96xf32, #tpu.memory_space<vmem>>, vector<1x1x96xf32>
    %34 = vector.shape_cast %33 : vector<1x1x96xf32> to vector<1x96xf32>
    %35 = vector.broadcast %34 : vector<1x96xf32> to vector<8x96xf32>
    %36 = arith.addf %32, %35 : vector<8x96xf32>
    %37 = vector.extract_strided_slice %36 {offsets = [0, 0], sizes = [8, 8], strides = [1, 1]} : vector<8x96xf32> to vector<8x8xf32>
    %38 = vector.extract_strided_slice %36 {offsets = [0, 32], sizes = [8, 8], strides = [1, 1]} : vector<8x96xf32> to vector<8x8xf32>
    %39 = vector.extract_strided_slice %36 {offsets = [0, 64], sizes = [8, 8], strides = [1, 1]} : vector<8x96xf32> to vector<8x8xf32>
    %cst_22 = arith.constant dense<0.000000e+00> : vector<8x8xf32>
    %40 = tpu.matmul %37, %38, %cst_22 {dimension_numbers = #tpu.dot_dimension_numbers<[1], [1], [0], [0], [0, 0, 1, 0], [], []>} : vector<8x8xf32>, vector<8x8xf32>, vector<8x8xf32> -> vector<8x8xf32>
    %cst_23 = arith.constant 0.353553385 : f32
    %41 = vector.broadcast %cst_23 : f32 to vector<8x8xf32>
    %42 = arith.mulf %40, %41 : vector<8x8xf32>
    %43 = vector.broadcast %29 : vector<1x8xf32> to vector<8x8xf32>
    %44 = arith.addf %42, %43 : vector<8x8xf32>
    %cst_24 = arith.constant dense<0xFF800000> : vector<8xf32>
    %45 = vector.multi_reduction <maximumf>, %44, %cst_24 [1] : vector<8x8xf32> to vector<8xf32>
    %46 = vector.shape_cast %45 : vector<8xf32> to vector<8x1xf32>
    %47 = vector.broadcast %46 : vector<8x1xf32> to vector<8x8xf32>
    %48 = arith.subf %44, %47 : vector<8x8xf32>
    %49 = math.exp %48 : vector<8x8xf32>
    %cst_25 = arith.constant dense<0.000000e+00> : vector<8xf32>
    %50 = vector.multi_reduction <add>, %49, %cst_25 [1] : vector<8x8xf32> to vector<8xf32>
    %51 = vector.shape_cast %50 : vector<8xf32> to vector<8x1xf32>
    %52 = tpu.reciprocal %51 {approx = true} : vector<8x1xf32> -> vector<8x1xf32>
    %53 = vector.broadcast %52 : vector<8x1xf32> to vector<8x8xf32>
    %54 = arith.mulf %49, %53 : vector<8x8xf32>
    %cst_26 = arith.constant dense<0.000000e+00> : vector<8x8xf32>
    %55 = tpu.matmul %54, %39, %cst_26 {dimension_numbers = #tpu.dot_dimension_numbers<[1], [0], [0], [1], [0, 0, 1, 1], [], []>} : vector<8x8xf32>, vector<8x8xf32>, vector<8x8xf32> -> vector<8x8xf32>
    %56 = vector.extract_strided_slice %36 {offsets = [0, 8], sizes = [8, 8], strides = [1, 1]} : vector<8x96xf32> to vector<8x8xf32>
    %57 = vector.extract_strided_slice %36 {offsets = [0, 40], sizes = [8, 8], strides = [1, 1]} : vector<8x96xf32> to vector<8x8xf32>
    %58 = vector.extract_strided_slice %36 {offsets = [0, 72], sizes = [8, 8], strides = [1, 1]} : vector<8x96xf32> to vector<8x8xf32>
    %cst_27 = arith.constant dense<0.000000e+00> : vector<8x8xf32>
    %59 = tpu.matmul %56, %57, %cst_27 {dimension_numbers = #tpu.dot_dimension_numbers<[1], [1], [0], [0], [0, 0, 1, 0], [], []>} : vector<8x8xf32>, vector<8x8xf32>, vector<8x8xf32> -> vector<8x8xf32>
    %cst_28 = arith.constant 0.353553385 : f32
    %60 = vector.broadcast %cst_28 : f32 to vector<8x8xf32>
    %61 = arith.mulf %59, %60 : vector<8x8xf32>
    %62 = vector.broadcast %29 : vector<1x8xf32> to vector<8x8xf32>
    %63 = arith.addf %61, %62 : vector<8x8xf32>
    %cst_29 = arith.constant dense<0xFF800000> : vector<8xf32>
    %64 = vector.multi_reduction <maximumf>, %63, %cst_29 [1] : vector<8x8xf32> to vector<8xf32>
    %65 = vector.shape_cast %64 : vector<8xf32> to vector<8x1xf32>
    %66 = vector.broadcast %65 : vector<8x1xf32> to vector<8x8xf32>
    %67 = arith.subf %63, %66 : vector<8x8xf32>
    %68 = math.exp %67 : vector<8x8xf32>
    %cst_30 = arith.constant dense<0.000000e+00> : vector<8xf32>
    %69 = vector.multi_reduction <add>, %68, %cst_30 [1] : vector<8x8xf32> to vector<8xf32>
    %70 = vector.shape_cast %69 : vector<8xf32> to vector<8x1xf32>
    %71 = tpu.reciprocal %70 {approx = true} : vector<8x1xf32> -> vector<8x1xf32>
    %72 = vector.broadcast %71 : vector<8x1xf32> to vector<8x8xf32>
    %73 = arith.mulf %68, %72 : vector<8x8xf32>
    %cst_31 = arith.constant dense<0.000000e+00> : vector<8x8xf32>
    %74 = tpu.matmul %73, %58, %cst_31 {dimension_numbers = #tpu.dot_dimension_numbers<[1], [0], [0], [1], [0, 0, 1, 1], [], []>} : vector<8x8xf32>, vector<8x8xf32>, vector<8x8xf32> -> vector<8x8xf32>
    %75 = vector.extract_strided_slice %36 {offsets = [0, 16], sizes = [8, 8], strides = [1, 1]} : vector<8x96xf32> to vector<8x8xf32>
    %76 = vector.extract_strided_slice %36 {offsets = [0, 48], sizes = [8, 8], strides = [1, 1]} : vector<8x96xf32> to vector<8x8xf32>
    %77 = vector.extract_strided_slice %36 {offsets = [0, 80], sizes = [8, 8], strides = [1, 1]} : vector<8x96xf32> to vector<8x8xf32>
    %cst_32 = arith.constant dense<0.000000e+00> : vector<8x8xf32>
    %78 = tpu.matmul %75, %76, %cst_32 {dimension_numbers = #tpu.dot_dimension_numbers<[1], [1], [0], [0], [0, 0, 1, 0], [], []>} : vector<8x8xf32>, vector<8x8xf32>, vector<8x8xf32> -> vector<8x8xf32>
    %cst_33 = arith.constant 0.353553385 : f32
    %79 = vector.broadcast %cst_33 : f32 to vector<8x8xf32>
    %80 = arith.mulf %78, %79 : vector<8x8xf32>
    %81 = vector.broadcast %29 : vector<1x8xf32> to vector<8x8xf32>
    %82 = arith.addf %80, %81 : vector<8x8xf32>
    %cst_34 = arith.constant dense<0xFF800000> : vector<8xf32>
    %83 = vector.multi_reduction <maximumf>, %82, %cst_34 [1] : vector<8x8xf32> to vector<8xf32>
    %84 = vector.shape_cast %83 : vector<8xf32> to vector<8x1xf32>
    %85 = vector.broadcast %84 : vector<8x1xf32> to vector<8x8xf32>
    %86 = arith.subf %82, %85 : vector<8x8xf32>
    %87 = math.exp %86 : vector<8x8xf32>
    %cst_35 = arith.constant dense<0.000000e+00> : vector<8xf32>
    %88 = vector.multi_reduction <add>, %87, %cst_35 [1] : vector<8x8xf32> to vector<8xf32>
    %89 = vector.shape_cast %88 : vector<8xf32> to vector<8x1xf32>
    %90 = tpu.reciprocal %89 {approx = true} : vector<8x1xf32> -> vector<8x1xf32>
    %91 = vector.broadcast %90 : vector<8x1xf32> to vector<8x8xf32>
    %92 = arith.mulf %87, %91 : vector<8x8xf32>
    %cst_36 = arith.constant dense<0.000000e+00> : vector<8x8xf32>
    %93 = tpu.matmul %92, %77, %cst_36 {dimension_numbers = #tpu.dot_dimension_numbers<[1], [0], [0], [1], [0, 0, 1, 1], [], []>} : vector<8x8xf32>, vector<8x8xf32>, vector<8x8xf32> -> vector<8x8xf32>
    %94 = vector.extract_strided_slice %36 {offsets = [0, 24], sizes = [8, 8], strides = [1, 1]} : vector<8x96xf32> to vector<8x8xf32>
    %95 = vector.extract_strided_slice %36 {offsets = [0, 56], sizes = [8, 8], strides = [1, 1]} : vector<8x96xf32> to vector<8x8xf32>
    %96 = vector.extract_strided_slice %36 {offsets = [0, 88], sizes = [8, 8], strides = [1, 1]} : vector<8x96xf32> to vector<8x8xf32>
    %cst_37 = arith.constant dense<0.000000e+00> : vector<8x8xf32>
    %97 = tpu.matmul %94, %95, %cst_37 {dimension_numbers = #tpu.dot_dimension_numbers<[1], [1], [0], [0], [0, 0, 1, 0], [], []>} : vector<8x8xf32>, vector<8x8xf32>, vector<8x8xf32> -> vector<8x8xf32>
    %cst_38 = arith.constant 0.353553385 : f32
    %98 = vector.broadcast %cst_38 : f32 to vector<8x8xf32>
    %99 = arith.mulf %97, %98 : vector<8x8xf32>
    %100 = vector.broadcast %29 : vector<1x8xf32> to vector<8x8xf32>
    %101 = arith.addf %99, %100 : vector<8x8xf32>
    %cst_39 = arith.constant dense<0xFF800000> : vector<8xf32>
    %102 = vector.multi_reduction <maximumf>, %101, %cst_39 [1] : vector<8x8xf32> to vector<8xf32>
    %103 = vector.shape_cast %102 : vector<8xf32> to vector<8x1xf32>
    %104 = vector.broadcast %103 : vector<8x1xf32> to vector<8x8xf32>
    %105 = arith.subf %101, %104 : vector<8x8xf32>
    %106 = math.exp %105 : vector<8x8xf32>
    %cst_40 = arith.constant dense<0.000000e+00> : vector<8xf32>
    %107 = vector.multi_reduction <add>, %106, %cst_40 [1] : vector<8x8xf32> to vector<8xf32>
    %108 = vector.shape_cast %107 : vector<8xf32> to vector<8x1xf32>
    %109 = tpu.reciprocal %108 {approx = true} : vector<8x1xf32> -> vector<8x1xf32>
    %110 = vector.broadcast %109 : vector<8x1xf32> to vector<8x8xf32>
    %111 = arith.mulf %106, %110 : vector<8x8xf32>
    %cst_41 = arith.constant dense<0.000000e+00> : vector<8x8xf32>
    %112 = tpu.matmul %111, %96, %cst_41 {dimension_numbers = #tpu.dot_dimension_numbers<[1], [0], [0], [1], [0, 0, 1, 1], [], []>} : vector<8x8xf32>, vector<8x8xf32>, vector<8x8xf32> -> vector<8x8xf32>
    %113 = tpu.concatenate %55, %74, %93, %112 in 1 : vector<8x8xf32>, vector<8x8xf32>, vector<8x8xf32>, vector<8x8xf32> -> vector<8x32xf32>
    %c0_42 = arith.constant 0 : index
    %c0_43 = arith.constant 0 : index
    %c0_44 = arith.constant 0 : index
    %114 = vector.load %arg9[%c0_42, %c0_43, %c0_44] : memref<2x32x32xf32, #tpu.memory_space<vmem>>, vector<1x32x32xf32>
    %115 = vector.shape_cast %114 : vector<1x32x32xf32> to vector<32x32xf32>
    %cst_45 = arith.constant dense<0.000000e+00> : vector<8x32xf32>
    %116 = tpu.matmul %113, %115, %cst_45 {dimension_numbers = #tpu.dot_dimension_numbers<[1], [0], [0], [1], [0, 0, 1, 1], [], []>} : vector<8x32xf32>, vector<32x32xf32>, vector<8x32xf32> -> vector<8x32xf32>
    %c0_46 = arith.constant 0 : index
    %c0_47 = arith.constant 0 : index
    %c0_48 = arith.constant 0 : index
    %117 = vector.load %arg10[%c0_46, %c0_47, %c0_48] : memref<2x1x32xf32, #tpu.memory_space<vmem>>, vector<1x1x32xf32>
    %118 = vector.shape_cast %117 : vector<1x1x32xf32> to vector<1x32xf32>
    %119 = vector.broadcast %118 : vector<1x32xf32> to vector<8x32xf32>
    %120 = arith.addf %116, %119 : vector<8x32xf32>
    %121 = arith.addf %120, %27 : vector<8x32xf32>
    %c0_49 = arith.constant 0 : index
    %c0_50 = arith.constant 0 : index
    %c0_51 = arith.constant 0 : index
    %122 = vector.load %arg11[%c0_49, %c0_50, %c0_51] : memref<2x1x32xf32, #tpu.memory_space<vmem>>, vector<1x1x32xf32>
    %123 = vector.shape_cast %122 : vector<1x1x32xf32> to vector<1x32xf32>
    %c0_52 = arith.constant 0 : index
    %c0_53 = arith.constant 0 : index
    %c0_54 = arith.constant 0 : index
    %124 = vector.load %arg12[%c0_52, %c0_53, %c0_54] : memref<2x1x32xf32, #tpu.memory_space<vmem>>, vector<1x1x32xf32>
    %125 = vector.shape_cast %124 : vector<1x1x32xf32> to vector<1x32xf32>
    %cst_55 = arith.constant dense<0.000000e+00> : vector<8xf32>
    %126 = vector.multi_reduction <add>, %121, %cst_55 [1] : vector<8x32xf32> to vector<8xf32>
    %127 = vector.shape_cast %126 : vector<8xf32> to vector<8x1xf32>
    %cst_56 = arith.constant 3.200000e+01 : f32
    %128 = vector.broadcast %cst_56 : f32 to vector<8x1xf32>
    %129 = arith.divf %127, %128 : vector<8x1xf32>
    %130 = vector.broadcast %129 : vector<8x1xf32> to vector<8x32xf32>
    %131 = arith.subf %121, %130 : vector<8x32xf32>
    %132 = arith.mulf %131, %131 : vector<8x32xf32>
    %cst_57 = arith.constant dense<0.000000e+00> : vector<8xf32>
    %133 = vector.multi_reduction <add>, %132, %cst_57 [1] : vector<8x32xf32> to vector<8xf32>
    %134 = vector.shape_cast %133 : vector<8xf32> to vector<8x1xf32>
    %cst_58 = arith.constant 3.200000e+01 : f32
    %135 = vector.broadcast %cst_58 : f32 to vector<8x1xf32>
    %136 = arith.divf %134, %135 : vector<8x1xf32>
    %137 = vector.broadcast %129 : vector<8x1xf32> to vector<8x32xf32>
    %138 = arith.subf %121, %137 : vector<8x32xf32>
    %cst_59 = arith.constant 9.99999996E-13 : f32
    %139 = vector.broadcast %cst_59 : f32 to vector<8x1xf32>
    %140 = arith.addf %136, %139 : vector<8x1xf32>
    %141 = math.rsqrt %140 : vector<8x1xf32>
    %142 = vector.broadcast %141 : vector<8x1xf32> to vector<8x32xf32>
    %143 = arith.mulf %138, %142 : vector<8x32xf32>
    %144 = vector.broadcast %123 : vector<1x32xf32> to vector<8x32xf32>
    %145 = arith.mulf %143, %144 : vector<8x32xf32>
    %146 = vector.broadcast %125 : vector<1x32xf32> to vector<8x32xf32>
    %147 = arith.addf %145, %146 : vector<8x32xf32>
    %c0_60 = arith.constant 0 : index
    %c0_61 = arith.constant 0 : index
    %c0_62 = arith.constant 0 : index
    %148 = vector.load %arg13[%c0_60, %c0_61, %c0_62] : memref<2x32x64xf32, #tpu.memory_space<vmem>>, vector<1x32x64xf32>
    %149 = vector.shape_cast %148 : vector<1x32x64xf32> to vector<32x64xf32>
    %cst_63 = arith.constant dense<0.000000e+00> : vector<8x64xf32>
    %150 = tpu.matmul %147, %149, %cst_63 {dimension_numbers = #tpu.dot_dimension_numbers<[1], [0], [0], [1], [0, 0, 1, 1], [], []>} : vector<8x32xf32>, vector<32x64xf32>, vector<8x64xf32> -> vector<8x64xf32>
    %c0_64 = arith.constant 0 : index
    %c0_65 = arith.constant 0 : index
    %c0_66 = arith.constant 0 : index
    %151 = vector.load %arg14[%c0_64, %c0_65, %c0_66] : memref<2x1x64xf32, #tpu.memory_space<vmem>>, vector<1x1x64xf32>
    %152 = vector.shape_cast %151 : vector<1x1x64xf32> to vector<1x64xf32>
    %153 = vector.broadcast %152 : vector<1x64xf32> to vector<8x64xf32>
    %154 = arith.addf %150, %153 : vector<8x64xf32>
    %cst_67 = arith.constant 5.000000e-01 : f32
    %155 = vector.broadcast %cst_67 : f32 to vector<8x64xf32>
    %156 = arith.mulf %155, %154 : vector<8x64xf32>
    %cst_68 = arith.constant 0.707106769 : f32
    %157 = vector.broadcast %cst_68 : f32 to vector<8x64xf32>
    %158 = arith.mulf %154, %157 : vector<8x64xf32>
    %159 = math.erf %158 : vector<8x64xf32>
    %cst_69 = arith.constant 1.000000e+00 : f32
    %160 = vector.broadcast %cst_69 : f32 to vector<8x64xf32>
    %161 = arith.addf %160, %159 : vector<8x64xf32>
    %162 = arith.mulf %156, %161 : vector<8x64xf32>
    %c0_70 = arith.constant 0 : index
    %c0_71 = arith.constant 0 : index
    %c0_72 = arith.constant 0 : index
    %163 = vector.load %arg15[%c0_70, %c0_71, %c0_72] : memref<2x64x32xf32, #tpu.memory_space<vmem>>, vector<1x64x32xf32>
    %164 = vector.shape_cast %163 : vector<1x64x32xf32> to vector<64x32xf32>
    %cst_73 = arith.constant dense<0.000000e+00> : vector<8x32xf32>
    %165 = tpu.matmul %162, %164, %cst_73 {dimension_numbers = #tpu.dot_dimension_numbers<[1], [0], [0], [1], [0, 0, 1, 1], [], []>} : vector<8x64xf32>, vector<64x32xf32>, vector<8x32xf32> -> vector<8x32xf32>
    %c0_74 = arith.constant 0 : index
    %c0_75 = arith.constant 0 : index
    %c0_76 = arith.constant 0 : index
    %166 = vector.load %arg16[%c0_74, %c0_75, %c0_76] : memref<2x1x32xf32, #tpu.memory_space<vmem>>, vector<1x1x32xf32>
    %167 = vector.shape_cast %166 : vector<1x1x32xf32> to vector<1x32xf32>
    %168 = vector.broadcast %167 : vector<1x32xf32> to vector<8x32xf32>
    %169 = arith.addf %165, %168 : vector<8x32xf32>
    %170 = arith.addf %169, %147 : vector<8x32xf32>
    %c0_77 = arith.constant 0 : index
    %c0_78 = arith.constant 0 : index
    %c0_79 = arith.constant 0 : index
    %171 = vector.load %arg17[%c0_77, %c0_78, %c0_79] : memref<2x1x32xf32, #tpu.memory_space<vmem>>, vector<1x1x32xf32>
    %172 = vector.shape_cast %171 : vector<1x1x32xf32> to vector<1x32xf32>
    %c0_80 = arith.constant 0 : index
    %c0_81 = arith.constant 0 : index
    %c0_82 = arith.constant 0 : index
    %173 = vector.load %arg18[%c0_80, %c0_81, %c0_82] : memref<2x1x32xf32, #tpu.memory_space<vmem>>, vector<1x1x32xf32>
    %174 = vector.shape_cast %173 : vector<1x1x32xf32> to vector<1x32xf32>
    %cst_83 = arith.constant dense<0.000000e+00> : vector<8xf32>
    %175 = vector.multi_reduction <add>, %170, %cst_83 [1] : vector<8x32xf32> to vector<8xf32>
    %176 = vector.shape_cast %175 : vector<8xf32> to vector<8x1xf32>
    %cst_84 = arith.constant 3.200000e+01 : f32
    %177 = vector.broadcast %cst_84 : f32 to vector<8x1xf32>
    %178 = arith.divf %176, %177 : vector<8x1xf32>
    %179 = vector.broadcast %178 : vector<8x1xf32> to vector<8x32xf32>
    %180 = arith.subf %170, %179 : vector<8x32xf32>
    %181 = arith.mulf %180, %180 : vector<8x32xf32>
    %cst_85 = arith.constant dense<0.000000e+00> : vector<8xf32>
    %182 = vector.multi_reduction <add>, %181, %cst_85 [1] : vector<8x32xf32> to vector<8xf32>
    %183 = vector.shape_cast %182 : vector<8xf32> to vector<8x1xf32>
    %cst_86 = arith.constant 3.200000e+01 : f32
    %184 = vector.broadcast %cst_86 : f32 to vector<8x1xf32>
    %185 = arith.divf %183, %184 : vector<8x1xf32>
    %186 = vector.broadcast %178 : vector<8x1xf32> to vector<8x32xf32>
    %187 = arith.subf %170, %186 : vector<8x32xf32>
    %cst_87 = arith.constant 9.99999996E-13 : f32
    %188 = vector.broadcast %cst_87 : f32 to vector<8x1xf32>
    %189 = arith.addf %185, %188 : vector<8x1xf32>
    %190 = math.rsqrt %189 : vector<8x1xf32>
    %191 = vector.broadcast %190 : vector<8x1xf32> to vector<8x32xf32>
    %192 = arith.mulf %187, %191 : vector<8x32xf32>
    %193 = vector.broadcast %172 : vector<1x32xf32> to vector<8x32xf32>
    %194 = arith.mulf %192, %193 : vector<8x32xf32>
    %195 = vector.broadcast %174 : vector<1x32xf32> to vector<8x32xf32>
    %196 = arith.addf %194, %195 : vector<8x32xf32>
    %c1 = arith.constant 1 : index
    %c0_88 = arith.constant 0 : index
    %c0_89 = arith.constant 0 : index
    %197 = vector.load %arg7[%c1, %c0_88, %c0_89] : memref<2x32x96xf32, #tpu.memory_space<vmem>>, vector<1x32x96xf32>
    %198 = vector.shape_cast %197 : vector<1x32x96xf32> to vector<32x96xf32>
    %cst_90 = arith.constant dense<0.000000e+00> : vector<8x96xf32>
    %199 = tpu.matmul %196, %198, %cst_90 {dimension_numbers = #tpu.dot_dimension_numbers<[1], [0], [0], [1], [0, 0, 1, 1], [], []>} : vector<8x32xf32>, vector<32x96xf32>, vector<8x96xf32> -> vector<8x96xf32>
    %c1_91 = arith.constant 1 : index
    %c0_92 = arith.constant 0 : index
    %c0_93 = arith.constant 0 : index
    %200 = vector.load %arg8[%c1_91, %c0_92, %c0_93] : memref<2x1x96xf32, #tpu.memory_space<vmem>>, vector<1x1x96xf32>
    %201 = vector.shape_cast %200 : vector<1x1x96xf32> to vector<1x96xf32>
    %202 = vector.broadcast %201 : vector<1x96xf32> to vector<8x96xf32>
    %203 = arith.addf %199, %202 : vector<8x96xf32>
    %204 = vector.extract_strided_slice %203 {offsets = [0, 0], sizes = [8, 8], strides = [1, 1]} : vector<8x96xf32> to vector<8x8xf32>
    %205 = vector.extract_strided_slice %203 {offsets = [0, 32], sizes = [8, 8], strides = [1, 1]} : vector<8x96xf32> to vector<8x8xf32>
    %206 = vector.extract_strided_slice %203 {offsets = [0, 64], sizes = [8, 8], strides = [1, 1]} : vector<8x96xf32> to vector<8x8xf32>
    %cst_94 = arith.constant dense<0.000000e+00> : vector<8x8xf32>
    %207 = tpu.matmul %204, %205, %cst_94 {dimension_numbers = #tpu.dot_dimension_numbers<[1], [1], [0], [0], [0, 0, 1, 0], [], []>} : vector<8x8xf32>, vector<8x8xf32>, vector<8x8xf32> -> vector<8x8xf32>
    %cst_95 = arith.constant 0.353553385 : f32
    %208 = vector.broadcast %cst_95 : f32 to vector<8x8xf32>
    %209 = arith.mulf %207, %208 : vector<8x8xf32>
    %210 = vector.broadcast %29 : vector<1x8xf32> to vector<8x8xf32>
    %211 = arith.addf %209, %210 : vector<8x8xf32>
    %cst_96 = arith.constant dense<0xFF800000> : vector<8xf32>
    %212 = vector.multi_reduction <maximumf>, %211, %cst_96 [1] : vector<8x8xf32> to vector<8xf32>
    %213 = vector.shape_cast %212 : vector<8xf32> to vector<8x1xf32>
    %214 = vector.broadcast %213 : vector<8x1xf32> to vector<8x8xf32>
    %215 = arith.subf %211, %214 : vector<8x8xf32>
    %216 = math.exp %215 : vector<8x8xf32>
    %cst_97 = arith.constant dense<0.000000e+00> : vector<8xf32>
    %217 = vector.multi_reduction <add>, %216, %cst_97 [1] : vector<8x8xf32> to vector<8xf32>
    %218 = vector.shape_cast %217 : vector<8xf32> to vector<8x1xf32>
    %219 = tpu.reciprocal %218 {approx = true} : vector<8x1xf32> -> vector<8x1xf32>
    %220 = vector.broadcast %219 : vector<8x1xf32> to vector<8x8xf32>
    %221 = arith.mulf %216, %220 : vector<8x8xf32>
    %cst_98 = arith.constant dense<0.000000e+00> : vector<8x8xf32>
    %222 = tpu.matmul %221, %206, %cst_98 {dimension_numbers = #tpu.dot_dimension_numbers<[1], [0], [0], [1], [0, 0, 1, 1], [], []>} : vector<8x8xf32>, vector<8x8xf32>, vector<8x8xf32> -> vector<8x8xf32>
    %223 = vector.extract_strided_slice %203 {offsets = [0, 8], sizes = [8, 8], strides = [1, 1]} : vector<8x96xf32> to vector<8x8xf32>
    %224 = vector.extract_strided_slice %203 {offsets = [0, 40], sizes = [8, 8], strides = [1, 1]} : vector<8x96xf32> to vector<8x8xf32>
    %225 = vector.extract_strided_slice %203 {offsets = [0, 72], sizes = [8, 8], strides = [1, 1]} : vector<8x96xf32> to vector<8x8xf32>
    %cst_99 = arith.constant dense<0.000000e+00> : vector<8x8xf32>
    %226 = tpu.matmul %223, %224, %cst_99 {dimension_numbers = #tpu.dot_dimension_numbers<[1], [1], [0], [0], [0, 0, 1, 0], [], []>} : vector<8x8xf32>, vector<8x8xf32>, vector<8x8xf32> -> vector<8x8xf32>
    %cst_100 = arith.constant 0.353553385 : f32
    %227 = vector.broadcast %cst_100 : f32 to vector<8x8xf32>
    %228 = arith.mulf %226, %227 : vector<8x8xf32>
    %229 = vector.broadcast %29 : vector<1x8xf32> to vector<8x8xf32>
    %230 = arith.addf %228, %229 : vector<8x8xf32>
    %cst_101 = arith.constant dense<0xFF800000> : vector<8xf32>
    %231 = vector.multi_reduction <maximumf>, %230, %cst_101 [1] : vector<8x8xf32> to vector<8xf32>
    %232 = vector.shape_cast %231 : vector<8xf32> to vector<8x1xf32>
    %233 = vector.broadcast %232 : vector<8x1xf32> to vector<8x8xf32>
    %234 = arith.subf %230, %233 : vector<8x8xf32>
    %235 = math.exp %234 : vector<8x8xf32>
    %cst_102 = arith.constant dense<0.000000e+00> : vector<8xf32>
    %236 = vector.multi_reduction <add>, %235, %cst_102 [1] : vector<8x8xf32> to vector<8xf32>
    %237 = vector.shape_cast %236 : vector<8xf32> to vector<8x1xf32>
    %238 = tpu.reciprocal %237 {approx = true} : vector<8x1xf32> -> vector<8x1xf32>
    %239 = vector.broadcast %238 : vector<8x1xf32> to vector<8x8xf32>
    %240 = arith.mulf %235, %239 : vector<8x8xf32>
    %cst_103 = arith.constant dense<0.000000e+00> : vector<8x8xf32>
    %241 = tpu.matmul %240, %225, %cst_103 {dimension_numbers = #tpu.dot_dimension_numbers<[1], [0], [0], [1], [0, 0, 1, 1], [], []>} : vector<8x8xf32>, vector<8x8xf32>, vector<8x8xf32> -> vector<8x8xf32>
    %242 = vector.extract_strided_slice %203 {offsets = [0, 16], sizes = [8, 8], strides = [1, 1]} : vector<8x96xf32> to vector<8x8xf32>
    %243 = vector.extract_strided_slice %203 {offsets = [0, 48], sizes = [8, 8], strides = [1, 1]} : vector<8x96xf32> to vector<8x8xf32>
    %244 = vector.extract_strided_slice %203 {offsets = [0, 80], sizes = [8, 8], strides = [1, 1]} : vector<8x96xf32> to vector<8x8xf32>
    %cst_104 = arith.constant dense<0.000000e+00> : vector<8x8xf32>
    %245 = tpu.matmul %242, %243, %cst_104 {dimension_numbers = #tpu.dot_dimension_numbers<[1], [1], [0], [0], [0, 0, 1, 0], [], []>} : vector<8x8xf32>, vector<8x8xf32>, vector<8x8xf32> -> vector<8x8xf32>
    %cst_105 = arith.constant 0.353553385 : f32
    %246 = vector.broadcast %cst_105 : f32 to vector<8x8xf32>
    %247 = arith.mulf %245, %246 : vector<8x8xf32>
    %248 = vector.broadcast %29 : vector<1x8xf32> to vector<8x8xf32>
    %249 = arith.addf %247, %248 : vector<8x8xf32>
    %cst_106 = arith.constant dense<0xFF800000> : vector<8xf32>
    %250 = vector.multi_reduction <maximumf>, %249, %cst_106 [1] : vector<8x8xf32> to vector<8xf32>
    %251 = vector.shape_cast %250 : vector<8xf32> to vector<8x1xf32>
    %252 = vector.broadcast %251 : vector<8x1xf32> to vector<8x8xf32>
    %253 = arith.subf %249, %252 : vector<8x8xf32>
    %254 = math.exp %253 : vector<8x8xf32>
    %cst_107 = arith.constant dense<0.000000e+00> : vector<8xf32>
    %255 = vector.multi_reduction <add>, %254, %cst_107 [1] : vector<8x8xf32> to vector<8xf32>
    %256 = vector.shape_cast %255 : vector<8xf32> to vector<8x1xf32>
    %257 = tpu.reciprocal %256 {approx = true} : vector<8x1xf32> -> vector<8x1xf32>
    %258 = vector.broadcast %257 : vector<8x1xf32> to vector<8x8xf32>
    %259 = arith.mulf %254, %258 : vector<8x8xf32>
    %cst_108 = arith.constant dense<0.000000e+00> : vector<8x8xf32>
    %260 = tpu.matmul %259, %244, %cst_108 {dimension_numbers = #tpu.dot_dimension_numbers<[1], [0], [0], [1], [0, 0, 1, 1], [], []>} : vector<8x8xf32>, vector<8x8xf32>, vector<8x8xf32> -> vector<8x8xf32>
    %261 = vector.extract_strided_slice %203 {offsets = [0, 24], sizes = [8, 8], strides = [1, 1]} : vector<8x96xf32> to vector<8x8xf32>
    %262 = vector.extract_strided_slice %203 {offsets = [0, 56], sizes = [8, 8], strides = [1, 1]} : vector<8x96xf32> to vector<8x8xf32>
    %263 = vector.extract_strided_slice %203 {offsets = [0, 88], sizes = [8, 8], strides = [1, 1]} : vector<8x96xf32> to vector<8x8xf32>
    %cst_109 = arith.constant dense<0.000000e+00> : vector<8x8xf32>
    %264 = tpu.matmul %261, %262, %cst_109 {dimension_numbers = #tpu.dot_dimension_numbers<[1], [1], [0], [0], [0, 0, 1, 0], [], []>} : vector<8x8xf32>, vector<8x8xf32>, vector<8x8xf32> -> vector<8x8xf32>
    %cst_110 = arith.constant 0.353553385 : f32
    %265 = vector.broadcast %cst_110 : f32 to vector<8x8xf32>
    %266 = arith.mulf %264, %265 : vector<8x8xf32>
    %267 = vector.broadcast %29 : vector<1x8xf32> to vector<8x8xf32>
    %268 = arith.addf %266, %267 : vector<8x8xf32>
    %cst_111 = arith.constant dense<0xFF800000> : vector<8xf32>
    %269 = vector.multi_reduction <maximumf>, %268, %cst_111 [1] : vector<8x8xf32> to vector<8xf32>
    %270 = vector.shape_cast %269 : vector<8xf32> to vector<8x1xf32>
    %271 = vector.broadcast %270 : vector<8x1xf32> to vector<8x8xf32>
    %272 = arith.subf %268, %271 : vector<8x8xf32>
    %273 = math.exp %272 : vector<8x8xf32>
    %cst_112 = arith.constant dense<0.000000e+00> : vector<8xf32>
    %274 = vector.multi_reduction <add>, %273, %cst_112 [1] : vector<8x8xf32> to vector<8xf32>
    %275 = vector.shape_cast %274 : vector<8xf32> to vector<8x1xf32>
    %276 = tpu.reciprocal %275 {approx = true} : vector<8x1xf32> -> vector<8x1xf32>
    %277 = vector.broadcast %276 : vector<8x1xf32> to vector<8x8xf32>
    %278 = arith.mulf %273, %277 : vector<8x8xf32>
    %cst_113 = arith.constant dense<0.000000e+00> : vector<8x8xf32>
    %279 = tpu.matmul %278, %263, %cst_113 {dimension_numbers = #tpu.dot_dimension_numbers<[1], [0], [0], [1], [0, 0, 1, 1], [], []>} : vector<8x8xf32>, vector<8x8xf32>, vector<8x8xf32> -> vector<8x8xf32>
    %280 = tpu.concatenate %222, %241, %260, %279 in 1 : vector<8x8xf32>, vector<8x8xf32>, vector<8x8xf32>, vector<8x8xf32> -> vector<8x32xf32>
    %c1_114 = arith.constant 1 : index
    %c0_115 = arith.constant 0 : index
    %c0_116 = arith.constant 0 : index
    %281 = vector.load %arg9[%c1_114, %c0_115, %c0_116] : memref<2x32x32xf32, #tpu.memory_space<vmem>>, vector<1x32x32xf32>
    %282 = vector.shape_cast %281 : vector<1x32x32xf32> to vector<32x32xf32>
    %cst_117 = arith.constant dense<0.000000e+00> : vector<8x32xf32>
    %283 = tpu.matmul %280, %282, %cst_117 {dimension_numbers = #tpu.dot_dimension_numbers<[1], [0], [0], [1], [0, 0, 1, 1], [], []>} : vector<8x32xf32>, vector<32x32xf32>, vector<8x32xf32> -> vector<8x32xf32>
    %c1_118 = arith.constant 1 : index
    %c0_119 = arith.constant 0 : index
    %c0_120 = arith.constant 0 : index
    %284 = vector.load %arg10[%c1_118, %c0_119, %c0_120] : memref<2x1x32xf32, #tpu.memory_space<vmem>>, vector<1x1x32xf32>
    %285 = vector.shape_cast %284 : vector<1x1x32xf32> to vector<1x32xf32>
    %286 = vector.broadcast %285 : vector<1x32xf32> to vector<8x32xf32>
    %287 = arith.addf %283, %286 : vector<8x32xf32>
    %288 = arith.addf %287, %196 : vector<8x32xf32>
    %c1_121 = arith.constant 1 : index
    %c0_122 = arith.constant 0 : index
    %c0_123 = arith.constant 0 : index
    %289 = vector.load %arg11[%c1_121, %c0_122, %c0_123] : memref<2x1x32xf32, #tpu.memory_space<vmem>>, vector<1x1x32xf32>
    %290 = vector.shape_cast %289 : vector<1x1x32xf32> to vector<1x32xf32>
    %c1_124 = arith.constant 1 : index
    %c0_125 = arith.constant 0 : index
    %c0_126 = arith.constant 0 : index
    %291 = vector.load %arg12[%c1_124, %c0_125, %c0_126] : memref<2x1x32xf32, #tpu.memory_space<vmem>>, vector<1x1x32xf32>
    %292 = vector.shape_cast %291 : vector<1x1x32xf32> to vector<1x32xf32>
    %cst_127 = arith.constant dense<0.000000e+00> : vector<8xf32>
    %293 = vector.multi_reduction <add>, %288, %cst_127 [1] : vector<8x32xf32> to vector<8xf32>
    %294 = vector.shape_cast %293 : vector<8xf32> to vector<8x1xf32>
    %cst_128 = arith.constant 3.200000e+01 : f32
    %295 = vector.broadcast %cst_128 : f32 to vector<8x1xf32>
    %296 = arith.divf %294, %295 : vector<8x1xf32>
    %297 = vector.broadcast %296 : vector<8x1xf32> to vector<8x32xf32>
    %298 = arith.subf %288, %297 : vector<8x32xf32>
    %299 = arith.mulf %298, %298 : vector<8x32xf32>
    %cst_129 = arith.constant dense<0.000000e+00> : vector<8xf32>
    %300 = vector.multi_reduction <add>, %299, %cst_129 [1] : vector<8x32xf32> to vector<8xf32>
    %301 = vector.shape_cast %300 : vector<8xf32> to vector<8x1xf32>
    %cst_130 = arith.constant 3.200000e+01 : f32
    %302 = vector.broadcast %cst_130 : f32 to vector<8x1xf32>
    %303 = arith.divf %301, %302 : vector<8x1xf32>
    %304 = vector.broadcast %296 : vector<8x1xf32> to vector<8x32xf32>
    %305 = arith.subf %288, %304 : vector<8x32xf32>
    %cst_131 = arith.constant 9.99999996E-13 : f32
    %306 = vector.broadcast %cst_131 : f32 to vector<8x1xf32>
    %307 = arith.addf %303, %306 : vector<8x1xf32>
    %308 = math.rsqrt %307 : vector<8x1xf32>
    %309 = vector.broadcast %308 : vector<8x1xf32> to vector<8x32xf32>
    %310 = arith.mulf %305, %309 : vector<8x32xf32>
    %311 = vector.broadcast %290 : vector<1x32xf32> to vector<8x32xf32>
    %312 = arith.mulf %310, %311 : vector<8x32xf32>
    %313 = vector.broadcast %292 : vector<1x32xf32> to vector<8x32xf32>
    %314 = arith.addf %312, %313 : vector<8x32xf32>
    %c1_132 = arith.constant 1 : index
    %c0_133 = arith.constant 0 : index
    %c0_134 = arith.constant 0 : index
    %315 = vector.load %arg13[%c1_132, %c0_133, %c0_134] : memref<2x32x64xf32, #tpu.memory_space<vmem>>, vector<1x32x64xf32>
    %316 = vector.shape_cast %315 : vector<1x32x64xf32> to vector<32x64xf32>
    %cst_135 = arith.constant dense<0.000000e+00> : vector<8x64xf32>
    %317 = tpu.matmul %314, %316, %cst_135 {dimension_numbers = #tpu.dot_dimension_numbers<[1], [0], [0], [1], [0, 0, 1, 1], [], []>} : vector<8x32xf32>, vector<32x64xf32>, vector<8x64xf32> -> vector<8x64xf32>
    %c1_136 = arith.constant 1 : index
    %c0_137 = arith.constant 0 : index
    %c0_138 = arith.constant 0 : index
    %318 = vector.load %arg14[%c1_136, %c0_137, %c0_138] : memref<2x1x64xf32, #tpu.memory_space<vmem>>, vector<1x1x64xf32>
    %319 = vector.shape_cast %318 : vector<1x1x64xf32> to vector<1x64xf32>
    %320 = vector.broadcast %319 : vector<1x64xf32> to vector<8x64xf32>
    %321 = arith.addf %317, %320 : vector<8x64xf32>
    %cst_139 = arith.constant 5.000000e-01 : f32
    %322 = vector.broadcast %cst_139 : f32 to vector<8x64xf32>
    %323 = arith.mulf %322, %321 : vector<8x64xf32>
    %cst_140 = arith.constant 0.707106769 : f32
    %324 = vector.broadcast %cst_140 : f32 to vector<8x64xf32>
    %325 = arith.mulf %321, %324 : vector<8x64xf32>
    %326 = math.erf %325 : vector<8x64xf32>
    %cst_141 = arith.constant 1.000000e+00 : f32
    %327 = vector.broadcast %cst_141 : f32 to vector<8x64xf32>
    %328 = arith.addf %327, %326 : vector<8x64xf32>
    %329 = arith.mulf %323, %328 : vector<8x64xf32>
    %c1_142 = arith.constant 1 : index
    %c0_143 = arith.constant 0 : index
    %c0_144 = arith.constant 0 : index
    %330 = vector.load %arg15[%c1_142, %c0_143, %c0_144] : memref<2x64x32xf32, #tpu.memory_space<vmem>>, vector<1x64x32xf32>
    %331 = vector.shape_cast %330 : vector<1x64x32xf32> to vector<64x32xf32>
    %cst_145 = arith.constant dense<0.000000e+00> : vector<8x32xf32>
    %332 = tpu.matmul %329, %331, %cst_145 {dimension_numbers = #tpu.dot_dimension_numbers<[1], [0], [0], [1], [0, 0, 1, 1], [], []>} : vector<8x64xf32>, vector<64x32xf32>, vector<8x32xf32> -> vector<8x32xf32>
    %c1_146 = arith.constant 1 : index
    %c0_147 = arith.constant 0 : index
    %c0_148 = arith.constant 0 : index
    %333 = vector.load %arg16[%c1_146, %c0_147, %c0_148] : memref<2x1x32xf32, #tpu.memory_space<vmem>>, vector<1x1x32xf32>
    %334 = vector.shape_cast %333 : vector<1x1x32xf32> to vector<1x32xf32>
    %335 = vector.broadcast %334 : vector<1x32xf32> to vector<8x32xf32>
    %336 = arith.addf %332, %335 : vector<8x32xf32>
    %337 = arith.addf %336, %314 : vector<8x32xf32>
    %c1_149 = arith.constant 1 : index
    %c0_150 = arith.constant 0 : index
    %c0_151 = arith.constant 0 : index
    %338 = vector.load %arg17[%c1_149, %c0_150, %c0_151] : memref<2x1x32xf32, #tpu.memory_space<vmem>>, vector<1x1x32xf32>
    %339 = vector.shape_cast %338 : vector<1x1x32xf32> to vector<1x32xf32>
    %c1_152 = arith.constant 1 : index
    %c0_153 = arith.constant 0 : index
    %c0_154 = arith.constant 0 : index
    %340 = vector.load %arg18[%c1_152, %c0_153, %c0_154] : memref<2x1x32xf32, #tpu.memory_space<vmem>>, vector<1x1x32xf32>
    %341 = vector.shape_cast %340 : vector<1x1x32xf32> to vector<1x32xf32>
    %cst_155 = arith.constant dense<0.000000e+00> : vector<8xf32>
    %342 = vector.multi_reduction <add>, %337, %cst_155 [1] : vector<8x32xf32> to vector<8xf32>
    %343 = vector.shape_cast %342 : vector<8xf32> to vector<8x1xf32>
    %cst_156 = arith.constant 3.200000e+01 : f32
    %344 = vector.broadcast %cst_156 : f32 to vector<8x1xf32>
    %345 = arith.divf %343, %344 : vector<8x1xf32>
    %346 = vector.broadcast %345 : vector<8x1xf32> to vector<8x32xf32>
    %347 = arith.subf %337, %346 : vector<8x32xf32>
    %348 = arith.mulf %347, %347 : vector<8x32xf32>
    %cst_157 = arith.constant dense<0.000000e+00> : vector<8xf32>
    %349 = vector.multi_reduction <add>, %348, %cst_157 [1] : vector<8x32xf32> to vector<8xf32>
    %350 = vector.shape_cast %349 : vector<8xf32> to vector<8x1xf32>
    %cst_158 = arith.constant 3.200000e+01 : f32
    %351 = vector.broadcast %cst_158 : f32 to vector<8x1xf32>
    %352 = arith.divf %350, %351 : vector<8x1xf32>
    %353 = vector.broadcast %345 : vector<8x1xf32> to vector<8x32xf32>
    %354 = arith.subf %337, %353 : vector<8x32xf32>
    %cst_159 = arith.constant 9.99999996E-13 : f32
    %355 = vector.broadcast %cst_159 : f32 to vector<8x1xf32>
    %356 = arith.addf %352, %355 : vector<8x1xf32>
    %357 = math.rsqrt %356 : vector<8x1xf32>
    %358 = vector.broadcast %357 : vector<8x1xf32> to vector<8x32xf32>
    %359 = arith.mulf %354, %358 : vector<8x32xf32>
    %360 = vector.broadcast %339 : vector<1x32xf32> to vector<8x32xf32>
    %361 = arith.mulf %359, %360 : vector<8x32xf32>
    %362 = vector.broadcast %341 : vector<1x32xf32> to vector<8x32xf32>
    %363 = arith.addf %361, %362 : vector<8x32xf32>
    %c0_160 = arith.constant 0 : index
    %c0_161 = arith.constant 0 : index
    %364 = vector.load %arg19[%c0_160, %c0_161] : memref<32x32xf32, #tpu.memory_space<vmem>>, vector<32x32xf32>
    %cst_162 = arith.constant dense<0.000000e+00> : vector<8x32xf32>
    %365 = tpu.matmul %363, %364, %cst_162 {dimension_numbers = #tpu.dot_dimension_numbers<[1], [0], [0], [1], [0, 0, 1, 1], [], []>} : vector<8x32xf32>, vector<32x32xf32>, vector<8x32xf32> -> vector<8x32xf32>
    %c0_163 = arith.constant 0 : index
    %c0_164 = arith.constant 0 : index
    %366 = vector.load %arg20[%c0_163, %c0_164] : memref<1x32xf32, #tpu.memory_space<vmem>>, vector<1x32xf32>
    %367 = vector.broadcast %366 : vector<1x32xf32> to vector<8x32xf32>
    %368 = arith.addf %365, %367 : vector<8x32xf32>
    %cst_165 = arith.constant 5.000000e-01 : f32
    %369 = vector.broadcast %cst_165 : f32 to vector<8x32xf32>
    %370 = arith.mulf %369, %368 : vector<8x32xf32>
    %cst_166 = arith.constant 0.707106769 : f32
    %371 = vector.broadcast %cst_166 : f32 to vector<8x32xf32>
    %372 = arith.mulf %368, %371 : vector<8x32xf32>
    %373 = math.erf %372 : vector<8x32xf32>
    %cst_167 = arith.constant 1.000000e+00 : f32
    %374 = vector.broadcast %cst_167 : f32 to vector<8x32xf32>
    %375 = arith.addf %374, %373 : vector<8x32xf32>
    %376 = arith.mulf %370, %375 : vector<8x32xf32>
    %c0_168 = arith.constant 0 : index
    %c0_169 = arith.constant 0 : index
    %377 = vector.load %arg21[%c0_168, %c0_169] : memref<1x32xf32, #tpu.memory_space<vmem>>, vector<1x32xf32>
    %c0_170 = arith.constant 0 : index
    %c0_171 = arith.constant 0 : index
    %378 = vector.load %arg22[%c0_170, %c0_171] : memref<1x32xf32, #tpu.memory_space<vmem>>, vector<1x32xf32>
    %cst_172 = arith.constant dense<0.000000e+00> : vector<8xf32>
    %379 = vector.multi_reduction <add>, %376, %cst_172 [1] : vector<8x32xf32> to vector<8xf32>
    %380 = vector.shape_cast %379 : vector<8xf32> to vector<8x1xf32>
    %cst_173 = arith.constant 3.200000e+01 : f32
    %381 = vector.broadcast %cst_173 : f32 to vector<8x1xf32>
    %382 = arith.divf %380, %381 : vector<8x1xf32>
    %383 = vector.broadcast %382 : vector<8x1xf32> to vector<8x32xf32>
    %384 = arith.subf %376, %383 : vector<8x32xf32>
    %385 = arith.mulf %384, %384 : vector<8x32xf32>
    %cst_174 = arith.constant dense<0.000000e+00> : vector<8xf32>
    %386 = vector.multi_reduction <add>, %385, %cst_174 [1] : vector<8x32xf32> to vector<8xf32>
    %387 = vector.shape_cast %386 : vector<8xf32> to vector<8x1xf32>
    %cst_175 = arith.constant 3.200000e+01 : f32
    %388 = vector.broadcast %cst_175 : f32 to vector<8x1xf32>
    %389 = arith.divf %387, %388 : vector<8x1xf32>
    %390 = vector.broadcast %382 : vector<8x1xf32> to vector<8x32xf32>
    %391 = arith.subf %376, %390 : vector<8x32xf32>
    %cst_176 = arith.constant 9.99999996E-13 : f32
    %392 = vector.broadcast %cst_176 : f32 to vector<8x1xf32>
    %393 = arith.addf %389, %392 : vector<8x1xf32>
    %394 = math.rsqrt %393 : vector<8x1xf32>
    %395 = vector.broadcast %394 : vector<8x1xf32> to vector<8x32xf32>
    %396 = arith.mulf %391, %395 : vector<8x32xf32>
    %397 = vector.broadcast %377 : vector<1x32xf32> to vector<8x32xf32>
    %398 = arith.mulf %396, %397 : vector<8x32xf32>
    %399 = vector.broadcast %378 : vector<1x32xf32> to vector<8x32xf32>
    %400 = arith.addf %398, %399 : vector<8x32xf32>
    %c0_177 = arith.constant 0 : index
    %c0_178 = arith.constant 0 : index
    %401 = vector.load %arg23[%c0_177, %c0_178] : memref<32x128xf32, #tpu.memory_space<vmem>>, vector<32x128xf32>
    %cst_179 = arith.constant dense<0.000000e+00> : vector<8x128xf32>
    %402 = tpu.matmul %400, %401, %cst_179 {dimension_numbers = #tpu.dot_dimension_numbers<[1], [0], [0], [1], [0, 0, 1, 1], [], []>} : vector<8x32xf32>, vector<32x128xf32>, vector<8x128xf32> -> vector<8x128xf32>
    %c0_180 = arith.constant 0 : index
    %c0_181 = arith.constant 0 : index
    %403 = vector.load %arg24[%c0_180, %c0_181] : memref<1x128xf32, #tpu.memory_space<vmem>>, vector<1x128xf32>
    %404 = vector.broadcast %403 : vector<1x128xf32> to vector<8x128xf32>
    %405 = arith.addf %402, %404 : vector<8x128xf32>
    %c0_182 = arith.constant 0 : index
    %c0_183 = arith.constant 0 : index
    %c0_184 = arith.constant 0 : index
    %406 = vector.load %arg25[%c0_182, %c0_183, %c0_184] : memref<1x8x128xf32, #tpu.memory_space<vmem>>, vector<1x8x128xf32>
    %407 = vector.shape_cast %406 : vector<1x8x128xf32> to vector<8x128xf32>
    %408 = vector.shape_cast %405 : vector<8x128xf32> to vector<1x8x128xf32>
    tpu.vector_store %arg25[%c0_182, %c0_183, %c0_184], %408 {strides = array<i32>} : memref<1x8x128xf32, #tpu.memory_space<vmem>>, vector<1x8x128xf32>,
    %cst_185 = arith.constant dense<0xFF800000> : vector<8xf32>
    %409 = vector.multi_reduction <maximumf>, %405, %cst_185 [1] : vector<8x128xf32> to vector<8xf32>
    %410 = vector.shape_cast %409 : vector<8xf32> to vector<8x1xf32>
    %411 = vector.broadcast %410 : vector<8x1xf32> to vector<8x128xf32>
    %412 = arith.subf %405, %411 : vector<8x128xf32>
    %413 = math.exp %412 : vector<8x128xf32>
    %cst_186 = arith.constant dense<0.000000e+00> : vector<8xf32>
    %414 = vector.multi_reduction <add>, %413, %cst_186 [1] : vector<8x128xf32> to vector<8xf32>
    %415 = vector.shape_cast %414 : vector<8xf32> to vector<8x1xf32>
    %416 = math.log %415 : vector<8x1xf32>
    %417 = arith.addf %410, %416 : vector<8x1xf32>
    %418 = tpu.iota {dimensions = array<i32: 1>} : vector<8x128xi32>
    %419 = tpu.iota {dimensions = array<i32: 0>} : vector<8x128xi32>
    %420 = tpu.iota {dimensions = array<i32: 0>} : vector<8x1xi32>
    %cst_187 = arith.constant 0.000000e+00 : f32
    %421 = vector.broadcast %cst_187 : f32 to vector<8x128xf32>
    %cst_188 = arith.constant 0.000000e+00 : f32
    %422 = vector.broadcast %cst_188 : f32 to vector<8x1xf32>
    %423 = arith.index_cast %arg0 : i32 to index
    %c0_189 = arith.constant 0 : index
    %424 = memref.load %arg1[%423, %c0_189] : memref<2x8xi32, #tpu.memory_space<smem>>
    %c0_i32 = arith.constant 0 : i32
    %425 = vector.broadcast %c0_i32 : i32 to vector<8x128xi32>
    %426 = arith.cmpi eq, %419, %425 : vector<8x128xi32>
    %427 = vector.broadcast %424 : i32 to vector<8x128xi32>
    %428 = arith.cmpi eq, %418, %427 : vector<8x128xi32>
    %429 = arith.andi %426, %428 : vector<8x128xi1>
    %cst_190 = arith.constant 1.000000e+00 : f32
    %430 = vector.broadcast %cst_190 : f32 to vector<8x128xf32>
    %431 = arith.select %429, %430, %421 : vector<8x128xi1>, vector<8x128xf32>
    %c0_i32_191 = arith.constant 0 : i32
    %432 = vector.broadcast %c0_i32_191 : i32 to vector<8x1xi32>
    %433 = arith.cmpi eq, %420, %432 : vector<8x1xi32>
    %c-100_i32 = arith.constant -100 : i32
    %434 = arith.cmpi ne, %424, %c-100_i32 : i32
    %435 = arith.extui %434 : i1 to i32
    %436 = arith.sitofp %435 : i32 to f32
    %437 = vector.broadcast %436 : f32 to vector<8x1xf32>
    %438 = arith.select %433, %437, %422 : vector<8x1xi1>, vector<8x1xf32>
    %439 = arith.index_cast %arg0 : i32 to index
    %c1_192 = arith.constant 1 : index
    %440 = memref.load %arg1[%439, %c1_192] : memref<2x8xi32, #tpu.memory_space<smem>>
    %c1_i32 = arith.constant 1 : i32
    %441 = vector.broadcast %c1_i32 : i32 to vector<8x128xi32>
    %442 = arith.cmpi eq, %419, %441 : vector<8x128xi32>
    %443 = vector.broadcast %440 : i32 to vector<8x128xi32>
    %444 = arith.cmpi eq, %418, %443 : vector<8x128xi32>
    %445 = arith.andi %442, %444 : vector<8x128xi1>
    %cst_193 = arith.constant 1.000000e+00 : f32
    %446 = vector.broadcast %cst_193 : f32 to vector<8x128xf32>
    %447 = arith.select %445, %446, %431 : vector<8x128xi1>, vector<8x128xf32>
    %c1_i32_194 = arith.constant 1 : i32
    %448 = vector.broadcast %c1_i32_194 : i32 to vector<8x1xi32>
    %449 = arith.cmpi eq, %420, %448 : vector<8x1xi32>
    %c-100_i32_195 = arith.constant -100 : i32
    %450 = arith.cmpi ne, %440, %c-100_i32_195 : i32
    %451 = arith.extui %450 : i1 to i32
    %452 = arith.sitofp %451 : i32 to f32
    %453 = vector.broadcast %452 : f32 to vector<8x1xf32>
    %454 = arith.select %449, %453, %438 : vector<8x1xi1>, vector<8x1xf32>
    %455 = arith.index_cast %arg0 : i32 to index
    %c2 = arith.constant 2 : index
    %456 = memref.load %arg1[%455, %c2] : memref<2x8xi32, #tpu.memory_space<smem>>
    %c2_i32 = arith.constant 2 : i32
    %457 = vector.broadcast %c2_i32 : i32 to vector<8x128xi32>
    %458 = arith.cmpi eq, %419, %457 : vector<8x128xi32>
    %459 = vector.broadcast %456 : i32 to vector<8x128xi32>
    %460 = arith.cmpi eq, %418, %459 : vector<8x128xi32>
    %461 = arith.andi %458, %460 : vector<8x128xi1>
    %cst_196 = arith.constant 1.000000e+00 : f32
    %462 = vector.broadcast %cst_196 : f32 to vector<8x128xf32>
    %463 = arith.select %461, %462, %447 : vector<8x128xi1>, vector<8x128xf32>
    %c2_i32_197 = arith.constant 2 : i32
    %464 = vector.broadcast %c2_i32_197 : i32 to vector<8x1xi32>
    %465 = arith.cmpi eq, %420, %464 : vector<8x1xi32>
    %c-100_i32_198 = arith.constant -100 : i32
    %466 = arith.cmpi ne, %456, %c-100_i32_198 : i32
    %467 = arith.extui %466 : i1 to i32
    %468 = arith.sitofp %467 : i32 to f32
    %469 = vector.broadcast %468 : f32 to vector<8x1xf32>
    %470 = arith.select %465, %469, %454 : vector<8x1xi1>, vector<8x1xf32>
    %471 = arith.index_cast %arg0 : i32 to index
    %c3 = arith.constant 3 : index
    %472 = memref.load %arg1[%471, %c3] : memref<2x8xi32, #tpu.memory_space<smem>>
    %c3_i32 = arith.constant 3 : i32
    %473 = vector.broadcast %c3_i32 : i32 to vector<8x128xi32>
    %474 = arith.cmpi eq, %419, %473 : vector<8x128xi32>
    %475 = vector.broadcast %472 : i32 to vector<8x128xi32>
    %476 = arith.cmpi eq, %418, %475 : vector<8x128xi32>
    %477 = arith.andi %474, %476 : vector<8x128xi1>
    %cst_199 = arith.constant 1.000000e+00 : f32
    %478 = vector.broadcast %cst_199 : f32 to vector<8x128xf32>
    %479 = arith.select %477, %478, %463 : vector<8x128xi1>, vector<8x128xf32>
    %c3_i32_200 = arith.constant 3 : i32
    %480 = vector.broadcast %c3_i32_200 : i32 to vector<8x1xi32>
    %481 = arith.cmpi eq, %420, %480 : vector<8x1xi32>
    %c-100_i32_201 = arith.constant -100 : i32
    %482 = arith.cmpi ne, %472, %c-100_i32_201 : i32
    %483 = arith.extui %482 : i1 to i32
    %484 = arith.sitofp %483 : i32 to f32
    %485 = vector.broadcast %484 : f32 to vector<8x1xf32>
    %486 = arith.select %481, %485, %470 : vector<8x1xi1>, vector<8x1xf32>
    %487 = arith.index_cast %arg0 : i32 to index
    %c4 = arith.constant 4 : index
    %488 = memref.load %arg1[%487, %c4] : memref<2x8xi32, #tpu.memory_space<smem>>
    %c4_i32 = arith.constant 4 : i32
    %489 = vector.broadcast %c4_i32 : i32 to vector<8x128xi32>
    %490 = arith.cmpi eq, %419, %489 : vector<8x128xi32>
    %491 = vector.broadcast %488 : i32 to vector<8x128xi32>
    %492 = arith.cmpi eq, %418, %491 : vector<8x128xi32>
    %493 = arith.andi %490, %492 : vector<8x128xi1>
    %cst_202 = arith.constant 1.000000e+00 : f32
    %494 = vector.broadcast %cst_202 : f32 to vector<8x128xf32>
    %495 = arith.select %493, %494, %479 : vector<8x128xi1>, vector<8x128xf32>
    %c4_i32_203 = arith.constant 4 : i32
    %496 = vector.broadcast %c4_i32_203 : i32 to vector<8x1xi32>
    %497 = arith.cmpi eq, %420, %496 : vector<8x1xi32>
    %c-100_i32_204 = arith.constant -100 : i32
    %498 = arith.cmpi ne, %488, %c-100_i32_204 : i32
    %499 = arith.extui %498 : i1 to i32
    %500 = arith.sitofp %499 : i32 to f32
    %501 = vector.broadcast %500 : f32 to vector<8x1xf32>
    %502 = arith.select %497, %501, %486 : vector<8x1xi1>, vector<8x1xf32>
    %503 = arith.index_cast %arg0 : i32 to index
    %c5 = arith.constant 5 : index
    %504 = memref.load %arg1[%503, %c5] : memref<2x8xi32, #tpu.memory_space<smem>>
    %c5_i32 = arith.constant 5 : i32
    %505 = vector.broadcast %c5_i32 : i32 to vector<8x128xi32>
    %506 = arith.cmpi eq, %419, %505 : vector<8x128xi32>
    %507 = vector.broadcast %504 : i32 to vector<8x128xi32>
    %508 = arith.cmpi eq, %418, %507 : vector<8x128xi32>
    %509 = arith.andi %506, %508 : vector<8x128xi1>
    %cst_205 = arith.constant 1.000000e+00 : f32
    %510 = vector.broadcast %cst_205 : f32 to vector<8x128xf32>
    %511 = arith.select %509, %510, %495 : vector<8x128xi1>, vector<8x128xf32>
    %c5_i32_206 = arith.constant 5 : i32
    %512 = vector.broadcast %c5_i32_206 : i32 to vector<8x1xi32>
    %513 = arith.cmpi eq, %420, %512 : vector<8x1xi32>
    %c-100_i32_207 = arith.constant -100 : i32
    %514 = arith.cmpi ne, %504, %c-100_i32_207 : i32
    %515 = arith.extui %514 : i1 to i32
    %516 = arith.sitofp %515 : i32 to f32
    %517 = vector.broadcast %516 : f32 to vector<8x1xf32>
    %518 = arith.select %513, %517, %502 : vector<8x1xi1>, vector<8x1xf32>
    %519 = arith.index_cast %arg0 : i32 to index
    %c6 = arith.constant 6 : index
    %520 = memref.load %arg1[%519, %c6] : memref<2x8xi32, #tpu.memory_space<smem>>
    %c6_i32 = arith.constant 6 : i32
    %521 = vector.broadcast %c6_i32 : i32 to vector<8x128xi32>
    %522 = arith.cmpi eq, %419, %521 : vector<8x128xi32>
    %523 = vector.broadcast %520 : i32 to vector<8x128xi32>
    %524 = arith.cmpi eq, %418, %523 : vector<8x128xi32>
    %525 = arith.andi %522, %524 : vector<8x128xi1>
    %cst_208 = arith.constant 1.000000e+00 : f32
    %526 = vector.broadcast %cst_208 : f32 to vector<8x128xf32>
    %527 = arith.select %525, %526, %511 : vector<8x128xi1>, vector<8x128xf32>
    %c6_i32_209 = arith.constant 6 : i32
    %528 = vector.broadcast %c6_i32_209 : i32 to vector<8x1xi32>
    %529 = arith.cmpi eq, %420, %528 : vector<8x1xi32>
    %c-100_i32_210 = arith.constant -100 : i32
    %530 = arith.cmpi ne, %520, %c-100_i32_210 : i32
    %531 = arith.extui %530 : i1 to i32
    %532 = arith.sitofp %531 : i32 to f32
    %533 = vector.broadcast %532 : f32 to vector<8x1xf32>
    %534 = arith.select %529, %533, %518 : vector<8x1xi1>, vector<8x1xf32>
    %535 = arith.index_cast %arg0 : i32 to index
    %c7 = arith.constant 7 : index
    %536 = memref.load %arg1[%535, %c7] : memref<2x8xi32, #tpu.memory_space<smem>>
    %c7_i32 = arith.constant 7 : i32
    %537 = vector.broadcast %c7_i32 : i32 to vector<8x128xi32>
    %538 = arith.cmpi eq, %419, %537 : vector<8x128xi32>
    %539 = vector.broadcast %536 : i32 to vector<8x128xi32>
    %540 = arith.cmpi eq, %418, %539 : vector<8x128xi32>
    %541 = arith.andi %538, %540 : vector<8x128xi1>
    %cst_211 = arith.constant 1.000000e+00 : f32
    %542 = vector.broadcast %cst_211 : f32 to vector<8x128xf32>
    %543 = arith.select %541, %542, %527 : vector<8x128xi1>, vector<8x128xf32>
    %c7_i32_212 = arith.constant 7 : i32
    %544 = vector.broadcast %c7_i32_212 : i32 to vector<8x1xi32>
    %545 = arith.cmpi eq, %420, %544 : vector<8x1xi32>
    %c-100_i32_213 = arith.constant -100 : i32
    %546 = arith.cmpi ne, %536, %c-100_i32_213 : i32
    %547 = arith.extui %546 : i1 to i32
    %548 = arith.sitofp %547 : i32 to f32
    %549 = vector.broadcast %548 : f32 to vector<8x1xf32>
    %550 = arith.select %545, %549, %534 : vector<8x1xi1>, vector<8x1xf32>
    %551 = arith.mulf %405, %543 : vector<8x128xf32>
    %cst_214 = arith.constant dense<0.000000e+00> : vector<8xf32>
    %552 = vector.multi_reduction <add>, %551, %cst_214 [1] : vector<8x128xf32> to vector<8xf32>
    %553 = vector.shape_cast %552 : vector<8xf32> to vector<8x1xf32>
    %554 = arith.subf %417, %553 : vector<8x1xf32>
    %555 = arith.mulf %554, %550 : vector<8x1xf32>
    %556 = vector.shape_cast %555 : vector<8x1xf32> to vector<1x8x1xf32>
    %cst_215 = arith.constant dense<0.000000e+00> : vector<1xf32>
    %557 = vector.multi_reduction <add>, %556, %cst_215 [1, 2] : vector<1x8x1xf32> to vector<1xf32>
    %558 = vector.shape_cast %557 : vector<1xf32> to vector<1x1x1xf32>
    %559 = vector.extract %558[0, 0, 0] : f32 from vector<1x1x1xf32>
    %560 = vector.shape_cast %550 : vector<8x1xf32> to vector<1x8x1xf32>
    %cst_216 = arith.constant dense<0.000000e+00> : vector<1xf32>
    %561 = vector.multi_reduction <add>, %560, %cst_216 [1, 2] : vector<1x8x1xf32> to vector<1xf32>
    %562 = vector.shape_cast %561 : vector<1xf32> to vector<1x1x1xf32>
    %563 = vector.extract %562[0, 0, 0] : f32 from vector<1x1x1xf32>
    %564 = tpu.iota {dimensions = array<i32: 1>} : vector<1x128xi32>
    %c0_i32_217 = arith.constant 0 : i32
    %565 = vector.broadcast %c0_i32_217 : i32 to vector<1x128xi32>
    %566 = arith.cmpi eq, %564, %565 : vector<1x128xi32>
    %c1_i32_218 = arith.constant 1 : i32
    %567 = vector.broadcast %c1_i32_218 : i32 to vector<1x128xi32>
    %568 = arith.cmpi eq, %564, %567 : vector<1x128xi32>
    %cst_219 = arith.constant 0.000000e+00 : f32
    %569 = vector.broadcast %563 : f32 to vector<1x128xf32>
    %570 = vector.broadcast %cst_219 : f32 to vector<1x128xf32>
    %571 = arith.select %568, %569, %570 : vector<1x128xi1>, vector<1x128xf32>
    %572 = vector.broadcast %559 : f32 to vector<1x128xf32>
    %573 = arith.select %566, %572, %571 : vector<1x128xi1>, vector<1x128xf32>
    %c0_220 = arith.constant 0 : index
    %c0_221 = arith.constant 0 : index
    %c0_222 = arith.constant 0 : index
    %574 = vector.load %arg26[%c0_220, %c0_221, %c0_222] : memref<1x1x128xf32, #tpu.memory_space<vmem>>, vector<1x1x128xf32>
    %575 = vector.shape_cast %574 : vector<1x1x128xf32> to vector<1x128xf32>
    %576 = vector.shape_cast %573 : vector<1x128xf32> to vector<1x1x128xf32>
    tpu.vector_store %arg26[%c0_220, %c0_221, %c0_222], %576 {strides = array<i32>} : memref<1x1x128xf32, #tpu.memory_space<vmem>>, vector<1x1x128xf32>,
    return
  }
  func.func @transform_0(%arg0: i32, %arg1: memref<2x8xi32, #tpu.memory_space<smem>>) -> (i32, i32, i32) {
    %c0_i32 = arith.constant 0 : i32
    %c0_i32_0 = arith.constant 0 : i32
    %c0_i32_1 = arith.constant 0 : i32
    return %arg0, %c0_i32, %c0_i32_0 : i32, i32, i32
  }
  func.func @transform_1(%arg0: i32, %arg1: memref<2x8xi32, #tpu.memory_space<smem>>) -> (i32, i32) {
    %c0_i32 = arith.constant 0 : i32
    %c0_i32_0 = arith.constant 0 : i32
    %c0_i32_1 = arith.constant 0 : i32
    return %c0_i32, %c0_i32_0 : i32, i32
  }
  func.func @transform_2(%arg0: i32, %arg1: memref<2x8xi32, #tpu.memory_space<smem>>) -> (i32, i32, i32) {
    %c0_i32 = arith.constant 0 : i32
    %c0_i32_0 = arith.constant 0 : i32
    %c0_i32_1 = arith.constant 0 : i32
    return %arg0, %c0_i32, %c0_i32_0 : i32, i32, i32
  }
  func.func @transform_3(%arg0: i32, %arg1: memref<2x8xi32, #tpu.memory_space<smem>>) -> (i32, i32) {
    %c0_i32 = arith.constant 0 : i32
    %c0_i32_0 = arith.constant 0 : i32
    %c0_i32_1 = arith.constant 0 : i32
    return %c0_i32, %c0_i32_0 : i32, i32
  }
  func.func @transform_4(%arg0: i32, %arg1: memref<2x8xi32, #tpu.memory_space<smem>>) -> (i32, i32) {
    %c0_i32 = arith.constant 0 : i32
    %c0_i32_0 = arith.constant 0 : i32
    %c0_i32_1 = arith.constant 0 : i32
    return %c0_i32, %c0_i32_0 : i32, i32
  }
  func.func @transform_5(%arg0: i32, %arg1: memref<2x8xi32, #tpu.memory_space<smem>>) -> (i32, i32, i32) {
    %c0_i32 = arith.constant 0 : i32
    %c0_i32_0 = arith.constant 0 : i32
    %c0_i32_1 = arith.constant 0 : i32
    %c0_i32_2 = arith.constant 0 : i32
    return %c0_i32, %c0_i32_0, %c0_i32_1 : i32, i32, i32
  }
  func.func @transform_6(%arg0: i32, %arg1: memref<2x8xi32, #tpu.memory_space<smem>>) -> (i32, i32, i32) {
    %c0_i32 = arith.constant 0 : i32
    %c0_i32_0 = arith.constant 0 : i32
    %c0_i32_1 = arith.constant 0 : i32
    %c0_i32_2 = arith.constant 0 : i32
    return %c0_i32, %c0_i32_0, %c0_i32_1 : i32, i32, i32
  }
  func.func @transform_7(%arg0: i32, %arg1: memref<2x8xi32, #tpu.memory_space<smem>>) -> (i32, i32, i32) {
    %c0_i32 = arith.constant 0 : i32
    %c0_i32_0 = arith.constant 0 : i32
    %c0_i32_1 = arith.constant 0 : i32
    %c0_i32_2 = arith.constant 0 : i32
    return %c0_i32, %c0_i32_0, %c0_i32_1 : i32, i32, i32
  }
  func.func @transform_8(%arg0: i32, %arg1: memref<2x8xi32, #tpu.memory_space<smem>>) -> (i32, i32, i32) {
    %c0_i32 = arith.constant 0 : i32
    %c0_i32_0 = arith.constant 0 : i32
    %c0_i32_1 = arith.constant 0 : i32
    %c0_i32_2 = arith.constant 0 : i32
    return %c0_i32, %c0_i32_0, %c0_i32_1 : i32, i32, i32
  }
  func.func @transform_9(%arg0: i32, %arg1: memref<2x8xi32, #tpu.memory_space<smem>>) -> (i32, i32, i32) {
    %c0_i32 = arith.constant 0 : i32
    %c0_i32_0 = arith.constant 0 : i32
    %c0_i32_1 = arith.constant 0 : i32
    %c0_i32_2 = arith.constant 0 : i32
    return %c0_i32, %c0_i32_0, %c0_i32_1 : i32, i32, i32
  }
  func.func @transform_10(%arg0: i32, %arg1: memref<2x8xi32, #tpu.memory_space<smem>>) -> (i32, i32, i32) {
    %c0_i32 = arith.constant 0 : i32
    %c0_i32_0 = arith.constant 0 : i32
    %c0_i32_1 = arith.constant 0 : i32
    %c0_i32_2 = arith.constant 0 : i32
    return %c0_i32, %c0_i32_0, %c0_i32_1 : i32, i32, i32
  }
  func.func @transform_11(%arg0: i32, %arg1: memref<2x8xi32, #tpu.memory_space<smem>>) -> (i32, i32, i32) {
    %c0_i32 = arith.constant 0 : i32
    %c0_i32_0 = arith.constant 0 : i32
    %c0_i32_1 = arith.constant 0 : i32
    %c0_i32_2 = arith.constant 0 : i32
    return %c0_i32, %c0_i32_0, %c0_i32_1 : i32, i32, i32
  }
  func.func @transform_12(%arg0: i32, %arg1: memref<2x8xi32, #tpu.memory_space<smem>>) -> (i32, i32, i32) {
    %c0_i32 = arith.constant 0 : i32
    %c0_i32_0 = arith.constant 0 : i32
    %c0_i32_1 = arith.constant 0 : i32
    %c0_i32_2 = arith.constant 0 : i32
    return %c0_i32, %c0_i32_0, %c0_i32_1 : i32, i32, i32
  }
  func.func @transform_13(%arg0: i32, %arg1: memref<2x8xi32, #tpu.memory_space<smem>>) -> (i32, i32, i32) {
    %c0_i32 = arith.constant 0 : i32
    %c0_i32_0 = arith.constant 0 : i32
    %c0_i32_1 = arith.constant 0 : i32
    %c0_i32_2 = arith.constant 0 : i32
    return %c0_i32, %c0_i32_0, %c0_i32_1 : i32, i32, i32
  }
  func.func @transform_14(%arg0: i32, %arg1: memref<2x8xi32, #tpu.memory_space<smem>>) -> (i32, i32, i32) {
    %c0_i32 = arith.constant 0 : i32
    %c0_i32_0 = arith.constant 0 : i32
    %c0_i32_1 = arith.constant 0 : i32
    %c0_i32_2 = arith.constant 0 : i32
    return %c0_i32, %c0_i32_0, %c0_i32_1 : i32, i32, i32
  }
  func.func @transform_15(%arg0: i32, %arg1: memref<2x8xi32, #tpu.memory_space<smem>>) -> (i32, i32, i32) {
    %c0_i32 = arith.constant 0 : i32
    %c0_i32_0 = arith.constant 0 : i32
    %c0_i32_1 = arith.constant 0 : i32
    %c0_i32_2 = arith.constant 0 : i32
    return %c0_i32, %c0_i32_0, %c0_i32_1 : i32, i32, i32
  }
  func.func @transform_16(%arg0: i32, %arg1: memref<2x8xi32, #tpu.memory_space<smem>>) -> (i32, i32, i32) {
    %c0_i32 = arith.constant 0 : i32
    %c0_i32_0 = arith.constant 0 : i32
    %c0_i32_1 = arith.constant 0 : i32
    %c0_i32_2 = arith.constant 0 : i32
    return %c0_i32, %c0_i32_0, %c0_i32_1 : i32, i32, i32
  }
  func.func @transform_17(%arg0: i32, %arg1: memref<2x8xi32, #tpu.memory_space<smem>>) -> (i32, i32) {
    %c0_i32 = arith.constant 0 : i32
    %c0_i32_0 = arith.constant 0 : i32
    %c0_i32_1 = arith.constant 0 : i32
    return %c0_i32, %c0_i32_0 : i32, i32
  }
  func.func @transform_18(%arg0: i32, %arg1: memref<2x8xi32, #tpu.memory_space<smem>>) -> (i32, i32) {
    %c0_i32 = arith.constant 0 : i32
    %c0_i32_0 = arith.constant 0 : i32
    %c0_i32_1 = arith.constant 0 : i32
    return %c0_i32, %c0_i32_0 : i32, i32
  }
  func.func @transform_19(%arg0: i32, %arg1: memref<2x8xi32, #tpu.memory_space<smem>>) -> (i32, i32) {
    %c0_i32 = arith.constant 0 : i32
    %c0_i32_0 = arith.constant 0 : i32
    %c0_i32_1 = arith.constant 0 : i32
    return %c0_i32, %c0_i32_0 : i32, i32
  }
  func.func @transform_20(%arg0: i32, %arg1: memref<2x8xi32, #tpu.memory_space<smem>>) -> (i32, i32) {
    %c0_i32 = arith.constant 0 : i32
    %c0_i32_0 = arith.constant 0 : i32
    %c0_i32_1 = arith.constant 0 : i32
    return %c0_i32, %c0_i32_0 : i32, i32
  }
  func.func @transform_21(%arg0: i32, %arg1: memref<2x8xi32, #tpu.memory_space<smem>>) -> (i32, i32) {
    %c0_i32 = arith.constant 0 : i32
    %c0_i32_0 = arith.constant 0 : i32
    %c0_i32_1 = arith.constant 0 : i32
    return %c0_i32, %c0_i32_0 : i32, i32
  }
  func.func @transform_22(%arg0: i32, %arg1: memref<2x8xi32, #tpu.memory_space<smem>>) -> (i32, i32) {
    %c0_i32 = arith.constant 0 : i32
    %c0_i32_0 = arith.constant 0 : i32
    %c0_i32_1 = arith.constant 0 : i32
    return %c0_i32, %c0_i32_0 : i32, i32
  }
  func.func @transform_23(%arg0: i32, %arg1: memref<2x8xi32, #tpu.memory_space<smem>>) -> (i32, i32, i32) {
    %c0_i32 = arith.constant 0 : i32
    %c0_i32_0 = arith.constant 0 : i32
    %c0_i32_1 = arith.constant 0 : i32
    return %arg0, %c0_i32, %c0_i32_0 : i32, i32, i32
  }
  func.func @transform_24(%arg0: i32, %arg1: memref<2x8xi32, #tpu.memory_space<smem>>) -> (i32, i32, i32) {
    %c0_i32 = arith.constant 0 : i32
    %c0_i32_0 = arith.constant 0 : i32
    %c0_i32_1 = arith.constant 0 : i32
    return %arg0, %c0_i32, %c0_i32_0 : i32, i32, i32
  }
}

</mosaic_0001>

<llo_original>
// kernel: inversion_plm_forward.1
$region0: #{inversion_plm_forward.1}
  #allocation0 [shape = 'u32[]', space=smem, size = 0x4, offset = 0x4, fixed_abs, tag = 'smem constant byte address 0x4 - core index']
  #allocation1 [shape = 'u32[144,128]{1,0:T(1,128)}', space=vmem, size = 0x12000, scoped, tag = 'internal scratch']
  #allocation2 [shape = 's32[1]{0}', space=sflag, size = 0x4, scoped, tag = 'scoped memory for inversion_plm_forward.1']
  #allocation3 [shape = 'u8[1024]{0}', space=smem, size = 0x400, scoped, tag = 'prefetched SMEM operand 0']
  %s0 = inlined_call_operand.vmem [shape: s32[2,8], index: 0, kind: input, shape index: {}]
  %s1 = inlined_call_operand.vmem [shape: f32[2,8,32], index: 1, kind: input, shape index: {}]
  %s2 = inlined_call_operand.hbm [shape: f32[8,32], index: 2, kind: input, shape index: {}]
  %s3 = inlined_call_operand.vmem [shape: f32[2,1,8], index: 3, kind: input, shape index: {}]
  %s4 = inlined_call_operand.vmem [shape: f32[1,32], index: 4, kind: input, shape index: {}]
  %s5 = inlined_call_operand.hbm [shape: f32[1,32], index: 5, kind: input, shape index: {}]
  %s6 = inlined_call_operand.vmem [shape: f32[2,32,96], index: 6, kind: input, shape index: {}]
  %s7 = inlined_call_operand.hbm [shape: f32[2,1,96], index: 7, kind: input, shape index: {}]
  %s8 = inlined_call_operand.vmem [shape: f32[2,32,32], index: 8, kind: input, shape index: {}]
  %s9 = inlined_call_operand.hbm [shape: f32[2,1,32], index: 9, kind: input, shape index: {}]
  %s10 = inlined_call_operand.hbm [shape: f32[2,1,32], index: 10, kind: input, shape index: {}]
  %s11 = inlined_call_operand.hbm [shape: f32[2,1,32], index: 11, kind: input, shape index: {}]
  %s12 = inlined_call_operand.vmem [shape: f32[2,32,64], index: 12, kind: input, shape index: {}]
  %s13 = inlined_call_operand.hbm [shape: f32[2,1,64], index: 13, kind: input, shape index: {}]
  %s14 = inlined_call_operand.vmem [shape: f32[2,64,32], index: 14, kind: input, shape index: {}]
  %s15 = inlined_call_operand.hbm [shape: f32[2,1,32], index: 15, kind: input, shape index: {}]
  %s16 = inlined_call_operand.hbm [shape: f32[2,1,32], index: 16, kind: input, shape index: {}]
  %s17 = inlined_call_operand.hbm [shape: f32[2,1,32], index: 17, kind: input, shape index: {}]
  %s18 = inlined_call_operand.hbm [shape: f32[32,32], index: 18, kind: input, shape index: {}]
  %s19 = inlined_call_operand.hbm [shape: f32[1,32], index: 19, kind: input, shape index: {}]
  %s20 = inlined_call_operand.hbm [shape: f32[1,32], index: 20, kind: input, shape index: {}]
  %s21 = inlined_call_operand.hbm [shape: f32[1,32], index: 21, kind: input, shape index: {}]
  %s22 = inlined_call_operand.hbm [shape: f32[32,128], index: 22, kind: input, shape index: {}]
  %s23 = inlined_call_operand.hbm [shape: f32[1,128], index: 23, kind: input, shape index: {}]
  %s24 = inlined_call_operand.hbm [shape: f32[2,8,128], index: 24, kind: output, shape index: {0}]
  %s25 = inlined_call_operand.vmem [shape: f32[2,1,128], index: 25, kind: output, shape index: {1}]
  %26 = xla_tuple %s24, %s25
  %s27 = sld [smem:[#allocation0]]
  $region197: #{inversion_plm_forward.1} parent=0
    _
  %s29 = ssub.s32 1, %s27
  %s30 = scalar_select 0, %s29, %s27
  %s31 = sshll.u32 %s0, 4
  %s32 = int_to_ptr.vmem [resolvable:$true] %s31
  %34 = dma.vmem_to_smem %s32, 32, [#allocation3], [#allocation2]
  %35 = dma.done [#allocation2], 32
  %36 = sfence
  $region1: #{inversion_plm_forward.1} parent=0
    #allocation4 [shape = 'u8[4096]{0}', space=vmem, size = 0x1000, scoped, tag = 'input window, operand 2, single buffered']
    #allocation5 [shape = 's32[2]{0}', space=sflag, size = 0x8, scoped, tag = 'scoped memory for inversion_plm_forward.1']
    #allocation6 [shape = 's32[2]{0}', space=sflag, size = 0x8, scoped, tag = 'scoped memory for inversion_plm_forward.1']
    #allocation7 [shape = 'u8[512]{0}', space=vmem, size = 0x400, scoped, tag = 'input window, operand 5, single buffered']
    #allocation8 [shape = 's32[1]{0}', space=sflag, size = 0x4, scoped, tag = 'scoped memory for inversion_plm_forward.1']
    #allocation9 [shape = 'u8[1024]{0}', space=vmem, size = 0x400, scoped, tag = 'input window, operand 7, single buffered']
    #allocation10 [shape = 'u8[1024]{0}', space=vmem, size = 0x400, scoped, tag = 'input window, operand 9, single buffered']
    #allocation11 [shape = 's32[1]{0}', space=sflag, size = 0x4, scoped, tag = 'scoped memory for inversion_plm_forward.1']
    #allocation12 [shape = 'u8[1024]{0}', space=vmem, size = 0x400, scoped, tag = 'input window, operand 10, single buffered']
    #allocation13 [shape = 'u8[1024]{0}', space=vmem, size = 0x400, scoped, tag = 'input window, operand 11, single buffered']
    #allocation14 [shape = 's32[1]{0}', space=sflag, size = 0x4, scoped, tag = 'scoped memory for inversion_plm_forward.1']
    #allocation15 [shape = 'u8[1024]{0}', space=vmem, size = 0x400, scoped, tag = 'input window, operand 13, single buffered']
    #allocation16 [shape = 'u8[1024]{0}', space=vmem, size = 0x400, scoped, tag = 'input window, operand 15, single buffered']
    #allocation17 [shape = 's32[1]{0}', space=sflag, size = 0x4, scoped, tag = 'scoped memory for inversion_plm_forward.1']
    #allocation18 [shape = 'u8[1024]{0}', space=vmem, size = 0x400, scoped, tag = 'input window, operand 16, single buffered']
    #allocation19 [shape = 'u8[1024]{0}', space=vmem, size = 0x400, scoped, tag = 'input window, operand 17, single buffered']
    #allocation20 [shape = 's32[1]{0}', space=sflag, size = 0x4, scoped, tag = 'scoped memory for inversion_plm_forward.1']
    #allocation21 [shape = 'u8[16384]{0}', space=vmem, size = 0x4000, scoped, tag = 'input window, operand 18, single buffered']
    #allocation22 [shape = 'u8[512]{0}', space=vmem, size = 0x400, scoped, tag = 'input window, operand 19, single buffered']
    #allocation23 [shape = 's32[1]{0}', space=sflag, size = 0x4, scoped, tag = 'scoped memory for inversion_plm_forward.1']
    #allocation24 [shape = 'u8[512]{0}', space=vmem, size = 0x400, scoped, tag = 'input window, operand 20, single buffered']
    #allocation25 [shape = 'u8[512]{0}', space=vmem, size = 0x400, scoped, tag = 'input window, operand 21, single buffered']
    #allocation26 [shape = 's32[1]{0}', space=sflag, size = 0x4, scoped, tag = 'scoped memory for inversion_plm_forward.1']
    #allocation27 [shape = 'u8[16384]{0}', space=vmem, size = 0x4000, scoped, tag = 'input window, operand 22, single buffered']
    #allocation28 [shape = 'u8[512]{0}', space=vmem, size = 0x400, scoped, tag = 'input window, operand 23, single buffered']
    #allocation29 [shape = 's32[1]{0}', space=sflag, size = 0x4, scoped, tag = 'scoped memory for inversion_plm_forward.1']
    #allocation30 [shape = 'u8[8192]{0}', space=vmem, size = 0x2000, scoped, tag = 'output window, operand 0']
    %37 = vsyncpa [#allocation5], 0
    %38 = vsyncpa [#allocation8], 0
    %39 = vsyncpa [#allocation11], 0
    %40 = vsyncpa [#allocation14], 0
    %41 = vsyncpa [#allocation17], 0
    %42 = vsyncpa [#allocation20], 0
    %43 = vsyncpa [#allocation23], 0
    %44 = vsyncpa [#allocation26], 0
    %45 = vsyncpa [#allocation29], 0
    %46 = vsyncpa [#allocation6], 0
    %s47 = scalar_lea.sflag [#allocation6], 1
    %48 = vsyncpa %s47, 0
    loop: start=0, step=1, limit=4
    $region2: #{inversion_plm_forward.1} parent=1 // loop_pre_header
      _
    $region3: #{inversion_plm_forward.1} parent=1 // loop_header
      %s50 = sphi 0, %s54
      %p51 = scmp.ge.s32.totalorder %s50, 4
      %s60 = sphi 0, %s62
      %s63 = sphi 0, %s60
      %s64 = sphi 0, %s63
      %s80 = sphi 0, %s64
      %s84 = sphi 0, %s84
      %s86 = sphi 0, %s84
      %s87 = sphi 0, %s86
      %s101 = sphi 0, %s87
      %s107 = sphi 0, %s109
      %s110 = sphi 0, %s107
      %s111 = sphi 0, %s110
      %s127 = sphi 0, %s111
      %s131 = sphi 0, %s131
      %s133 = sphi 0, %s131
      %s134 = sphi 0, %s133
      %s148 = sphi 0, %s134
      %s152 = sphi 0, %s152
      %s154 = sphi 0, %s152
      %s155 = sphi 0, %s154
      %s169 = sphi 0, %s155
      %s173 = sphi 0, %s173
      %s175 = sphi 0, %s173
      %s176 = sphi 0, %s175
      %s190 = sphi 0, %s176
      %s194 = sphi 0, %s194
      %s196 = sphi 0, %s194
      %s197 = sphi 0, %s196
      %s211 = sphi 0, %s197
      %s215 = sphi 0, %s215
      %s217 = sphi 0, %s215
      %s218 = sphi 0, %s217
      %s232 = sphi 0, %s218
      %s236 = sphi 0, %s236
      %s238 = sphi 0, %s236
      %s239 = sphi 0, %s238
      %s253 = sphi 0, %s239
      %s257 = sphi 0, %s257
      %s259 = sphi 0, %s257
      %s260 = sphi 0, %s259
      %s274 = sphi 0, %s260
      %s278 = sphi 0, %s278
      %s280 = sphi 0, %s278
      %s281 = sphi 0, %s280
      %s295 = sphi 0, %s281
      %s299 = sphi 0, %s299
      %s301 = sphi 0, %s299
      %s302 = sphi 0, %s301
      %s316 = sphi 0, %s302
      %s320 = sphi 0, %s320
      %s322 = sphi 0, %s320
      %s323 = sphi 0, %s322
      %s337 = sphi 0, %s323
      %s341 = sphi 0, %s341
      %s343 = sphi 0, %s341
      %s344 = sphi 0, %s343
      %s358 = sphi 0, %s344
      %s362 = sphi 0, %s362
      %s364 = sphi 0, %s362
      %s365 = sphi 0, %s364
      %s379 = sphi 0, %s365
      %s383 = sphi 0, %s383
      %s385 = sphi 0, %s383
      %s386 = sphi 0, %s385
      %s400 = sphi 0, %s386
      %s404 = sphi 0, %s404
      %s406 = sphi 0, %s404
      %s407 = sphi 0, %s406
      %s421 = sphi 0, %s407
      %s425 = sphi 0, %s425
      %s427 = sphi 0, %s425
      %s428 = sphi 0, %s427
      %s442 = sphi 0, %s428
      %s446 = sphi 0, %s446
      %s448 = sphi 0, %s446
      %s449 = sphi 0, %s448
      %s463 = sphi 0, %s449
      %s467 = sphi 0, %s467
      %s469 = sphi 0, %s467
      %s470 = sphi 0, %s469
      %s484 = sphi 0, %s470
      %s488 = sphi 0, %s488
      %s490 = sphi 0, %s488
      %s491 = sphi 0, %s490
      %s505 = sphi 0, %s491
      %s509 = sphi 0, %s509
      %s511 = sphi 0, %s509
      %s512 = sphi 0, %s511
      %s526 = sphi 0, %s512
      %s530 = sphi 0, %s530
      %s532 = sphi 0, %s530
      %s533 = sphi 0, %s532
      %s547 = sphi 0, %s533
      %s553 = sphi 0, %s555
      %s556 = sphi 0, %s553
      %s557 = sphi 0, %s556
      %s573 = sphi 0, %s557
      %s579 = sphi 0, %s581
      %s582 = sphi 0, %s579
      %s583 = sphi 0, %s582
      %s599 = sphi 0, %s583
    $region4: #{inversion_plm_forward.1} parent=1 // loop_header_branch
      %53 = sbr.rel (%p51) target = $region8
    $region5: #{inversion_plm_forward.1} parent=1 // loop_body
      %s55 = ssub.s32 %s50, 1
      %s56 = ssub.s32 %s50, 2
      %s57 = sadd.s32 %s50, 1
      %s58 = ssub.s32 %s50, %s57
      %p59 = scmp.eq.s32.totalorder %s58, 0
      %s61 = sadd.s32 %s60, 1
      %s62 = scalar_select %p59, %s60, %s61
      %p65 = pneg %p59
      %p66 = scmp.eq.s32.totalorder %s50, 1
      %p67 = por %p65, %p66
      %p68 = scmp.ne.s32.totalorder %s60, %s63
      %p69 = scmp.eq.s32.totalorder %s50, 0
      %p70 = por %p68, %p69
      %p71 = scmp.ne.s32.totalorder %s60, %s63
      %p72 = scmp.eq.s32.totalorder %s55, 1
      %p73 = por %p71, %p72
      %p74 = scmp.ne.s32.totalorder %s63, %s64
      %p75 = scmp.eq.s32.totalorder %s55, 0
      %p76 = por %p74, %p75
      %p77 = scmp.ne.s32.totalorder %s63, %s64
      %p78 = scmp.eq.s32.totalorder %s56, 1
      %p79 = por %p77, %p78
      %p81 = scmp.ne.s32.totalorder %s64, %s80
      %p82 = scmp.eq.s32.totalorder %s56, 0
      %p83 = por %p81, %p82
      %s85 = sadd.s32 %s84, 1
      %p88 = scmp.eq.s32.totalorder %s50, 1
      %p89 = scmp.ne.s32.totalorder %s84, %s86
      %p90 = scmp.eq.s32.totalorder %s50, 0
      %p91 = por %p89, %p90
      %p92 = scmp.ne.s32.totalorder %s84, %s86
      %p93 = scmp.eq.s32.totalorder %s55, 1
      %p94 = por %p92, %p93
      %p95 = scmp.ne.s32.totalorder %s86, %s87
      %p96 = scmp.eq.s32.totalorder %s55, 0
      %p97 = por %p95, %p96
      %p98 = scmp.ne.s32.totalorder %s86, %s87
      %p99 = scmp.eq.s32.totalorder %s56, 1
      %p100 = por %p98, %p99
      %p102 = scmp.ne.s32.totalorder %s87, %s101
      %p103 = scmp.eq.s32.totalorder %s56, 0
      %p104 = por %p102, %p103
      %s105 = ssub.s32 %s50, %s57
      %p106 = scmp.eq.s32.totalorder %s105, 0
      %s108 = sadd.s32 %s107, 1
      %s109 = scalar_select %p106, %s107, %s108
      %p112 = pneg %p106
      %p113 = scmp.eq.s32.totalorder %s50, 1
      %p114 = por %p112, %p113
      %p115 = scmp.ne.s32.totalorder %s107, %s110
      %p116 = scmp.eq.s32.totalorder %s50, 0
      %p117 = por %p115, %p116
      %p118 = scmp.ne.s32.totalorder %s107, %s110
      %p119 = scmp.eq.s32.totalorder %s55, 1
      %p120 = por %p118, %p119
      %p121 = scmp.ne.s32.totalorder %s110, %s111
      %p122 = scmp.eq.s32.totalorder %s55, 0
      %p123 = por %p121, %p122
      %p124 = scmp.ne.s32.totalorder %s110, %s111
      %p125 = scmp.eq.s32.totalorder %s56, 1
      %p126 = por %p124, %p125
      %p128 = scmp.ne.s32.totalorder %s111, %s127
      %p129 = scmp.eq.s32.totalorder %s56, 0
      %p130 = por %p128, %p129
      %s132 = sadd.s32 %s131, 1
      %p135 = scmp.eq.s32.totalorder %s50, 1
      %p136 = scmp.ne.s32.totalorder %s131, %s133
      %p137 = scmp.eq.s32.totalorder %s50, 0
      %p138 = por %p136, %p137
      %p139 = scmp.ne.s32.totalorder %s131, %s133
      %p140 = scmp.eq.s32.totalorder %s55, 1
      %p141 = por %p139, %p140
      %p142 = scmp.ne.s32.totalorder %s133, %s134
      %p143 = scmp.eq.s32.totalorder %s55, 0
      %p144 = por %p142, %p143
      %p145 = scmp.ne.s32.totalorder %s133, %s134
      %p146 = scmp.eq.s32.totalorder %s56, 1
      %p147 = por %p145, %p146
      %p149 = scmp.ne.s32.totalorder %s134, %s148
      %p150 = scmp.eq.s32.totalorder %s56, 0
      %p151 = por %p149, %p150
      %s153 = sadd.s32 %s152, 1
      %p156 = scmp.eq.s32.totalorder %s50, 1
      %p157 = scmp.ne.s32.totalorder %s152, %s154
      %p158 = scmp.eq.s32.totalorder %s50, 0
      %p159 = por %p157, %p158
      %p160 = scmp.ne.s32.totalorder %s152, %s154
      %p161 = scmp.eq.s32.totalorder %s55, 1
      %p162 = por %p160, %p161
      %p163 = scmp.ne.s32.totalorder %s154, %s155
      %p164 = scmp.eq.s32.totalorder %s55, 0
      %p165 = por %p163, %p164
      %p166 = scmp.ne.s32.totalorder %s154, %s155
      %p167 = scmp.eq.s32.totalorder %s56, 1
      %p168 = por %p166, %p167
      %p170 = scmp.ne.s32.totalorder %s155, %s169
      %p171 = scmp.eq.s32.totalorder %s56, 0
      %p172 = por %p170, %p171
      %s174 = sadd.s32 %s173, 1
      %p177 = scmp.eq.s32.totalorder %s50, 1
      %p178 = scmp.ne.s32.totalorder %s173, %s175
      %p179 = scmp.eq.s32.totalorder %s50, 0
      %p180 = por %p178, %p179
      %p181 = scmp.ne.s32.totalorder %s173, %s175
      %p182 = scmp.eq.s32.totalorder %s55, 1
      %p183 = por %p181, %p182
      %p184 = scmp.ne.s32.totalorder %s175, %s176
      %p185 = scmp.eq.s32.totalorder %s55, 0
      %p186 = por %p184, %p185
      %p187 = scmp.ne.s32.totalorder %s175, %s176
      %p188 = scmp.eq.s32.totalorder %s56, 1
      %p189 = por %p187, %p188
      %p191 = scmp.ne.s32.totalorder %s176, %s190
      %p192 = scmp.eq.s32.totalorder %s56, 0
      %p193 = por %p191, %p192
      %s195 = sadd.s32 %s194, 1
      %p198 = scmp.eq.s32.totalorder %s50, 1
      %p199 = scmp.ne.s32.totalorder %s194, %s196
      %p200 = scmp.eq.s32.totalorder %s50, 0
      %p201 = por %p199, %p200
      %p202 = scmp.ne.s32.totalorder %s194, %s196
      %p203 = scmp.eq.s32.totalorder %s55, 1
      %p204 = por %p202, %p203
      %p205 = scmp.ne.s32.totalorder %s196, %s197
      %p206 = scmp.eq.s32.totalorder %s55, 0
      %p207 = por %p205, %p206
      %p208 = scmp.ne.s32.totalorder %s196, %s197
      %p209 = scmp.eq.s32.totalorder %s56, 1
      %p210 = por %p208, %p209
      %p212 = scmp.ne.s32.totalorder %s197, %s211
      %p213 = scmp.eq.s32.totalorder %s56, 0
      %p214 = por %p212, %p213
      %s216 = sadd.s32 %s215, 1
      %p219 = scmp.eq.s32.totalorder %s50, 1
      %p220 = scmp.ne.s32.totalorder %s215, %s217
      %p221 = scmp.eq.s32.totalorder %s50, 0
      %p222 = por %p220, %p221
      %p223 = scmp.ne.s32.totalorder %s215, %s217
      %p224 = scmp.eq.s32.totalorder %s55, 1
      %p225 = por %p223, %p224
      %p226 = scmp.ne.s32.totalorder %s217, %s218
      %p227 = scmp.eq.s32.totalorder %s55, 0
      %p228 = por %p226, %p227
      %p229 = scmp.ne.s32.totalorder %s217, %s218
      %p230 = scmp.eq.s32.totalorder %s56, 1
      %p231 = por %p229, %p230
      %p233 = scmp.ne.s32.totalorder %s218, %s232
      %p234 = scmp.eq.s32.totalorder %s56, 0
      %p235 = por %p233, %p234
      %s237 = sadd.s32 %s236, 1
      %p240 = scmp.eq.s32.totalorder %s50, 1
      %p241 = scmp.ne.s32.totalorder %s236, %s238
      %p242 = scmp.eq.s32.totalorder %s50, 0
      %p243 = por %p241, %p242
      %p244 = scmp.ne.s32.totalorder %s236, %s238
      %p245 = scmp.eq.s32.totalorder %s55, 1
      %p246 = por %p244, %p245
      %p247 = scmp.ne.s32.totalorder %s238, %s239
      %p248 = scmp.eq.s32.totalorder %s55, 0
      %p249 = por %p247, %p248
      %p250 = scmp.ne.s32.totalorder %s238, %s239
      %p251 = scmp.eq.s32.totalorder %s56, 1
      %p252 = por %p250, %p251
      %p254 = scmp.ne.s32.totalorder %s239, %s253
      %p255 = scmp.eq.s32.totalorder %s56, 0
      %p256 = por %p254, %p255
      %s258 = sadd.s32 %s257, 1
      %p261 = scmp.eq.s32.totalorder %s50, 1
      %p262 = scmp.ne.s32.totalorder %s257, %s259
      %p263 = scmp.eq.s32.totalorder %s50, 0
      %p264 = por %p262, %p263
      %p265 = scmp.ne.s32.totalorder %s257, %s259
      %p266 = scmp.eq.s32.totalorder %s55, 1
      %p267 = por %p265, %p266
      %p268 = scmp.ne.s32.totalorder %s259, %s260
      %p269 = scmp.eq.s32.totalorder %s55, 0
      %p270 = por %p268, %p269
      %p271 = scmp.ne.s32.totalorder %s259, %s260
      %p272 = scmp.eq.s32.totalorder %s56, 1
      %p273 = por %p271, %p272
      %p275 = scmp.ne.s32.totalorder %s260, %s274
      %p276 = scmp.eq.s32.totalorder %s56, 0
      %p277 = por %p275, %p276
      %s279 = sadd.s32 %s278, 1
      %p282 = scmp.eq.s32.totalorder %s50, 1
      %p283 = scmp.ne.s32.totalorder %s278, %s280
      %p284 = scmp.eq.s32.totalorder %s50, 0
      %p285 = por %p283, %p284
      %p286 = scmp.ne.s32.totalorder %s278, %s280
      %p287 = scmp.eq.s32.totalorder %s55, 1
      %p288 = por %p286, %p287
      %p289 = scmp.ne.s32.totalorder %s280, %s281
      %p290 = scmp.eq.s32.totalorder %s55, 0
      %p291 = por %p289, %p290
      %p292 = scmp.ne.s32.totalorder %s280, %s281
      %p293 = scmp.eq.s32.totalorder %s56, 1
      %p294 = por %p292, %p293
      %p296 = scmp.ne.s32.totalorder %s281, %s295
      %p297 = scmp.eq.s32.totalorder %s56, 0
      %p298 = por %p296, %p297
      %s300 = sadd.s32 %s299, 1
      %p303 = scmp.eq.s32.totalorder %s50, 1
      %p304 = scmp.ne.s32.totalorder %s299, %s301
      %p305 = scmp.eq.s32.totalorder %s50, 0
      %p306 = por %p304, %p305
      %p307 = scmp.ne.s32.totalorder %s299, %s301
      %p308 = scmp.eq.s32.totalorder %s55, 1
      %p309 = por %p307, %p308
      %p310 = scmp.ne.s32.totalorder %s301, %s302
      %p311 = scmp.eq.s32.totalorder %s55, 0
      %p312 = por %p310, %p311
      %p313 = scmp.ne.s32.totalorder %s301, %s302
      %p314 = scmp.eq.s32.totalorder %s56, 1
      %p315 = por %p313, %p314
      %p317 = scmp.ne.s32.totalorder %s302, %s316
      %p318 = scmp.eq.s32.totalorder %s56, 0
      %p319 = por %p317, %p318
      %s321 = sadd.s32 %s320, 1
      %p324 = scmp.eq.s32.totalorder %s50, 1
      %p325 = scmp.ne.s32.totalorder %s320, %s322
      %p326 = scmp.eq.s32.totalorder %s50, 0
      %p327 = por %p325, %p326
      %p328 = scmp.ne.s32.totalorder %s320, %s322
      %p329 = scmp.eq.s32.totalorder %s55, 1
      %p330 = por %p328, %p329
      %p331 = scmp.ne.s32.totalorder %s322, %s323
      %p332 = scmp.eq.s32.totalorder %s55, 0
      %p333 = por %p331, %p332
      %p334 = scmp.ne.s32.totalorder %s322, %s323
      %p335 = scmp.eq.s32.totalorder %s56, 1
      %p336 = por %p334, %p335
      %p338 = scmp.ne.s32.totalorder %s323, %s337
      %p339 = scmp.eq.s32.totalorder %s56, 0
      %p340 = por %p338, %p339
      %s342 = sadd.s32 %s341, 1
      %p345 = scmp.eq.s32.totalorder %s50, 1
      %p346 = scmp.ne.s32.totalorder %s341, %s343
      %p347 = scmp.eq.s32.totalorder %s50, 0
      %p348 = por %p346, %p347
      %p349 = scmp.ne.s32.totalorder %s341, %s343
      %p350 = scmp.eq.s32.totalorder %s55, 1
      %p351 = por %p349, %p350
      %p352 = scmp.ne.s32.totalorder %s343, %s344
      %p353 = scmp.eq.s32.totalorder %s55, 0
      %p354 = por %p352, %p353
      %p355 = scmp.ne.s32.totalorder %s343, %s344
      %p356 = scmp.eq.s32.totalorder %s56, 1
      %p357 = por %p355, %p356
      %p359 = scmp.ne.s32.totalorder %s344, %s358
      %p360 = scmp.eq.s32.totalorder %s56, 0
      %p361 = por %p359, %p360
      %s363 = sadd.s32 %s362, 1
      %p366 = scmp.eq.s32.totalorder %s50, 1
      %p367 = scmp.ne.s32.totalorder %s362, %s364
      %p368 = scmp.eq.s32.totalorder %s50, 0
      %p369 = por %p367, %p368
      %p370 = scmp.ne.s32.totalorder %s362, %s364
      %p371 = scmp.eq.s32.totalorder %s55, 1
      %p372 = por %p370, %p371
      %p373 = scmp.ne.s32.totalorder %s364, %s365
      %p374 = scmp.eq.s32.totalorder %s55, 0
      %p375 = por %p373, %p374
      %p376 = scmp.ne.s32.totalorder %s364, %s365
      %p377 = scmp.eq.s32.totalorder %s56, 1
      %p378 = por %p376, %p377
      %p380 = scmp.ne.s32.totalorder %s365, %s379
      %p381 = scmp.eq.s32.totalorder %s56, 0
      %p382 = por %p380, %p381
      %s384 = sadd.s32 %s383, 1
      %p387 = scmp.eq.s32.totalorder %s50, 1
      %p388 = scmp.ne.s32.totalorder %s383, %s385
      %p389 = scmp.eq.s32.totalorder %s50, 0
      %p390 = por %p388, %p389
      %p391 = scmp.ne.s32.totalorder %s383, %s385
      %p392 = scmp.eq.s32.totalorder %s55, 1
      %p393 = por %p391, %p392
      %p394 = scmp.ne.s32.totalorder %s385, %s386
      %p395 = scmp.eq.s32.totalorder %s55, 0
      %p396 = por %p394, %p395
      %p397 = scmp.ne.s32.totalorder %s385, %s386
      %p398 = scmp.eq.s32.totalorder %s56, 1
      %p399 = por %p397, %p398
      %p401 = scmp.ne.s32.totalorder %s386, %s400
      %p402 = scmp.eq.s32.totalorder %s56, 0
      %p403 = por %p401, %p402
      %s405 = sadd.s32 %s404, 1
      %p408 = scmp.eq.s32.totalorder %s50, 1
      %p409 = scmp.ne.s32.totalorder %s404, %s406
      %p410 = scmp.eq.s32.totalorder %s50, 0
      %p411 = por %p409, %p410
      %p412 = scmp.ne.s32.totalorder %s404, %s406
      %p413 = scmp.eq.s32.totalorder %s55, 1
      %p414 = por %p412, %p413
      %p415 = scmp.ne.s32.totalorder %s406, %s407
      %p416 = scmp.eq.s32.totalorder %s55, 0
      %p417 = por %p415, %p416
      %p418 = scmp.ne.s32.totalorder %s406, %s407
      %p419 = scmp.eq.s32.totalorder %s56, 1
      %p420 = por %p418, %p419
      %p422 = scmp.ne.s32.totalorder %s407, %s421
      %p423 = scmp.eq.s32.totalorder %s56, 0
      %p424 = por %p422, %p423
      %s426 = sadd.s32 %s425, 1
      %p429 = scmp.eq.s32.totalorder %s50, 1
      %p430 = scmp.ne.s32.totalorder %s425, %s427
      %p431 = scmp.eq.s32.totalorder %s50, 0
      %p432 = por %p430, %p431
      %p433 = scmp.ne.s32.totalorder %s425, %s427
      %p434 = scmp.eq.s32.totalorder %s55, 1
      %p435 = por %p433, %p434
      %p436 = scmp.ne.s32.totalorder %s427, %s428
      %p437 = scmp.eq.s32.totalorder %s55, 0
      %p438 = por %p436, %p437
      %p439 = scmp.ne.s32.totalorder %s427, %s428
      %p440 = scmp.eq.s32.totalorder %s56, 1
      %p441 = por %p439, %p440
      %p443 = scmp.ne.s32.totalorder %s428, %s442
      %p444 = scmp.eq.s32.totalorder %s56, 0
      %p445 = por %p443, %p444
      %s447 = sadd.s32 %s446, 1
      %p450 = scmp.eq.s32.totalorder %s50, 1
      %p451 = scmp.ne.s32.totalorder %s446, %s448
      %p452 = scmp.eq.s32.totalorder %s50, 0
      %p453 = por %p451, %p452
      %p454 = scmp.ne.s32.totalorder %s446, %s448
      %p455 = scmp.eq.s32.totalorder %s55, 1
      %p456 = por %p454, %p455
      %p457 = scmp.ne.s32.totalorder %s448, %s449
      %p458 = scmp.eq.s32.totalorder %s55, 0
      %p459 = por %p457, %p458
      %p460 = scmp.ne.s32.totalorder %s448, %s449
      %p461 = scmp.eq.s32.totalorder %s56, 1
      %p462 = por %p460, %p461
      %p464 = scmp.ne.s32.totalorder %s449, %s463
      %p465 = scmp.eq.s32.totalorder %s56, 0
      %p466 = por %p464, %p465
      %s468 = sadd.s32 %s467, 1
      %p471 = scmp.eq.s32.totalorder %s50, 1
      %p472 = scmp.ne.s32.totalorder %s467, %s469
      %p473 = scmp.eq.s32.totalorder %s50, 0
      %p474 = por %p472, %p473
      %p475 = scmp.ne.s32.totalorder %s467, %s469
      %p476 = scmp.eq.s32.totalorder %s55, 1
      %p477 = por %p475, %p476
      %p478 = scmp.ne.s32.totalorder %s469, %s470
      %p479 = scmp.eq.s32.totalorder %s55, 0
      %p480 = por %p478, %p479
      %p481 = scmp.ne.s32.totalorder %s469, %s470
      %p482 = scmp.eq.s32.totalorder %s56, 1
      %p483 = por %p481, %p482
      %p485 = scmp.ne.s32.totalorder %s470, %s484
      %p486 = scmp.eq.s32.totalorder %s56, 0
      %p487 = por %p485, %p486
      %s489 = sadd.s32 %s488, 1
      %p492 = scmp.eq.s32.totalorder %s50, 1
      %p493 = scmp.ne.s32.totalorder %s488, %s490
      %p494 = scmp.eq.s32.totalorder %s50, 0
      %p495 = por %p493, %p494
      %p496 = scmp.ne.s32.totalorder %s488, %s490
      %p497 = scmp.eq.s32.totalorder %s55, 1
      %p498 = por %p496, %p497
      %p499 = scmp.ne.s32.totalorder %s490, %s491
      %p500 = scmp.eq.s32.totalorder %s55, 0
      %p501 = por %p499, %p500
      %p502 = scmp.ne.s32.totalorder %s490, %s491
      %p503 = scmp.eq.s32.totalorder %s56, 1
      %p504 = por %p502, %p503
      %p506 = scmp.ne.s32.totalorder %s491, %s505
      %p507 = scmp.eq.s32.totalorder %s56, 0
      %p508 = por %p506, %p507
      %s510 = sadd.s32 %s509, 1
      %p513 = scmp.eq.s32.totalorder %s50, 1
      %p514 = scmp.ne.s32.totalorder %s509, %s511
      %p515 = scmp.eq.s32.totalorder %s50, 0
      %p516 = por %p514, %p515
      %p517 = scmp.ne.s32.totalorder %s509, %s511
      %p518 = scmp.eq.s32.totalorder %s55, 1
      %p519 = por %p517, %p518
      %p520 = scmp.ne.s32.totalorder %s511, %s512
      %p521 = scmp.eq.s32.totalorder %s55, 0
      %p522 = por %p520, %p521
      %p523 = scmp.ne.s32.totalorder %s511, %s512
      %p524 = scmp.eq.s32.totalorder %s56, 1
      %p525 = por %p523, %p524
      %p527 = scmp.ne.s32.totalorder %s512, %s526
      %p528 = scmp.eq.s32.totalorder %s56, 0
      %p529 = por %p527, %p528
      %s531 = sadd.s32 %s530, 1
      %p534 = scmp.eq.s32.totalorder %s50, 1
      %p535 = scmp.ne.s32.totalorder %s530, %s532
      %p536 = scmp.eq.s32.totalorder %s50, 0
      %p537 = por %p535, %p536
      %p538 = scmp.ne.s32.totalorder %s530, %s532
      %p539 = scmp.eq.s32.totalorder %s55, 1
      %p540 = por %p538, %p539
      %p541 = scmp.ne.s32.totalorder %s532, %s533
      %p542 = scmp.eq.s32.totalorder %s55, 0
      %p543 = por %p541, %p542
      %p544 = scmp.ne.s32.totalorder %s532, %s533
      %p545 = scmp.eq.s32.totalorder %s56, 1
      %p546 = por %p544, %p545
      %p548 = scmp.ne.s32.totalorder %s533, %s547
      %p549 = scmp.eq.s32.totalorder %s56, 0
      %p550 = por %p548, %p549
      %s551 = ssub.s32 %s50, %s57
      %p552 = scmp.eq.s32.totalorder %s551, 0
      %s554 = sadd.s32 %s553, 1
      %s555 = scalar_select %p552, %s553, %s554
      %p558 = pneg %p552
      %p559 = scmp.eq.s32.totalorder %s50, 1
      %p560 = por %p558, %p559
      %p561 = scmp.ne.s32.totalorder %s553, %s556
      %p562 = scmp.eq.s32.totalorder %s50, 0
      %p563 = por %p561, %p562
      %p564 = scmp.ne.s32.totalorder %s553, %s556
      %p565 = scmp.eq.s32.totalorder %s55, 1
      %p566 = por %p564, %p565
      %p567 = scmp.ne.s32.totalorder %s556, %s557
      %p568 = scmp.eq.s32.totalorder %s55, 0
      %p569 = por %p567, %p568
      %p570 = scmp.ne.s32.totalorder %s556, %s557
      %p571 = scmp.eq.s32.totalorder %s56, 1
      %p572 = por %p570, %p571
      %p574 = scmp.ne.s32.totalorder %s557, %s573
      %p575 = scmp.eq.s32.totalorder %s56, 0
      %p576 = por %p574, %p575
      %s577 = ssub.s32 %s50, %s57
      %p578 = scmp.eq.s32.totalorder %s577, 0
      %s580 = sadd.s32 %s579, 1
      %s581 = scalar_select %p578, %s579, %s580
      %p584 = pneg %p578
      %p585 = scmp.eq.s32.totalorder %s50, 1
      %p586 = por %p584, %p585
      %p587 = scmp.ne.s32.totalorder %s579, %s582
      %p588 = scmp.eq.s32.totalorder %s50, 0
      %p589 = por %p587, %p588
      %p590 = scmp.ne.s32.totalorder %s579, %s582
      %p591 = scmp.eq.s32.totalorder %s55, 1
      %p592 = por %p590, %p591
      %p593 = scmp.ne.s32.totalorder %s582, %s583
      %p594 = scmp.eq.s32.totalorder %s55, 0
      %p595 = por %p593, %p594
      %p596 = scmp.ne.s32.totalorder %s582, %s583
      %p597 = scmp.eq.s32.totalorder %s56, 1
      %p598 = por %p596, %p597
      %p600 = scmp.ne.s32.totalorder %s583, %s599
      %p601 = scmp.eq.s32.totalorder %s56, 0
      %p602 = por %p600, %p601
      %p603 = scmp.le.s32.totalorder 1, %s50
      %p604 = scmp.lt.s32.totalorder %s50, 3
      %p605 = pnand %p603, %p604
      %p606 = pneg %p605
      // Predicated region
      $region9: #{inversion_plm_forward.1} parent=5 // pred_check
        _
      $region10: #{inversion_plm_forward.1} parent=5 // pred_check_branch
        %608 = sbr.rel (%p605) target = $region12
      $region11: #{inversion_plm_forward.1} parent=5 // pred_region
        %s609 = ssub.s32 %s50, 1
        // Predicated region
        $region13: #{inversion_plm_forward.1} parent=11 // pred_check
          %p610 = pneg %p97
        $region14: #{inversion_plm_forward.1} parent=11 // pred_check_branch
          %612 = sbr.rel (%p610) target = $region16
        $region15: #{inversion_plm_forward.1} parent=11 // pred_region
          %s614 = ssub.s32 128, 128
          %615 = vsyncadd [#allocation5], %s614
          %s617 = sshll.u32 [#allocation4], 4
          %s618 = int_to_ptr.vmem [resolvable:$true] %s617
          %620 = dma.hbm_to_vmem [thread:$0]  %s2, 128, %s618, [#allocation5]
        $region16: #{inversion_plm_forward.1} parent=11 // pred_fallthru
          _
        // Predicated region
        $region17: #{inversion_plm_forward.1} parent=11 // pred_check
          %p621 = pneg %p144
        $region18: #{inversion_plm_forward.1} parent=11 // pred_check_branch
          %623 = sbr.rel (%p621) target = $region20
        $region19: #{inversion_plm_forward.1} parent=11 // pred_region
          _
        $region20: #{inversion_plm_forward.1} parent=11 // pred_fallthru
          _
        // Predicated region
        $region21: #{inversion_plm_forward.1} parent=11 // pred_check
          %p624 = pneg %p165
        $region22: #{inversion_plm_forward.1} parent=11 // pred_check_branch
          %626 = sbr.rel (%p624) target = $region24
        $region23: #{inversion_plm_forward.1} parent=11 // pred_region
          %s628 = ssub.s32 16, 16
          %629 = vsyncadd [#allocation8], %s628
          %s631 = sshll.u32 [#allocation7], 4
          %s632 = int_to_ptr.vmem [resolvable:$true] %s631
          %634 = dma.hbm_to_vmem [thread:$0]  %s5, 16, %s632, [#allocation8]
        $region24: #{inversion_plm_forward.1} parent=11 // pred_fallthru
          _
        // Predicated region
        $region25: #{inversion_plm_forward.1} parent=11 // pred_check
          %p635 = pneg %p186
        $region26: #{inversion_plm_forward.1} parent=11 // pred_check_branch
          %637 = sbr.rel (%p635) target = $region28
        $region27: #{inversion_plm_forward.1} parent=11 // pred_region
          _
        $region28: #{inversion_plm_forward.1} parent=11 // pred_fallthru
          _
        // Predicated region
        $region29: #{inversion_plm_forward.1} parent=11 // pred_check
          %p638 = pneg %p207
        $region30: #{inversion_plm_forward.1} parent=11 // pred_check_branch
          %640 = sbr.rel (%p638) target = $region32
        $region31: #{inversion_plm_forward.1} parent=11 // pred_region
          %s642 = ssub.s32 32, 32
          %643 = vsyncadd [#allocation8], %s642
          %s644 = sshll.u32 [#allocation9], 4
          %s645 = int_to_ptr.vmem [resolvable:$true] %s644
          %650 = dma.hbm_to_vmem [thread:$0]  %s7, 32, %s645, [#allocation8], 16, 16, 1
        $region32: #{inversion_plm_forward.1} parent=11 // pred_fallthru
          _
        // Predicated region
        $region33: #{inversion_plm_forward.1} parent=11 // pred_check
          %p651 = pneg %p228
        $region34: #{inversion_plm_forward.1} parent=11 // pred_check_branch
          %653 = sbr.rel (%p651) target = $region36
        $region35: #{inversion_plm_forward.1} parent=11 // pred_region
          _
        $region36: #{inversion_plm_forward.1} parent=11 // pred_fallthru
          _
        // Predicated region
        $region37: #{inversion_plm_forward.1} parent=11 // pred_check
          %p654 = pneg %p249
        $region38: #{inversion_plm_forward.1} parent=11 // pred_check_branch
          %656 = sbr.rel (%p654) target = $region40
        $region39: #{inversion_plm_forward.1} parent=11 // pred_region
          %s658 = ssub.s32 32, 32
          %659 = vsyncadd [#allocation11], %s658
          %s660 = sshll.u32 [#allocation10], 4
          %s661 = int_to_ptr.vmem [resolvable:$true] %s660
          %666 = dma.hbm_to_vmem [thread:$0]  %s9, 32, %s661, [#allocation11], 16, 16, 1
        $region40: #{inversion_plm_forward.1} parent=11 // pred_fallthru
          _
        // Predicated region
        $region41: #{inversion_plm_forward.1} parent=11 // pred_check
          %p667 = pneg %p270
        $region42: #{inversion_plm_forward.1} parent=11 // pred_check_branch
          %669 = sbr.rel (%p667) target = $region44
        $region43: #{inversion_plm_forward.1} parent=11 // pred_region
          %s671 = ssub.s32 32, 32
          %672 = vsyncadd [#allocation11], %s671
          %s673 = sshll.u32 [#allocation12], 4
          %s674 = int_to_ptr.vmem [resolvable:$true] %s673
          %679 = dma.hbm_to_vmem [thread:$0]  %s10, 32, %s674, [#allocation11], 16, 16, 1
        $region44: #{inversion_plm_forward.1} parent=11 // pred_fallthru
          _
        // Predicated region
        $region45: #{inversion_plm_forward.1} parent=11 // pred_check
          %p680 = pneg %p291
        $region46: #{inversion_plm_forward.1} parent=11 // pred_check_branch
          %682 = sbr.rel (%p680) target = $region48
        $region47: #{inversion_plm_forward.1} parent=11 // pred_region
          %s684 = ssub.s32 32, 32
          %685 = vsyncadd [#allocation14], %s684
          %s686 = sshll.u32 [#allocation13], 4
          %s687 = int_to_ptr.vmem [resolvable:$true] %s686
          %692 = dma.hbm_to_vmem [thread:$0]  %s11, 32, %s687, [#allocation14], 16, 16, 1
        $region48: #{inversion_plm_forward.1} parent=11 // pred_fallthru
          _
        // Predicated region
        $region49: #{inversion_plm_forward.1} parent=11 // pred_check
          %p693 = pneg %p312
        $region50: #{inversion_plm_forward.1} parent=11 // pred_check_branch
          %695 = sbr.rel (%p693) target = $region52
        $region51: #{inversion_plm_forward.1} parent=11 // pred_region
          _
        $region52: #{inversion_plm_forward.1} parent=11 // pred_fallthru
          _
        // Predicated region
        $region53: #{inversion_plm_forward.1} parent=11 // pred_check
          %p696 = pneg %p333
        $region54: #{inversion_plm_forward.1} parent=11 // pred_check_branch
          %698 = sbr.rel (%p696) target = $region56
        $region55: #{inversion_plm_forward.1} parent=11 // pred_region
          %s700 = ssub.s32 32, 32
          %701 = vsyncadd [#allocation14], %s700
          %s702 = sshll.u32 [#allocation15], 4
          %s703 = int_to_ptr.vmem [resolvable:$true] %s702
          %708 = dma.hbm_to_vmem [thread:$0]  %s13, 32, %s703, [#allocation14], 16, 16, 1
        $region56: #{inversion_plm_forward.1} parent=11 // pred_fallthru
          _
        // Predicated region
        $region57: #{inversion_plm_forward.1} parent=11 // pred_check
          %p709 = pneg %p354
        $region58: #{inversion_plm_forward.1} parent=11 // pred_check_branch
          %711 = sbr.rel (%p709) target = $region60
        $region59: #{inversion_plm_forward.1} parent=11 // pred_region
          _
        $region60: #{inversion_plm_forward.1} parent=11 // pred_fallthru
          _
        // Predicated region
        $region61: #{inversion_plm_forward.1} parent=11 // pred_check
          %p712 = pneg %p375
        $region62: #{inversion_plm_forward.1} parent=11 // pred_check_branch
          %714 = sbr.rel (%p712) target = $region64
        $region63: #{inversion_plm_forward.1} parent=11 // pred_region
          %s716 = ssub.s32 32, 32
          %717 = vsyncadd [#allocation17], %s716
          %s718 = sshll.u32 [#allocation16], 4
          %s719 = int_to_ptr.vmem [resolvable:$true] %s718
          %724 = dma.hbm_to_vmem [thread:$0]  %s15, 32, %s719, [#allocation17], 16, 16, 1
        $region64: #{inversion_plm_forward.1} parent=11 // pred_fallthru
          _
        // Predicated region
        $region65: #{inversion_plm_forward.1} parent=11 // pred_check
          %p725 = pneg %p396
        $region66: #{inversion_plm_forward.1} parent=11 // pred_check_branch
          %727 = sbr.rel (%p725) target = $region68
        $region67: #{inversion_plm_forward.1} parent=11 // pred_region
          %s729 = ssub.s32 32, 32
          %730 = vsyncadd [#allocation17], %s729
          %s731 = sshll.u32 [#allocation18], 4
          %s732 = int_to_ptr.vmem [resolvable:$true] %s731
          %737 = dma.hbm_to_vmem [thread:$0]  %s16, 32, %s732, [#allocation17], 16, 16, 1
        $region68: #{inversion_plm_forward.1} parent=11 // pred_fallthru
          _
        // Predicated region
        $region69: #{inversion_plm_forward.1} parent=11 // pred_check
          %p738 = pneg %p417
        $region70: #{inversion_plm_forward.1} parent=11 // pred_check_branch
          %740 = sbr.rel (%p738) target = $region72
        $region71: #{inversion_plm_forward.1} parent=11 // pred_region
          %s742 = ssub.s32 32, 32
          %743 = vsyncadd [#allocation20], %s742
          %s744 = sshll.u32 [#allocation19], 4
          %s745 = int_to_ptr.vmem [resolvable:$true] %s744
          %750 = dma.hbm_to_vmem [thread:$0]  %s17, 32, %s745, [#allocation20], 16, 16, 1
        $region72: #{inversion_plm_forward.1} parent=11 // pred_fallthru
          _
        // Predicated region
        $region73: #{inversion_plm_forward.1} parent=11 // pred_check
          %p751 = pneg %p438
        $region74: #{inversion_plm_forward.1} parent=11 // pred_check_branch
          %753 = sbr.rel (%p751) target = $region76
        $region75: #{inversion_plm_forward.1} parent=11 // pred_region
          %s755 = ssub.s32 512, 512
          %756 = vsyncadd [#allocation20], %s755
          %s757 = sshll.u32 [#allocation21], 4
          %s758 = int_to_ptr.vmem [resolvable:$true] %s757
          %763 = dma.hbm_to_vmem [thread:$0]  %s18, 512, %s758, [#allocation20], 128, 128, 8
        $region76: #{inversion_plm_forward.1} parent=11 // pred_fallthru
          _
        // Predicated region
        $region77: #{inversion_plm_forward.1} parent=11 // pred_check
          %p764 = pneg %p459
        $region78: #{inversion_plm_forward.1} parent=11 // pred_check_branch
          %766 = sbr.rel (%p764) target = $region80
        $region79: #{inversion_plm_forward.1} parent=11 // pred_region
          %s768 = ssub.s32 16, 16
          %769 = vsyncadd [#allocation23], %s768
          %s771 = sshll.u32 [#allocation22], 4
          %s772 = int_to_ptr.vmem [resolvable:$true] %s771
          %774 = dma.hbm_to_vmem [thread:$0]  %s19, 16, %s772, [#allocation23]
        $region80: #{inversion_plm_forward.1} parent=11 // pred_fallthru
          _
        // Predicated region
        $region81: #{inversion_plm_forward.1} parent=11 // pred_check
          %p775 = pneg %p480
        $region82: #{inversion_plm_forward.1} parent=11 // pred_check_branch
          %777 = sbr.rel (%p775) target = $region84
        $region83: #{inversion_plm_forward.1} parent=11 // pred_region
          %s779 = ssub.s32 16, 16
          %780 = vsyncadd [#allocation23], %s779
          %s782 = sshll.u32 [#allocation24], 4
          %s783 = int_to_ptr.vmem [resolvable:$true] %s782
          %785 = dma.hbm_to_vmem [thread:$0]  %s20, 16, %s783, [#allocation23]
        $region84: #{inversion_plm_forward.1} parent=11 // pred_fallthru
          _
        // Predicated region
        $region85: #{inversion_plm_forward.1} parent=11 // pred_check
          %p786 = pneg %p501
        $region86: #{inversion_plm_forward.1} parent=11 // pred_check_branch
          %788 = sbr.rel (%p786) target = $region88
        $region87: #{inversion_plm_forward.1} parent=11 // pred_region
          %s790 = ssub.s32 16, 16
          %791 = vsyncadd [#allocation26], %s790
          %s793 = sshll.u32 [#allocation25], 4
          %s794 = int_to_ptr.vmem [resolvable:$true] %s793
          %796 = dma.hbm_to_vmem [thread:$0]  %s21, 16, %s794, [#allocation26]
        $region88: #{inversion_plm_forward.1} parent=11 // pred_fallthru
          _
        // Predicated region
        $region89: #{inversion_plm_forward.1} parent=11 // pred_check
          %p797 = pneg %p522
        $region90: #{inversion_plm_forward.1} parent=11 // pred_check_branch
          %799 = sbr.rel (%p797) target = $region92
        $region91: #{inversion_plm_forward.1} parent=11 // pred_region
          %s801 = ssub.s32 512, 512
          %802 = vsyncadd [#allocation26], %s801
          %s803 = sshll.u32 [#allocation27], 4
          %s804 = int_to_ptr.vmem [resolvable:$true] %s803
          %809 = dma.hbm_to_vmem [thread:$0]  %s22, 512, %s804, [#allocation26], 128, 128, 8
        $region92: #{inversion_plm_forward.1} parent=11 // pred_fallthru
          _
        // Predicated region
        $region93: #{inversion_plm_forward.1} parent=11 // pred_check
          %p810 = pneg %p543
        $region94: #{inversion_plm_forward.1} parent=11 // pred_check_branch
          %812 = sbr.rel (%p810) target = $region96
        $region95: #{inversion_plm_forward.1} parent=11 // pred_region
          %s814 = ssub.s32 16, 16
          %815 = vsyncadd [#allocation29], %s814
          %s817 = sshll.u32 [#allocation28], 4
          %s818 = int_to_ptr.vmem [resolvable:$true] %s817
          %820 = dma.hbm_to_vmem [thread:$0]  %s23, 16, %s818, [#allocation29]
        $region96: #{inversion_plm_forward.1} parent=11 // pred_fallthru
          _
      $region12: #{inversion_plm_forward.1} parent=5 // pred_fallthru
        _
      %p821 = scmp.lt.s32.totalorder %s50, 2
      // Predicated region
      $region97: #{inversion_plm_forward.1} parent=5 // pred_check
        %p822 = pneg %p821
      $region98: #{inversion_plm_forward.1} parent=5 // pred_check_branch
        %824 = sbr.rel (%p822) target = $region100
      $region99: #{inversion_plm_forward.1} parent=5 // pred_region
        // Predicated region
        $region101: #{inversion_plm_forward.1} parent=99 // pred_check
          %p825 = pneg %p70
        $region102: #{inversion_plm_forward.1} parent=99 // pred_check_branch
          %827 = sbr.rel (%p825) target = $region104
        $region103: #{inversion_plm_forward.1} parent=99 // pred_region
          %p828 = scmp.lt.s32.totalorder %s50, 1
          %s829 = scalar_select %p828, %s50, 1
          %s830 = smul.addr %s829, 8
          %s831 = scalar_lea.vmem %s1, %s830
        $region104: #{inversion_plm_forward.1} parent=99 // pred_fallthru
          _
        // Predicated region
        $region105: #{inversion_plm_forward.1} parent=99 // pred_check
          %p832 = pneg %p117
        $region106: #{inversion_plm_forward.1} parent=99 // pred_check_branch
          %834 = sbr.rel (%p832) target = $region108
        $region107: #{inversion_plm_forward.1} parent=99 // pred_region
          %p835 = scmp.lt.s32.totalorder %s50, 1
          %s836 = scalar_select %p835, %s50, 1
          %s837 = scalar_lea.vmem %s3, %s836
        $region108: #{inversion_plm_forward.1} parent=99 // pred_fallthru
          _
      $region100: #{inversion_plm_forward.1} parent=5 // pred_fallthru
        _
      %p838 = scmp.le.s32.totalorder 1, %s50
      %p839 = scmp.lt.s32.totalorder %s50, 3
      %p840 = pnand %p838, %p839
      %p841 = pneg %p840
      // Predicated region
      $region109: #{inversion_plm_forward.1} parent=5 // pred_check
        _
      $region110: #{inversion_plm_forward.1} parent=5 // pred_check_branch
        %843 = sbr.rel (%p840) target = $region112
      $region111: #{inversion_plm_forward.1} parent=5 // pred_region
        %s844 = ssub.s32 %s50, 1
        // Predicated region
        $region113: #{inversion_plm_forward.1} parent=111 // pred_check
          %p845 = pneg %p97
        $region114: #{inversion_plm_forward.1} parent=111 // pred_check_branch
          %847 = sbr.rel (%p845) target = $region116
        $region115: #{inversion_plm_forward.1} parent=111 // pred_region
          %848 = dma.done [#allocation5], 128
        $region116: #{inversion_plm_forward.1} parent=111 // pred_fallthru
          _
        // Predicated region
        $region117: #{inversion_plm_forward.1} parent=111 // pred_check
          %p849 = pneg %p165
        $region118: #{inversion_plm_forward.1} parent=111 // pred_check_branch
          %851 = sbr.rel (%p849) target = $region120
        $region119: #{inversion_plm_forward.1} parent=111 // pred_region
          %852 = dma.done [#allocation8], 16
        $region120: #{inversion_plm_forward.1} parent=111 // pred_fallthru
          _
        // Predicated region
        $region121: #{inversion_plm_forward.1} parent=111 // pred_check
          %p853 = pneg %p207
        $region122: #{inversion_plm_forward.1} parent=111 // pred_check_branch
          %855 = sbr.rel (%p853) target = $region124
        $region123: #{inversion_plm_forward.1} parent=111 // pred_region
          %856 = dma.done [#allocation8], 32
        $region124: #{inversion_plm_forward.1} parent=111 // pred_fallthru
          _
        // Predicated region
        $region125: #{inversion_plm_forward.1} parent=111 // pred_check
          %p857 = pneg %p249
        $region126: #{inversion_plm_forward.1} parent=111 // pred_check_branch
          %859 = sbr.rel (%p857) target = $region128
        $region127: #{inversion_plm_forward.1} parent=111 // pred_region
          %860 = dma.done [#allocation11], 32
        $region128: #{inversion_plm_forward.1} parent=111 // pred_fallthru
          _
        // Predicated region
        $region129: #{inversion_plm_forward.1} parent=111 // pred_check
          %p861 = pneg %p270
        $region130: #{inversion_plm_forward.1} parent=111 // pred_check_branch
          %863 = sbr.rel (%p861) target = $region132
        $region131: #{inversion_plm_forward.1} parent=111 // pred_region
          %864 = dma.done [#allocation11], 32
        $region132: #{inversion_plm_forward.1} parent=111 // pred_fallthru
          _
        // Predicated region
        $region133: #{inversion_plm_forward.1} parent=111 // pred_check
          %p865 = pneg %p291
        $region134: #{inversion_plm_forward.1} parent=111 // pred_check_branch
          %867 = sbr.rel (%p865) target = $region136
        $region135: #{inversion_plm_forward.1} parent=111 // pred_region
          %868 = dma.done [#allocation14], 32
        $region136: #{inversion_plm_forward.1} parent=111 // pred_fallthru
          _
        // Predicated region
        $region137: #{inversion_plm_forward.1} parent=111 // pred_check
          %p869 = pneg %p333
        $region138: #{inversion_plm_forward.1} parent=111 // pred_check_branch
          %871 = sbr.rel (%p869) target = $region140
        $region139: #{inversion_plm_forward.1} parent=111 // pred_region
          %872 = dma.done [#allocation14], 32
        $region140: #{inversion_plm_forward.1} parent=111 // pred_fallthru
          _
        // Predicated region
        $region141: #{inversion_plm_forward.1} parent=111 // pred_check
          %p873 = pneg %p375
        $region142: #{inversion_plm_forward.1} parent=111 // pred_check_branch
          %875 = sbr.rel (%p873) target = $region144
        $region143: #{inversion_plm_forward.1} parent=111 // pred_region
          %876 = dma.done [#allocation17], 32
        $region144: #{inversion_plm_forward.1} parent=111 // pred_fallthru
          _
        // Predicated region
        $region145: #{inversion_plm_forward.1} parent=111 // pred_check
          %p877 = pneg %p396
        $region146: #{inversion_plm_forward.1} parent=111 // pred_check_branch
          %879 = sbr.rel (%p877) target = $region148
        $region147: #{inversion_plm_forward.1} parent=111 // pred_region
          %880 = dma.done [#allocation17], 32
        $region148: #{inversion_plm_forward.1} parent=111 // pred_fallthru
          _
        // Predicated region
        $region149: #{inversion_plm_forward.1} parent=111 // pred_check
          %p881 = pneg %p417
        $region150: #{inversion_plm_forward.1} parent=111 // pred_check_branch
          %883 = sbr.rel (%p881) target = $region152
        $region151: #{inversion_plm_forward.1} parent=111 // pred_region
          %884 = dma.done [#allocation20], 32
        $region152: #{inversion_plm_forward.1} parent=111 // pred_fallthru
          _
        // Predicated region
        $region153: #{inversion_plm_forward.1} parent=111 // pred_check
          %p885 = pneg %p438
        $region154: #{inversion_plm_forward.1} parent=111 // pred_check_branch
          %887 = sbr.rel (%p885) target = $region156
        $region155: #{inversion_plm_forward.1} parent=111 // pred_region
          %888 = dma.done [#allocation20], 512
        $region156: #{inversion_plm_forward.1} parent=111 // pred_fallthru
          _
        // Predicated region
        $region157: #{inversion_plm_forward.1} parent=111 // pred_check
          %p889 = pneg %p459
        $region158: #{inversion_plm_forward.1} parent=111 // pred_check_branch
          %891 = sbr.rel (%p889) target = $region160
        $region159: #{inversion_plm_forward.1} parent=111 // pred_region
          %892 = dma.done [#allocation23], 16
        $region160: #{inversion_plm_forward.1} parent=111 // pred_fallthru
          _
        // Predicated region
        $region161: #{inversion_plm_forward.1} parent=111 // pred_check
          %p893 = pneg %p480
        $region162: #{inversion_plm_forward.1} parent=111 // pred_check_branch
          %895 = sbr.rel (%p893) target = $region164
        $region163: #{inversion_plm_forward.1} parent=111 // pred_region
          %896 = dma.done [#allocation23], 16
        $region164: #{inversion_plm_forward.1} parent=111 // pred_fallthru
          _
        // Predicated region
        $region165: #{inversion_plm_forward.1} parent=111 // pred_check
          %p897 = pneg %p501
        $region166: #{inversion_plm_forward.1} parent=111 // pred_check_branch
          %899 = sbr.rel (%p897) target = $region168
        $region167: #{inversion_plm_forward.1} parent=111 // pred_region
          %900 = dma.done [#allocation26], 16
        $region168: #{inversion_plm_forward.1} parent=111 // pred_fallthru
          _
        // Predicated region
        $region169: #{inversion_plm_forward.1} parent=111 // pred_check
          %p901 = pneg %p522
        $region170: #{inversion_plm_forward.1} parent=111 // pred_check_branch
          %903 = sbr.rel (%p901) target = $region172
        $region171: #{inversion_plm_forward.1} parent=111 // pred_region
          %904 = dma.done [#allocation26], 512
        $region172: #{inversion_plm_forward.1} parent=111 // pred_fallthru
          _
        // Predicated region
        $region173: #{inversion_plm_forward.1} parent=111 // pred_check
          %p905 = pneg %p543
        $region174: #{inversion_plm_forward.1} parent=111 // pred_check_branch
          %907 = sbr.rel (%p905) target = $region176
        $region175: #{inversion_plm_forward.1} parent=111 // pred_region
          %908 = dma.done [#allocation29], 16
        $region176: #{inversion_plm_forward.1} parent=111 // pred_fallthru
          _
        %p909 = scmp.lt.s32.totalorder %s55, 1
        %s910 = scalar_select %p909, %s55, 1
        %s911 = smul.addr %s910, 8
        %s912 = scalar_lea.vmem %s1, %s911
        %p913 = pneg %p76
        %p914 = pneg %p73
        %p915 = pneg %p97
        %p916 = pneg %p94
        %p917 = scmp.lt.s32.totalorder %s55, 1
        %s918 = scalar_select %p917, %s55, 1
        %s919 = scalar_lea.vmem %s3, %s918
        %p920 = pneg %p123
        %p921 = pneg %p120
        %p922 = pneg %p144
        %p923 = pneg %p141
        %p924 = pneg %p165
        %p925 = pneg %p162
        %p926 = pneg %p186
        %p927 = pneg %p183
        %p928 = pneg %p207
        %p929 = pneg %p204
        %p930 = pneg %p228
        %p931 = pneg %p225
        %p932 = pneg %p249
        %p933 = pneg %p246
        %p934 = pneg %p270
        %p935 = pneg %p267
        %p936 = pneg %p291
        %p937 = pneg %p288
        %p938 = pneg %p312
        %p939 = pneg %p309
        %p940 = pneg %p333
        %p941 = pneg %p330
        %p942 = pneg %p354
        %p943 = pneg %p351
        %p944 = pneg %p375
        %p945 = pneg %p372
        %p946 = pneg %p396
        %p947 = pneg %p393
        %p948 = pneg %p417
        %p949 = pneg %p414
        %p950 = pneg %p438
        %p951 = pneg %p435
        %p952 = pneg %p459
        %p953 = pneg %p456
        %p954 = pneg %p480
        %p955 = pneg %p477
        %p956 = pneg %p501
        %p957 = pneg %p498
        %p958 = pneg %p522
        %p959 = pneg %p519
        %p960 = pneg %p543
        %p961 = pneg %p540
        %p962 = pneg %p569
        %p963 = pneg %p566
        %s964 = sand.u32 %s556, 1
        %s965 = scalar_lea.sflag [#allocation6], %s964
        %s966 = sand.u32 %s556, 1
        %s967 = smul.addr %s966, 8
        %s968 = scalar_lea.vmem [#allocation30], %s967
        %p969 = pneg %p595
        %p970 = pneg %p592
        %p971 = scmp.lt.s32.totalorder %s55, 1
        %s972 = scalar_select %p971, %s55, 1
        %s973 = scalar_lea.vmem %s25, %s972
        %p974 = scmp.lt.s32.totalorder %s55, 1
        %s975 = scalar_select %p974, %s55, 1
        %s976 = smul.addr %s975, 8
        %s977 = scalar_lea.vmem %s1, %s976
        %p978 = scmp.lt.s32.totalorder %s55, 1
        %s979 = scalar_select %p978, %s55, 1
        %s980 = scalar_lea.vmem %s3, %s979
        %p981 = scmp.lt.s32.totalorder %s55, 1
        %s982 = scalar_select %p981, %s55, 1
        %s983 = scalar_lea.vmem %s25, %s982
        %v984 = vld [vmem:[%s977] sm:$0xff]
        %v985 = vld [vmem:[#allocation4] sm:$0xff]
        %v986 = vadd.f32 %v984, %v985
        %v987 = vld [vmem:[%s4] sm:$0x1]
        %v988 = vld [vmem:[#allocation7] sm:$0x1]
        %vm989 = vcmask 261120
        %v990 = vsel %vm989, %v986, 0.0
        %991 = vadd.xlane.f32.xlu0 %v990
        %v992 = vpop.xlane.xlu0 %991
        %v993 = vrcp.pop 32.0
        %v994 = vmul.f32 %v992, %v993
        %v995 = vsub.f32 %v986, %v994
        %v996 = vmul.f32 %v995, %v995
        %v997 = vsel %vm989, %v996, 0.0
        %998 = vadd.xlane.f32.xlu0 %v997
        %v999 = vpop.xlane.xlu0 %998
        %v1000 = vmul.f32 %v999, %v993
        %v1001 = vadd.f32 %v1000, 1e-12
        %v1002 = vrsqrt.pop %v1001
        %v1003 = vmul.f32 %v995, %v1002
        %v1005 = vlaneseq
        %v1006 = vshrl.u32 %v1005, 7
        %v1007 = vsub.s32 0, %v1006
        %v1008 = vrot.slane %v987, %v1007
        %v1010 = vmul.f32 %v1003, %v1008
        %v1012 = vlaneseq
        %v1013 = vshrl.u32 %v1012, 7
        %v1014 = vsub.s32 0, %v1013
        %v1015 = vrot.slane %v988, %v1014
        %v1017 = vadd.f32 %v1010, %v1015
        %v1018 = vld [vmem:[%s980] sm:$0x1]
        %v1019 = vld [vmem:[%s6] sm:$0xff]
        %v1020 = vld [vmem:[%s6 + $0x8] sm:$0xff]
        %v1021 = vld [vmem:[%s6 + $0x10] sm:$0xff]
        %v1022 = vld [vmem:[%s6 + $0x18] sm:$0xff]
        %v1023 = vld [vmem:[#allocation9] sm:$0x1]
        %v1025 = vlaneseq
        %v1026 = vshrl.u32 %v1025, 7
        %v1027 = vsub.s32 0, %v1026
        %v1028 = vrot.slane %v1023, %v1027
        %v1031 = vsel %vm989, %v1017, 0
        %1033 = vmatprep.subr.mxu0 0.0
        %1034 = vmatpush1.msra.mxu0 %v1019
        %1035 = vmatprep.subr.mxu0 0.0
        %1036 = vmatpush1.msra.mxu0 %v1020
        %1037 = vmatprep.subr.mxu0 0.0
        %1038 = vmatpush1.msra.mxu0 %v1021
        %1039 = vmatprep.subr.mxu0 0.0
        %1040 = vmatpush1.msra.mxu0 %v1022
        %1041 = vmatprep.subr.mxu0 0.0
        %1042 = vmatpush1.msra.mxu0 0.0
        %1043 = vmatprep.subr.mxu0 0.0
        %1044 = vmatpush1.msra.mxu0 0.0
        %1045 = vmatprep.subr.mxu0 0.0
        %1046 = vmatpush1.msra.mxu0 0.0
        %1047 = vmatprep.subr.mxu0 0.0
        %1048 = vmatpush1.msra.mxu0 0.0
        %1049 = vmatprep.subr.mxu0 0.0
        %1050 = vmatpush1.msra.mxu0 0.0
        %1051 = vmatprep.subr.mxu0 0.0
        %1052 = vmatpush1.msra.mxu0 0.0
        %1053 = vmatprep.subr.mxu0 0.0
        %1054 = vmatpush1.msra.mxu0 0.0
        %1055 = vmatprep.subr.mxu0 0.0
        %1056 = vmatpush1.msra.mxu0 0.0
        %1057 = vmatprep.subr.mxu0 0.0
        %1058 = vmatpush1.msra.mxu0 0.0
        %1059 = vmatprep.subr.mxu0 0.0
        %1060 = vmatpush1.msra.mxu0 0.0
        %1061 = vmatprep.subr.mxu0 0.0
        %1062 = vmatpush1.msra.mxu0 0.0
        %1063 = vmatprep.subr.mxu0 0.0
        %1064 = vmatpush1.msra.mxu0 0.0
        %1065 = vmatprep.subr.mxu0 0.0
        %1066 = vmatpush1.msra.mxu0 0.0
        %1067 = vmatprep.subr.mxu0 0.0
        %1068 = vmatpush1.msra.mxu0 0.0
        %1069 = vmatprep.subr.mxu0 0.0
        %1070 = vmatpush1.msra.mxu0 0.0
        %1071 = vmatprep.subr.mxu0 0.0
        %1072 = vmatpush1.msra.mxu0 0.0
        %1073 = vmatprep.subr.mxu0 0.0
        %1074 = vmatpush1.msra.mxu0 0.0
        %1075 = vmatprep.subr.mxu0 0.0
        %1076 = vmatpush1.msra.mxu0 0.0
        %1077 = vmatprep.subr.mxu0 0.0
        %1078 = vmatpush1.msra.mxu0 0.0
        %1079 = vmatprep.subr.mxu0 0.0
        %1080 = vmatpush1.msra.mxu0 0.0
        %1081 = vmatprep.subr.mxu0 0.0
        %1082 = vmatpush1.msra.mxu0 0.0
        %1083 = vmatprep.subr.mxu0 0.0
        %1084 = vmatpush1.msra.mxu0 0.0
        %1085 = vmatprep.subr.mxu0 0.0
        %1086 = vmatpush1.msra.mxu0 0.0
        %1087 = vmatprep.subr.mxu0 0.0
        %1088 = vmatpush1.msra.mxu0 0.0
        %1089 = vmatprep.subr.mxu0 0.0
        %1090 = vmatpush1.msra.mxu0 0.0
        %1091 = vmatprep.subr.mxu0 0.0
        %1092 = vmatpush1.msra.mxu0 0.0
        %1093 = vmatprep.subr.mxu0 0.0
        %1094 = vmatpush1.msra.mxu0 0.0
        %1095 = vmatprep.subr.mxu0 0.0
        %1096 = vmatpush1.msra.mxu0 0.0
        %1097 = vmatprep.mubr.f32.mxu0 0.0
        %1098 = vmatmul.mubr.f32.gmra.mrb[0].mxu0 %v1031
        %v1099 = vpop.f32.mrb[0].mxu0
        %v1100 = vadd.f32 %v1028, %v1099
        %v1101 = vpop.f32.mrb[0].mxu0
        %1102 = vdwg.mxu0
        %1104 = vrot.lane.b32.xlu0 %v1100, 96
        %v1105 = vpop.permute.xlu0 %1104
        %vm1106 = vcmask 64512
        %v1107 = vsel %vm1106, %v1100, 0
        %v1109 = vsel %vm1106, %v1105, 0
        %1111 = vmatprep.subr.mxu0 0.0
        %1112 = vmatpush1.xpose.msra.mxu0 %v1109
        %1113 = vmatprep.subr.mxu0 0.0
        %1114 = vmatpush1.xpose.msra.mxu0 0.0
        %1115 = vmatprep.subr.mxu0 0.0
        %1116 = vmatpush1.xpose.msra.mxu0 0.0
        %1117 = vmatprep.subr.mxu0 0.0
        %1118 = vmatpush1.xpose.msra.mxu0 0.0
        %1119 = vmatprep.subr.mxu0 0.0
        %1120 = vmatpush1.xpose.msra.mxu0 0.0
        %1121 = vmatprep.subr.mxu0 0.0
        %1122 = vmatpush1.xpose.msra.mxu0 0.0
        %1123 = vmatprep.subr.mxu0 0.0
        %1124 = vmatpush1.xpose.msra.mxu0 0.0
        %1125 = vmatprep.subr.mxu0 0.0
        %1126 = vmatpush1.xpose.msra.mxu0 0.0
        %1127 = vmatprep.subr.mxu0 0.0
        %1128 = vmatpush1.xpose.msra.mxu0 0.0
        %1129 = vmatprep.subr.mxu0 0.0
        %1130 = vmatpush1.xpose.msra.mxu0 0.0
        %1131 = vmatprep.subr.mxu0 0.0
        %1132 = vmatpush1.xpose.msra.mxu0 0.0
        %1133 = vmatprep.subr.mxu0 0.0
        %1134 = vmatpush1.xpose.msra.mxu0 0.0
        %1135 = vmatprep.subr.mxu0 0.0
        %1136 = vmatpush1.xpose.msra.mxu0 0.0
        %1137 = vmatprep.subr.mxu0 0.0
        %1138 = vmatpush1.xpose.msra.mxu0 0.0
        %1139 = vmatprep.subr.mxu0 0.0
        %1140 = vmatpush1.xpose.msra.mxu0 0.0
        %1141 = vmatprep.subr.mxu0 0.0
        %1142 = vmatpush1.xpose.msra.mxu0 0.0
        %1143 = vmatprep.subr.mxu0 0.0
        %1144 = vmatpush1.xpose.msra.mxu0 0.0
        %1145 = vmatprep.subr.mxu0 0.0
        %1146 = vmatpush1.xpose.msra.mxu0 0.0
        %1147 = vmatprep.subr.mxu0 0.0
        %1148 = vmatpush1.xpose.msra.mxu0 0.0
        %1149 = vmatprep.subr.mxu0 0.0
        %1150 = vmatpush1.xpose.msra.mxu0 0.0
        %1151 = vmatprep.subr.mxu0 0.0
        %1152 = vmatpush1.xpose.msra.mxu0 0.0
        %1153 = vmatprep.subr.mxu0 0.0
        %1154 = vmatpush1.xpose.msra.mxu0 0.0
        %1155 = vmatprep.subr.mxu0 0.0
        %1156 = vmatpush1.xpose.msra.mxu0 0.0
        %1157 = vmatprep.subr.mxu0 0.0
        %1158 = vmatpush1.xpose.msra.mxu0 0.0
        %1159 = vmatprep.subr.mxu0 0.0
        %1160 = vmatpush1.xpose.msra.mxu0 0.0
        %1161 = vmatprep.subr.mxu0 0.0
        %1162 = vmatpush1.xpose.msra.mxu0 0.0
        %1163 = vmatprep.subr.mxu0 0.0
        %1164 = vmatpush1.xpose.msra.mxu0 0.0
        %1165 = vmatprep.subr.mxu0 0.0
        %1166 = vmatpush1.xpose.msra.mxu0 0.0
        %1167 = vmatprep.subr.mxu0 0.0
        %1168 = vmatpush1.xpose.msra.mxu0 0.0
        %1169 = vmatprep.subr.mxu0 0.0
        %1170 = vmatpush1.xpose.msra.mxu0 0.0
        %1171 = vmatprep.subr.mxu0 0.0
        %1172 = vmatpush1.xpose.msra.mxu0 0.0
        %1173 = vmatprep.subr.mxu0 0.0
        %1174 = vmatpush1.xpose.msra.mxu0 0.0
        %1175 = vmatprep.mubr.f32.mxu0 0.0
        %1176 = vmatmul.mubr.f32.gmra.mrb[0].mxu0 %v1107
        %v1177 = vpop.f32.mrb[0].mxu0
        %v1178 = vadd.f32 0.0, %v1177
        %v1179 = vpop.f32.mrb[0].mxu0
        %1180 = vdwg.mxu0
        %v1181 = vmul.f32 %v1178, 0.35355338
        %v1183 = vlaneseq
        %v1184 = vshrl.u32 %v1183, 7
        %v1185 = vsub.s32 0, %v1184
        %v1186 = vrot.slane %v1018, %v1185
        %v1188 = vadd.f32 %v1181, %v1186
        %v1189 = vsel %vm1106, %v1188, -inf
        %1190 = vmax.xlane.f32.xlu0 %v1189
        %v1191 = vpop.xlane.xlu0 %1190
        %v1192 = vsub.f32 %v1188, %v1191
        %v1193 = vmul.f32 %v1192, 1.442695
        %v1194 = vpow.pop %v1193
        %v1195 = vsel %vm1106, %v1194, 0.0
        %1196 = vadd.xlane.f32.xlu0 %v1195
        %v1197 = vpop.xlane.xlu0 %1196
        %v1198 = vrcp.pop %v1197
        %v1199 = vmul.f32 %v1194, %v1198
        %1200 = vrot.lane.b32.xlu0 %v1100, 64
        %v1201 = vpop.permute.xlu0 %1200
        %v1204 = vsel %vm1106, %v1199, 0
        %1206 = vmatprep.subr.mxu0 0.0
        %1207 = vmatpush1.msra.mxu0 %v1201
        %1208 = vmatprep.subr.mxu0 0.0
        %1209 = vmatpush1.msra.mxu0 0.0
        %1210 = vmatprep.subr.mxu0 0.0
        %1211 = vmatpush1.msra.mxu0 0.0
        %1212 = vmatprep.subr.mxu0 0.0
        %1213 = vmatpush1.msra.mxu0 0.0
        %1214 = vmatprep.subr.mxu0 0.0
        %1215 = vmatpush1.msra.mxu0 0.0
        %1216 = vmatprep.subr.mxu0 0.0
        %1217 = vmatpush1.msra.mxu0 0.0
        %1218 = vmatprep.subr.mxu0 0.0
        %1219 = vmatpush1.msra.mxu0 0.0
        %1220 = vmatprep.subr.mxu0 0.0
        %1221 = vmatpush1.msra.mxu0 0.0
        %1222 = vmatprep.subr.mxu0 0.0
        %1223 = vmatpush1.msra.mxu0 0.0
        %1224 = vmatprep.subr.mxu0 0.0
        %1225 = vmatpush1.msra.mxu0 0.0
        %1226 = vmatprep.subr.mxu0 0.0
        %1227 = vmatpush1.msra.mxu0 0.0
        %1228 = vmatprep.subr.mxu0 0.0
        %1229 = vmatpush1.msra.mxu0 0.0
        %1230 = vmatprep.subr.mxu0 0.0
        %1231 = vmatpush1.msra.mxu0 0.0
        %1232 = vmatprep.subr.mxu0 0.0
        %1233 = vmatpush1.msra.mxu0 0.0
        %1234 = vmatprep.subr.mxu0 0.0
        %1235 = vmatpush1.msra.mxu0 0.0
        %1236 = vmatprep.subr.mxu0 0.0
        %1237 = vmatpush1.msra.mxu0 0.0
        %1238 = vmatprep.subr.mxu0 0.0
        %1239 = vmatpush1.msra.mxu0 0.0
        %1240 = vmatprep.subr.mxu0 0.0
        %1241 = vmatpush1.msra.mxu0 0.0
        %1242 = vmatprep.subr.mxu0 0.0
        %1243 = vmatpush1.msra.mxu0 0.0
        %1244 = vmatprep.subr.mxu0 0.0
        %1245 = vmatpush1.msra.mxu0 0.0
        %1246 = vmatprep.subr.mxu0 0.0
        %1247 = vmatpush1.msra.mxu0 0.0
        %1248 = vmatprep.subr.mxu0 0.0
        %1249 = vmatpush1.msra.mxu0 0.0
        %1250 = vmatprep.subr.mxu0 0.0
        %1251 = vmatpush1.msra.mxu0 0.0
        %1252 = vmatprep.subr.mxu0 0.0
        %1253 = vmatpush1.msra.mxu0 0.0
        %1254 = vmatprep.subr.mxu0 0.0
        %1255 = vmatpush1.msra.mxu0 0.0
        %1256 = vmatprep.subr.mxu0 0.0
        %1257 = vmatpush1.msra.mxu0 0.0
        %1258 = vmatprep.subr.mxu0 0.0
        %1259 = vmatpush1.msra.mxu0 0.0
        %1260 = vmatprep.subr.mxu0 0.0
        %1261 = vmatpush1.msra.mxu0 0.0
        %1262 = vmatprep.subr.mxu0 0.0
        %1263 = vmatpush1.msra.mxu0 0.0
        %1264 = vmatprep.subr.mxu0 0.0
        %1265 = vmatpush1.msra.mxu0 0.0
        %1266 = vmatprep.subr.mxu0 0.0
        %1267 = vmatpush1.msra.mxu0 0.0
        %1268 = vmatprep.subr.mxu0 0.0
        %1269 = vmatpush1.msra.mxu0 0.0
        %1270 = vmatprep.mubr.f32.mxu0 0.0
        %1271 = vmatmul.mubr.f32.gmra.mrb[0].mxu0 %v1204
        %v1272 = vpop.f32.mrb[0].mxu0
        %v1273 = vadd.f32 0.0, %v1272
        %v1274 = vpop.f32.mrb[0].mxu0
        %1275 = vdwg.mxu0
        %1276 = vrot.lane.b32.xlu0 %v1100, 120
        %v1277 = vpop.permute.xlu0 %1276
        %1278 = vrot.lane.b32.xlu0 %v1100, 88
        %v1279 = vpop.permute.xlu0 %1278
        %v1280 = vsel %vm1106, %v1277, 0
        %v1282 = vsel %vm1106, %v1279, 0
        %1284 = vmatprep.subr.mxu0 0.0
        %1285 = vmatpush1.xpose.msra.mxu0 %v1282
        %1286 = vmatprep.subr.mxu0 0.0
        %1287 = vmatpush1.xpose.msra.mxu0 0.0
        %1288 = vmatprep.subr.mxu0 0.0
        %1289 = vmatpush1.xpose.msra.mxu0 0.0
        %1290 = vmatprep.subr.mxu0 0.0
        %1291 = vmatpush1.xpose.msra.mxu0 0.0
        %1292 = vmatprep.subr.mxu0 0.0
        %1293 = vmatpush1.xpose.msra.mxu0 0.0
        %1294 = vmatprep.subr.mxu0 0.0
        %1295 = vmatpush1.xpose.msra.mxu0 0.0
        %1296 = vmatprep.subr.mxu0 0.0
        %1297 = vmatpush1.xpose.msra.mxu0 0.0
        %1298 = vmatprep.subr.mxu0 0.0
        %1299 = vmatpush1.xpose.msra.mxu0 0.0
        %1300 = vmatprep.subr.mxu0 0.0
        %1301 = vmatpush1.xpose.msra.mxu0 0.0
        %1302 = vmatprep.subr.mxu0 0.0
        %1303 = vmatpush1.xpose.msra.mxu0 0.0
        %1304 = vmatprep.subr.mxu0 0.0
        %1305 = vmatpush1.xpose.msra.mxu0 0.0
        %1306 = vmatprep.subr.mxu0 0.0
        %1307 = vmatpush1.xpose.msra.mxu0 0.0
        %1308 = vmatprep.subr.mxu0 0.0
        %1309 = vmatpush1.xpose.msra.mxu0 0.0
        %1310 = vmatprep.subr.mxu0 0.0
        %1311 = vmatpush1.xpose.msra.mxu0 0.0
        %1312 = vmatprep.subr.mxu0 0.0
        %1313 = vmatpush1.xpose.msra.mxu0 0.0
        %1314 = vmatprep.subr.mxu0 0.0
        %1315 = vmatpush1.xpose.msra.mxu0 0.0
        %1316 = vmatprep.subr.mxu0 0.0
        %1317 = vmatpush1.xpose.msra.mxu0 0.0
        %1318 = vmatprep.subr.mxu0 0.0
        %1319 = vmatpush1.xpose.msra.mxu0 0.0
        %1320 = vmatprep.subr.mxu0 0.0
        %1321 = vmatpush1.xpose.msra.mxu0 0.0
        %1322 = vmatprep.subr.mxu0 0.0
        %1323 = vmatpush1.xpose.msra.mxu0 0.0
        %1324 = vmatprep.subr.mxu0 0.0
        %1325 = vmatpush1.xpose.msra.mxu0 0.0
        %1326 = vmatprep.subr.mxu0 0.0
        %1327 = vmatpush1.xpose.msra.mxu0 0.0
        %1328 = vmatprep.subr.mxu0 0.0
        %1329 = vmatpush1.xpose.msra.mxu0 0.0
        %1330 = vmatprep.subr.mxu0 0.0
        %1331 = vmatpush1.xpose.msra.mxu0 0.0
        %1332 = vmatprep.subr.mxu0 0.0
        %1333 = vmatpush1.xpose.msra.mxu0 0.0
        %1334 = vmatprep.subr.mxu0 0.0
        %1335 = vmatpush1.xpose.msra.mxu0 0.0
        %1336 = vmatprep.subr.mxu0 0.0
        %1337 = vmatpush1.xpose.msra.mxu0 0.0
        %1338 = vmatprep.subr.mxu0 0.0
        %1339 = vmatpush1.xpose.msra.mxu0 0.0
        %1340 = vmatprep.subr.mxu0 0.0
        %1341 = vmatpush1.xpose.msra.mxu0 0.0
        %1342 = vmatprep.subr.mxu0 0.0
        %1343 = vmatpush1.xpose.msra.mxu0 0.0
        %1344 = vmatprep.subr.mxu0 0.0
        %1345 = vmatpush1.xpose.msra.mxu0 0.0
        %1346 = vmatprep.subr.mxu0 0.0
        %1347 = vmatpush1.xpose.msra.mxu0 0.0
        %1348 = vmatprep.mubr.f32.mxu0 0.0
        %1349 = vmatmul.mubr.f32.gmra.mrb[0].mxu0 %v1280
        %v1350 = vpop.f32.mrb[0].mxu0
        %v1351 = vadd.f32 0.0, %v1350
        %v1352 = vpop.f32.mrb[0].mxu0
        %1353 = vdwg.mxu0
        %v1354 = vmul.f32 %v1351, 0.35355338
        %v1355 = vadd.f32 %v1354, %v1186
        %v1356 = vsel %vm1106, %v1355, -inf
        %1357 = vmax.xlane.f32.xlu0 %v1356
        %v1358 = vpop.xlane.xlu0 %1357
        %v1359 = vsub.f32 %v1355, %v1358
        %v1360 = vmul.f32 %v1359, 1.442695
        %v1361 = vpow.pop %v1360
        %v1362 = vsel %vm1106, %v1361, 0.0
        %1363 = vadd.xlane.f32.xlu0 %v1362
        %v1364 = vpop.xlane.xlu0 %1363
        %v1365 = vrcp.pop %v1364
        %v1366 = vmul.f32 %v1361, %v1365
        %1367 = vrot.lane.b32.xlu0 %v1100, 56
        %v1368 = vpop.permute.xlu0 %1367
        %v1371 = vsel %vm1106, %v1366, 0
        %1373 = vmatprep.subr.mxu0 0.0
        %1374 = vmatpush1.msra.mxu0 %v1368
        %1375 = vmatprep.subr.mxu0 0.0
        %1376 = vmatpush1.msra.mxu0 0.0
        %1377 = vmatprep.subr.mxu0 0.0
        %1378 = vmatpush1.msra.mxu0 0.0
        %1379 = vmatprep.subr.mxu0 0.0
        %1380 = vmatpush1.msra.mxu0 0.0
        %1381 = vmatprep.subr.mxu0 0.0
        %1382 = vmatpush1.msra.mxu0 0.0
        %1383 = vmatprep.subr.mxu0 0.0
        %1384 = vmatpush1.msra.mxu0 0.0
        %1385 = vmatprep.subr.mxu0 0.0
        %1386 = vmatpush1.msra.mxu0 0.0
        %1387 = vmatprep.subr.mxu0 0.0
        %1388 = vmatpush1.msra.mxu0 0.0
        %1389 = vmatprep.subr.mxu0 0.0
        %1390 = vmatpush1.msra.mxu0 0.0
        %1391 = vmatprep.subr.mxu0 0.0
        %1392 = vmatpush1.msra.mxu0 0.0
        %1393 = vmatprep.subr.mxu0 0.0
        %1394 = vmatpush1.msra.mxu0 0.0
        %1395 = vmatprep.subr.mxu0 0.0
        %1396 = vmatpush1.msra.mxu0 0.0
        %1397 = vmatprep.subr.mxu0 0.0
        %1398 = vmatpush1.msra.mxu0 0.0
        %1399 = vmatprep.subr.mxu0 0.0
        %1400 = vmatpush1.msra.mxu0 0.0
        %1401 = vmatprep.subr.mxu0 0.0
        %1402 = vmatpush1.msra.mxu0 0.0
        %1403 = vmatprep.subr.mxu0 0.0
        %1404 = vmatpush1.msra.mxu0 0.0
        %1405 = vmatprep.subr.mxu0 0.0
        %1406 = vmatpush1.msra.mxu0 0.0
        %1407 = vmatprep.subr.mxu0 0.0
        %1408 = vmatpush1.msra.mxu0 0.0
        %1409 = vmatprep.subr.mxu0 0.0
        %1410 = vmatpush1.msra.mxu0 0.0
        %1411 = vmatprep.subr.mxu0 0.0
        %1412 = vmatpush1.msra.mxu0 0.0
        %1413 = vmatprep.subr.mxu0 0.0
        %1414 = vmatpush1.msra.mxu0 0.0
        %1415 = vmatprep.subr.mxu0 0.0
        %1416 = vmatpush1.msra.mxu0 0.0
        %1417 = vmatprep.subr.mxu0 0.0
        %1418 = vmatpush1.msra.mxu0 0.0
        %1419 = vmatprep.subr.mxu0 0.0
        %1420 = vmatpush1.msra.mxu0 0.0
        %1421 = vmatprep.subr.mxu0 0.0
        %1422 = vmatpush1.msra.mxu0 0.0
        %1423 = vmatprep.subr.mxu0 0.0
        %1424 = vmatpush1.msra.mxu0 0.0
        %1425 = vmatprep.subr.mxu0 0.0
        %1426 = vmatpush1.msra.mxu0 0.0
        %1427 = vmatprep.subr.mxu0 0.0
        %1428 = vmatpush1.msra.mxu0 0.0
        %1429 = vmatprep.subr.mxu0 0.0
        %1430 = vmatpush1.msra.mxu0 0.0
        %1431 = vmatprep.subr.mxu0 0.0
        %1432 = vmatpush1.msra.mxu0 0.0
        %1433 = vmatprep.subr.mxu0 0.0
        %1434 = vmatpush1.msra.mxu0 0.0
        %1435 = vmatprep.subr.mxu0 0.0
        %1436 = vmatpush1.msra.mxu0 0.0
        %1437 = vmatprep.mubr.f32.mxu0 0.0
        %1438 = vmatmul.mubr.f32.gmra.mrb[0].mxu0 %v1371
        %v1439 = vpop.f32.mrb[0].mxu0
        %v1440 = vadd.f32 0.0, %v1439
        %v1441 = vpop.f32.mrb[0].mxu0
        %1442 = vdwg.mxu0
        %1443 = vrot.lane.b32.xlu0 %v1100, 112
        %v1444 = vpop.permute.xlu0 %1443
        %1445 = vrot.lane.b32.xlu0 %v1100, 80
        %v1446 = vpop.permute.xlu0 %1445
        %v1447 = vsel %vm1106, %v1444, 0
        %v1449 = vsel %vm1106, %v1446, 0
        %1451 = vmatprep.subr.mxu0 0.0
        %1452 = vmatpush1.xpose.msra.mxu0 %v1449
        %1453 = vmatprep.subr.mxu0 0.0
        %1454 = vmatpush1.xpose.msra.mxu0 0.0
        %1455 = vmatprep.subr.mxu0 0.0
        %1456 = vmatpush1.xpose.msra.mxu0 0.0
        %1457 = vmatprep.subr.mxu0 0.0
        %1458 = vmatpush1.xpose.msra.mxu0 0.0
        %1459 = vmatprep.subr.mxu0 0.0
        %1460 = vmatpush1.xpose.msra.mxu0 0.0
        %1461 = vmatprep.subr.mxu0 0.0
        %1462 = vmatpush1.xpose.msra.mxu0 0.0
        %1463 = vmatprep.subr.mxu0 0.0
        %1464 = vmatpush1.xpose.msra.mxu0 0.0
        %1465 = vmatprep.subr.mxu0 0.0
        %1466 = vmatpush1.xpose.msra.mxu0 0.0
        %1467 = vmatprep.subr.mxu0 0.0
        %1468 = vmatpush1.xpose.msra.mxu0 0.0
        %1469 = vmatprep.subr.mxu0 0.0
        %1470 = vmatpush1.xpose.msra.mxu0 0.0
        %1471 = vmatprep.subr.mxu0 0.0
        %1472 = vmatpush1.xpose.msra.mxu0 0.0
        %1473 = vmatprep.subr.mxu0 0.0
        %1474 = vmatpush1.xpose.msra.mxu0 0.0
        %1475 = vmatprep.subr.mxu0 0.0
        %1476 = vmatpush1.xpose.msra.mxu0 0.0
        %1477 = vmatprep.subr.mxu0 0.0
        %1478 = vmatpush1.xpose.msra.mxu0 0.0
        %1479 = vmatprep.subr.mxu0 0.0
        %1480 = vmatpush1.xpose.msra.mxu0 0.0
        %1481 = vmatprep.subr.mxu0 0.0
        %1482 = vmatpush1.xpose.msra.mxu0 0.0
        %1483 = vmatprep.subr.mxu0 0.0
        %1484 = vmatpush1.xpose.msra.mxu0 0.0
        %1485 = vmatprep.subr.mxu0 0.0
        %1486 = vmatpush1.xpose.msra.mxu0 0.0
        %1487 = vmatprep.subr.mxu0 0.0
        %1488 = vmatpush1.xpose.msra.mxu0 0.0
        %1489 = vmatprep.subr.mxu0 0.0
        %1490 = vmatpush1.xpose.msra.mxu0 0.0
        %1491 = vmatprep.subr.mxu0 0.0
        %1492 = vmatpush1.xpose.msra.mxu0 0.0
        %1493 = vmatprep.subr.mxu0 0.0
        %1494 = vmatpush1.xpose.msra.mxu0 0.0
        %1495 = vmatprep.subr.mxu0 0.0
        %1496 = vmatpush1.xpose.msra.mxu0 0.0
        %1497 = vmatprep.subr.mxu0 0.0
        %1498 = vmatpush1.xpose.msra.mxu0 0.0
        %1499 = vmatprep.subr.mxu0 0.0
        %1500 = vmatpush1.xpose.msra.mxu0 0.0
        %1501 = vmatprep.subr.mxu0 0.0
        %1502 = vmatpush1.xpose.msra.mxu0 0.0
        %1503 = vmatprep.subr.mxu0 0.0
        %1504 = vmatpush1.xpose.msra.mxu0 0.0
        %1505 = vmatprep.subr.mxu0 0.0
        %1506 = vmatpush1.xpose.msra.mxu0 0.0
        %1507 = vmatprep.subr.mxu0 0.0
        %1508 = vmatpush1.xpose.msra.mxu0 0.0
        %1509 = vmatprep.subr.mxu0 0.0
        %1510 = vmatpush1.xpose.msra.mxu0 0.0
        %1511 = vmatprep.subr.mxu0 0.0
        %1512 = vmatpush1.xpose.msra.mxu0 0.0
        %1513 = vmatprep.subr.mxu0 0.0
        %1514 = vmatpush1.xpose.msra.mxu0 0.0
        %1515 = vmatprep.mubr.f32.mxu0 0.0
        %1516 = vmatmul.mubr.f32.gmra.mrb[0].mxu0 %v1447
        %v1517 = vpop.f32.mrb[0].mxu0
        %v1518 = vadd.f32 0.0, %v1517
        %v1519 = vpop.f32.mrb[0].mxu0
        %1520 = vdwg.mxu0
        %v1521 = vmul.f32 %v1518, 0.35355338
        %v1522 = vadd.f32 %v1521, %v1186
        %v1523 = vsel %vm1106, %v1522, -inf
        %1524 = vmax.xlane.f32.xlu0 %v1523
        %v1525 = vpop.xlane.xlu0 %1524
        %v1526 = vsub.f32 %v1522, %v1525
        %v1527 = vmul.f32 %v1526, 1.442695
        %v1528 = vpow.pop %v1527
        %v1529 = vsel %vm1106, %v1528, 0.0
        %1530 = vadd.xlane.f32.xlu0 %v1529
        %v1531 = vpop.xlane.xlu0 %1530
        %v1532 = vrcp.pop %v1531
        %v1533 = vmul.f32 %v1528, %v1532
        %1534 = vrot.lane.b32.xlu0 %v1100, 48
        %v1535 = vpop.permute.xlu0 %1534
        %v1538 = vsel %vm1106, %v1533, 0
        %1540 = vmatprep.subr.mxu0 0.0
        %1541 = vmatpush1.msra.mxu0 %v1535
        %1542 = vmatprep.subr.mxu0 0.0
        %1543 = vmatpush1.msra.mxu0 0.0
        %1544 = vmatprep.subr.mxu0 0.0
        %1545 = vmatpush1.msra.mxu0 0.0
        %1546 = vmatprep.subr.mxu0 0.0
        %1547 = vmatpush1.msra.mxu0 0.0
        %1548 = vmatprep.subr.mxu0 0.0
        %1549 = vmatpush1.msra.mxu0 0.0
        %1550 = vmatprep.subr.mxu0 0.0
        %1551 = vmatpush1.msra.mxu0 0.0
        %1552 = vmatprep.subr.mxu0 0.0
        %1553 = vmatpush1.msra.mxu0 0.0
        %1554 = vmatprep.subr.mxu0 0.0
        %1555 = vmatpush1.msra.mxu0 0.0
        %1556 = vmatprep.subr.mxu0 0.0
        %1557 = vmatpush1.msra.mxu0 0.0
        %1558 = vmatprep.subr.mxu0 0.0
        %1559 = vmatpush1.msra.mxu0 0.0
        %1560 = vmatprep.subr.mxu0 0.0
        %1561 = vmatpush1.msra.mxu0 0.0
        %1562 = vmatprep.subr.mxu0 0.0
        %1563 = vmatpush1.msra.mxu0 0.0
        %1564 = vmatprep.subr.mxu0 0.0
        %1565 = vmatpush1.msra.mxu0 0.0
        %1566 = vmatprep.subr.mxu0 0.0
        %1567 = vmatpush1.msra.mxu0 0.0
        %1568 = vmatprep.subr.mxu0 0.0
        %1569 = vmatpush1.msra.mxu0 0.0
        %1570 = vmatprep.subr.mxu0 0.0
        %1571 = vmatpush1.msra.mxu0 0.0
        %1572 = vmatprep.subr.mxu0 0.0
        %1573 = vmatpush1.msra.mxu0 0.0
        %1574 = vmatprep.subr.mxu0 0.0
        %1575 = vmatpush1.msra.mxu0 0.0
        %1576 = vmatprep.subr.mxu0 0.0
        %1577 = vmatpush1.msra.mxu0 0.0
        %1578 = vmatprep.subr.mxu0 0.0
        %1579 = vmatpush1.msra.mxu0 0.0
        %1580 = vmatprep.subr.mxu0 0.0
        %1581 = vmatpush1.msra.mxu0 0.0
        %1582 = vmatprep.subr.mxu0 0.0
        %1583 = vmatpush1.msra.mxu0 0.0
        %1584 = vmatprep.subr.mxu0 0.0
        %1585 = vmatpush1.msra.mxu0 0.0
        %1586 = vmatprep.subr.mxu0 0.0
        %1587 = vmatpush1.msra.mxu0 0.0
        %1588 = vmatprep.subr.mxu0 0.0
        %1589 = vmatpush1.msra.mxu0 0.0
        %1590 = vmatprep.subr.mxu0 0.0
        %1591 = vmatpush1.msra.mxu0 0.0
        %1592 = vmatprep.subr.mxu0 0.0
        %1593 = vmatpush1.msra.mxu0 0.0
        %1594 = vmatprep.subr.mxu0 0.0
        %1595 = vmatpush1.msra.mxu0 0.0
        %1596 = vmatprep.subr.mxu0 0.0
        %1597 = vmatpush1.msra.mxu0 0.0
        %1598 = vmatprep.subr.mxu0 0.0
        %1599 = vmatpush1.msra.mxu0 0.0
        %1600 = vmatprep.subr.mxu0 0.0
        %1601 = vmatpush1.msra.mxu0 0.0
        %1602 = vmatprep.subr.mxu0 0.0
        %1603 = vmatpush1.msra.mxu0 0.0
        %1604 = vmatprep.mubr.f32.mxu0 0.0
        %1605 = vmatmul.mubr.f32.gmra.mrb[0].mxu0 %v1538
        %v1606 = vpop.f32.mrb[0].mxu0
        %v1607 = vadd.f32 0.0, %v1606
        %v1608 = vpop.f32.mrb[0].mxu0
        %1609 = vdwg.mxu0
        %1610 = vrot.lane.b32.xlu0 %v1100, 104
        %v1611 = vpop.permute.xlu0 %1610
        %1612 = vrot.lane.b32.xlu0 %v1100, 72
        %v1613 = vpop.permute.xlu0 %1612
        %v1614 = vsel %vm1106, %v1611, 0
        %v1616 = vsel %vm1106, %v1613, 0
        %1618 = vmatprep.subr.mxu0 0.0
        %1619 = vmatpush1.xpose.msra.mxu0 %v1616
        %1620 = vmatprep.subr.mxu0 0.0
        %1621 = vmatpush1.xpose.msra.mxu0 0.0
        %1622 = vmatprep.subr.mxu0 0.0
        %1623 = vmatpush1.xpose.msra.mxu0 0.0
        %1624 = vmatprep.subr.mxu0 0.0
        %1625 = vmatpush1.xpose.msra.mxu0 0.0
        %1626 = vmatprep.subr.mxu0 0.0
        %1627 = vmatpush1.xpose.msra.mxu0 0.0
        %1628 = vmatprep.subr.mxu0 0.0
        %1629 = vmatpush1.xpose.msra.mxu0 0.0
        %1630 = vmatprep.subr.mxu0 0.0
        %1631 = vmatpush1.xpose.msra.mxu0 0.0
        %1632 = vmatprep.subr.mxu0 0.0
        %1633 = vmatpush1.xpose.msra.mxu0 0.0
        %1634 = vmatprep.subr.mxu0 0.0
        %1635 = vmatpush1.xpose.msra.mxu0 0.0
        %1636 = vmatprep.subr.mxu0 0.0
        %1637 = vmatpush1.xpose.msra.mxu0 0.0
        %1638 = vmatprep.subr.mxu0 0.0
        %1639 = vmatpush1.xpose.msra.mxu0 0.0
        %1640 = vmatprep.subr.mxu0 0.0
        %1641 = vmatpush1.xpose.msra.mxu0 0.0
        %1642 = vmatprep.subr.mxu0 0.0
        %1643 = vmatpush1.xpose.msra.mxu0 0.0
        %1644 = vmatprep.subr.mxu0 0.0
        %1645 = vmatpush1.xpose.msra.mxu0 0.0
        %1646 = vmatprep.subr.mxu0 0.0
        %1647 = vmatpush1.xpose.msra.mxu0 0.0
        %1648 = vmatprep.subr.mxu0 0.0
        %1649 = vmatpush1.xpose.msra.mxu0 0.0
        %1650 = vmatprep.subr.mxu0 0.0
        %1651 = vmatpush1.xpose.msra.mxu0 0.0
        %1652 = vmatprep.subr.mxu0 0.0
        %1653 = vmatpush1.xpose.msra.mxu0 0.0
        %1654 = vmatprep.subr.mxu0 0.0
        %1655 = vmatpush1.xpose.msra.mxu0 0.0
        %1656 = vmatprep.subr.mxu0 0.0
        %1657 = vmatpush1.xpose.msra.mxu0 0.0
        %1658 = vmatprep.subr.mxu0 0.0
        %1659 = vmatpush1.xpose.msra.mxu0 0.0
        %1660 = vmatprep.subr.mxu0 0.0
        %1661 = vmatpush1.xpose.msra.mxu0 0.0
        %1662 = vmatprep.subr.mxu0 0.0
        %1663 = vmatpush1.xpose.msra.mxu0 0.0
        %1664 = vmatprep.subr.mxu0 0.0
        %1665 = vmatpush1.xpose.msra.mxu0 0.0
        %1666 = vmatprep.subr.mxu0 0.0
        %1667 = vmatpush1.xpose.msra.mxu0 0.0
        %1668 = vmatprep.subr.mxu0 0.0
        %1669 = vmatpush1.xpose.msra.mxu0 0.0
        %1670 = vmatprep.subr.mxu0 0.0
        %1671 = vmatpush1.xpose.msra.mxu0 0.0
        %1672 = vmatprep.subr.mxu0 0.0
        %1673 = vmatpush1.xpose.msra.mxu0 0.0
        %1674 = vmatprep.subr.mxu0 0.0
        %1675 = vmatpush1.xpose.msra.mxu0 0.0
        %1676 = vmatprep.subr.mxu0 0.0
        %1677 = vmatpush1.xpose.msra.mxu0 0.0
        %1678 = vmatprep.subr.mxu0 0.0
        %1679 = vmatpush1.xpose.msra.mxu0 0.0
        %1680 = vmatprep.subr.mxu0 0.0
        %1681 = vmatpush1.xpose.msra.mxu0 0.0
        %1682 = vmatprep.mubr.f32.mxu0 0.0
        %1683 = vmatmul.mubr.f32.gmra.mrb[0].mxu0 %v1614
        %v1684 = vpop.f32.mrb[0].mxu0
        %v1685 = vadd.f32 0.0, %v1684
        %v1686 = vpop.f32.mrb[0].mxu0
        %1687 = vdwg.mxu0
        %v1688 = vmul.f32 %v1685, 0.35355338
        %v1689 = vadd.f32 %v1688, %v1186
        %v1690 = vsel %vm1106, %v1689, -inf
        %1691 = vmax.xlane.f32.xlu0 %v1690
        %v1692 = vpop.xlane.xlu0 %1691
        %v1693 = vsub.f32 %v1689, %v1692
        %v1694 = vmul.f32 %v1693, 1.442695
        %v1695 = vpow.pop %v1694
        %v1696 = vsel %vm1106, %v1695, 0.0
        %1697 = vadd.xlane.f32.xlu0 %v1696
        %v1698 = vpop.xlane.xlu0 %1697
        %v1699 = vrcp.pop %v1698
        %v1700 = vmul.f32 %v1695, %v1699
        %1701 = vrot.lane.b32.xlu0 %v1100, 40
        %v1702 = vpop.permute.xlu0 %1701
        %v1705 = vsel %vm1106, %v1700, 0
        %1707 = vmatprep.subr.mxu0 0.0
        %1708 = vmatpush1.msra.mxu0 %v1702
        %1709 = vmatprep.subr.mxu0 0.0
        %1710 = vmatpush1.msra.mxu0 0.0
        %1711 = vmatprep.subr.mxu0 0.0
        %1712 = vmatpush1.msra.mxu0 0.0
        %1713 = vmatprep.subr.mxu0 0.0
        %1714 = vmatpush1.msra.mxu0 0.0
        %1715 = vmatprep.subr.mxu0 0.0
        %1716 = vmatpush1.msra.mxu0 0.0
        %1717 = vmatprep.subr.mxu0 0.0
        %1718 = vmatpush1.msra.mxu0 0.0
        %1719 = vmatprep.subr.mxu0 0.0
        %1720 = vmatpush1.msra.mxu0 0.0
        %1721 = vmatprep.subr.mxu0 0.0
        %1722 = vmatpush1.msra.mxu0 0.0
        %1723 = vmatprep.subr.mxu0 0.0
        %1724 = vmatpush1.msra.mxu0 0.0
        %1725 = vmatprep.subr.mxu0 0.0
        %1726 = vmatpush1.msra.mxu0 0.0
        %1727 = vmatprep.subr.mxu0 0.0
        %1728 = vmatpush1.msra.mxu0 0.0
        %1729 = vmatprep.subr.mxu0 0.0
        %1730 = vmatpush1.msra.mxu0 0.0
        %1731 = vmatprep.subr.mxu0 0.0
        %1732 = vmatpush1.msra.mxu0 0.0
        %1733 = vmatprep.subr.mxu0 0.0
        %1734 = vmatpush1.msra.mxu0 0.0
        %1735 = vmatprep.subr.mxu0 0.0
        %1736 = vmatpush1.msra.mxu0 0.0
        %1737 = vmatprep.subr.mxu0 0.0
        %1738 = vmatpush1.msra.mxu0 0.0
        %1739 = vmatprep.subr.mxu0 0.0
        %1740 = vmatpush1.msra.mxu0 0.0
        %1741 = vmatprep.subr.mxu0 0.0
        %1742 = vmatpush1.msra.mxu0 0.0
        %1743 = vmatprep.subr.mxu0 0.0
        %1744 = vmatpush1.msra.mxu0 0.0
        %1745 = vmatprep.subr.mxu0 0.0
        %1746 = vmatpush1.msra.mxu0 0.0
        %1747 = vmatprep.subr.mxu0 0.0
        %1748 = vmatpush1.msra.mxu0 0.0
        %1749 = vmatprep.subr.mxu0 0.0
        %1750 = vmatpush1.msra.mxu0 0.0
        %1751 = vmatprep.subr.mxu0 0.0
        %1752 = vmatpush1.msra.mxu0 0.0
        %1753 = vmatprep.subr.mxu0 0.0
        %1754 = vmatpush1.msra.mxu0 0.0
        %1755 = vmatprep.subr.mxu0 0.0
        %1756 = vmatpush1.msra.mxu0 0.0
        %1757 = vmatprep.subr.mxu0 0.0
        %1758 = vmatpush1.msra.mxu0 0.0
        %1759 = vmatprep.subr.mxu0 0.0
        %1760 = vmatpush1.msra.mxu0 0.0
        %1761 = vmatprep.subr.mxu0 0.0
        %1762 = vmatpush1.msra.mxu0 0.0
        %1763 = vmatprep.subr.mxu0 0.0
        %1764 = vmatpush1.msra.mxu0 0.0
        %1765 = vmatprep.subr.mxu0 0.0
        %1766 = vmatpush1.msra.mxu0 0.0
        %1767 = vmatprep.subr.mxu0 0.0
        %1768 = vmatpush1.msra.mxu0 0.0
        %1769 = vmatprep.subr.mxu0 0.0
        %1770 = vmatpush1.msra.mxu0 0.0
        %1771 = vmatprep.mubr.f32.mxu0 0.0
        %1772 = vmatmul.mubr.f32.gmra.mrb[0].mxu0 %v1705
        %v1773 = vpop.f32.mrb[0].mxu0
        %v1774 = vadd.f32 0.0, %v1773
        %v1775 = vpop.f32.mrb[0].mxu0
        %1776 = vdwg.mxu0
        %1778 = vrot.lane.b32.xlu0 %v1440, 8
        %v1779 = vpop.permute.xlu0 %1778
        %1782 = vrot.lane.b32.xlu0 %v1607, 16
        %v1783 = vpop.permute.xlu0 %1782
        %1786 = vrot.lane.b32.xlu0 %v1774, 24
        %v1787 = vpop.permute.xlu0 %1786
        %v1789 = vsel %vm1106, %v1273, %v1779
        %vm1790 = vcmask 130048
        %v1791 = vsel %vm1790, %v1789, %v1783
        %vm1792 = vcmask 195584
        %v1793 = vsel %vm1792, %v1791, %v1787
        %v1794 = vld [vmem:[%s8] sm:$0xff]
        %v1795 = vld [vmem:[%s8 + $0x8] sm:$0xff]
        %v1796 = vld [vmem:[%s8 + $0x10] sm:$0xff]
        %v1797 = vld [vmem:[%s8 + $0x18] sm:$0xff]
        %v1798 = vld [vmem:[#allocation10] sm:$0x1]
        %v1800 = vlaneseq
        %v1801 = vshrl.u32 %v1800, 7
        %v1802 = vsub.s32 0, %v1801
        %v1803 = vrot.slane %v1798, %v1802
        %v1806 = vsel %vm989, %v1793, 0
        %1808 = vmatprep.subr.mxu0 0.0
        %1809 = vmatpush1.msra.mxu0 %v1794
        %1810 = vmatprep.subr.mxu0 0.0
        %1811 = vmatpush1.msra.mxu0 %v1795
        %1812 = vmatprep.subr.mxu0 0.0
        %1813 = vmatpush1.msra.mxu0 %v1796
        %1814 = vmatprep.subr.mxu0 0.0
        %1815 = vmatpush1.msra.mxu0 %v1797
        %1816 = vmatprep.subr.mxu0 0.0
        %1817 = vmatpush1.msra.mxu0 0.0
        %1818 = vmatprep.subr.mxu0 0.0
        %1819 = vmatpush1.msra.mxu0 0.0
        %1820 = vmatprep.subr.mxu0 0.0
        %1821 = vmatpush1.msra.mxu0 0.0
        %1822 = vmatprep.subr.mxu0 0.0
        %1823 = vmatpush1.msra.mxu0 0.0
        %1824 = vmatprep.subr.mxu0 0.0
        %1825 = vmatpush1.msra.mxu0 0.0
        %1826 = vmatprep.subr.mxu0 0.0
        %1827 = vmatpush1.msra.mxu0 0.0
        %1828 = vmatprep.subr.mxu0 0.0
        %1829 = vmatpush1.msra.mxu0 0.0
        %1830 = vmatprep.subr.mxu0 0.0
        %1831 = vmatpush1.msra.mxu0 0.0
        %1832 = vmatprep.subr.mxu0 0.0
        %1833 = vmatpush1.msra.mxu0 0.0
        %1834 = vmatprep.subr.mxu0 0.0
        %1835 = vmatpush1.msra.mxu0 0.0
        %1836 = vmatprep.subr.mxu0 0.0
        %1837 = vmatpush1.msra.mxu0 0.0
        %1838 = vmatprep.subr.mxu0 0.0
        %1839 = vmatpush1.msra.mxu0 0.0
        %1840 = vmatprep.subr.mxu0 0.0
        %1841 = vmatpush1.msra.mxu0 0.0
        %1842 = vmatprep.subr.mxu0 0.0
        %1843 = vmatpush1.msra.mxu0 0.0
        %1844 = vmatprep.subr.mxu0 0.0
        %1845 = vmatpush1.msra.mxu0 0.0
        %1846 = vmatprep.subr.mxu0 0.0
        %1847 = vmatpush1.msra.mxu0 0.0
        %1848 = vmatprep.subr.mxu0 0.0
        %1849 = vmatpush1.msra.mxu0 0.0
        %1850 = vmatprep.subr.mxu0 0.0
        %1851 = vmatpush1.msra.mxu0 0.0
        %1852 = vmatprep.subr.mxu0 0.0
        %1853 = vmatpush1.msra.mxu0 0.0
        %1854 = vmatprep.subr.mxu0 0.0
        %1855 = vmatpush1.msra.mxu0 0.0
        %1856 = vmatprep.subr.mxu0 0.0
        %1857 = vmatpush1.msra.mxu0 0.0
        %1858 = vmatprep.subr.mxu0 0.0
        %1859 = vmatpush1.msra.mxu0 0.0
        %1860 = vmatprep.subr.mxu0 0.0
        %1861 = vmatpush1.msra.mxu0 0.0
        %1862 = vmatprep.subr.mxu0 0.0
        %1863 = vmatpush1.msra.mxu0 0.0
        %1864 = vmatprep.subr.mxu0 0.0
        %1865 = vmatpush1.msra.mxu0 0.0
        %1866 = vmatprep.subr.mxu0 0.0
        %1867 = vmatpush1.msra.mxu0 0.0
        %1868 = vmatprep.subr.mxu0 0.0
        %1869 = vmatpush1.msra.mxu0 0.0
        %1870 = vmatprep.subr.mxu0 0.0
        %1871 = vmatpush1.msra.mxu0 0.0
        %1872 = vmatprep.mubr.f32.mxu0 0.0
        %1873 = vmatmul.mubr.f32.gmra.mrb[0].mxu0 %v1806
        %v1874 = vpop.f32.mrb[0].mxu0
        %v1875 = vadd.f32 %v1803, %v1874
        %v1876 = vpop.f32.mrb[0].mxu0
        %1877 = vdwg.mxu0
        %v1878 = vadd.f32 %v1875, %v1017
        %v1879 = vld [vmem:[#allocation12] sm:$0x1]
        %v1880 = vld [vmem:[#allocation13] sm:$0x1]
        %v1881 = vsel %vm989, %v1878, 0.0
        %1882 = vadd.xlane.f32.xlu0 %v1881
        %v1883 = vpop.xlane.xlu0 %1882
        %v1884 = vmul.f32 %v1883, %v993
        %v1885 = vsub.f32 %v1878, %v1884
        %v1886 = vmul.f32 %v1885, %v1885
        %v1887 = vsel %vm989, %v1886, 0.0
        %1888 = vadd.xlane.f32.xlu0 %v1887
        %v1889 = vpop.xlane.xlu0 %1888
        %v1890 = vmul.f32 %v1889, %v993
        %v1891 = vadd.f32 %v1890, 1e-12
        %v1892 = vrsqrt.pop %v1891
        %v1893 = vmul.f32 %v1885, %v1892
        %v1895 = vlaneseq
        %v1896 = vshrl.u32 %v1895, 7
        %v1897 = vsub.s32 0, %v1896
        %v1898 = vrot.slane %v1879, %v1897
        %v1900 = vmul.f32 %v1893, %v1898
        %v1902 = vlaneseq
        %v1903 = vshrl.u32 %v1902, 7
        %v1904 = vsub.s32 0, %v1903
        %v1905 = vrot.slane %v1880, %v1904
        %v1907 = vadd.f32 %v1900, %v1905
        %v1908 = vld [vmem:[%s12] sm:$0xff]
        %v1909 = vld [vmem:[%s12 + $0x8] sm:$0xff]
        %v1910 = vld [vmem:[%s12 + $0x10] sm:$0xff]
        %v1911 = vld [vmem:[%s12 + $0x18] sm:$0xff]
        %v1912 = vld [vmem:[#allocation15] sm:$0x1]
        %v1914 = vlaneseq
        %v1915 = vshrl.u32 %v1914, 7
        %v1916 = vsub.s32 0, %v1915
        %v1917 = vrot.slane %v1912, %v1916
        %v1920 = vsel %vm989, %v1907, 0
        %1922 = vmatprep.subr.mxu0 0.0
        %1923 = vmatpush1.msra.mxu0 %v1908
        %1924 = vmatprep.subr.mxu0 0.0
        %1925 = vmatpush1.msra.mxu0 %v1909
        %1926 = vmatprep.subr.mxu0 0.0
        %1927 = vmatpush1.msra.mxu0 %v1910
        %1928 = vmatprep.subr.mxu0 0.0
        %1929 = vmatpush1.msra.mxu0 %v1911
        %1930 = vmatprep.subr.mxu0 0.0
        %1931 = vmatpush1.msra.mxu0 0.0
        %1932 = vmatprep.subr.mxu0 0.0
        %1933 = vmatpush1.msra.mxu0 0.0
        %1934 = vmatprep.subr.mxu0 0.0
        %1935 = vmatpush1.msra.mxu0 0.0
        %1936 = vmatprep.subr.mxu0 0.0
        %1937 = vmatpush1.msra.mxu0 0.0
        %1938 = vmatprep.subr.mxu0 0.0
        %1939 = vmatpush1.msra.mxu0 0.0
        %1940 = vmatprep.subr.mxu0 0.0
        %1941 = vmatpush1.msra.mxu0 0.0
        %1942 = vmatprep.subr.mxu0 0.0
        %1943 = vmatpush1.msra.mxu0 0.0
        %1944 = vmatprep.subr.mxu0 0.0
        %1945 = vmatpush1.msra.mxu0 0.0
        %1946 = vmatprep.subr.mxu0 0.0
        %1947 = vmatpush1.msra.mxu0 0.0
        %1948 = vmatprep.subr.mxu0 0.0
        %1949 = vmatpush1.msra.mxu0 0.0
        %1950 = vmatprep.subr.mxu0 0.0
        %1951 = vmatpush1.msra.mxu0 0.0
        %1952 = vmatprep.subr.mxu0 0.0
        %1953 = vmatpush1.msra.mxu0 0.0
        %1954 = vmatprep.subr.mxu0 0.0
        %1955 = vmatpush1.msra.mxu0 0.0
        %1956 = vmatprep.subr.mxu0 0.0
        %1957 = vmatpush1.msra.mxu0 0.0
        %1958 = vmatprep.subr.mxu0 0.0
        %1959 = vmatpush1.msra.mxu0 0.0
        %1960 = vmatprep.subr.mxu0 0.0
        %1961 = vmatpush1.msra.mxu0 0.0
        %1962 = vmatprep.subr.mxu0 0.0
        %1963 = vmatpush1.msra.mxu0 0.0
        %1964 = vmatprep.subr.mxu0 0.0
        %1965 = vmatpush1.msra.mxu0 0.0
        %1966 = vmatprep.subr.mxu0 0.0
        %1967 = vmatpush1.msra.mxu0 0.0
        %1968 = vmatprep.subr.mxu0 0.0
        %1969 = vmatpush1.msra.mxu0 0.0
        %1970 = vmatprep.subr.mxu0 0.0
        %1971 = vmatpush1.msra.mxu0 0.0
        %1972 = vmatprep.subr.mxu0 0.0
        %1973 = vmatpush1.msra.mxu0 0.0
        %1974 = vmatprep.subr.mxu0 0.0
        %1975 = vmatpush1.msra.mxu0 0.0
        %1976 = vmatprep.subr.mxu0 0.0
        %1977 = vmatpush1.msra.mxu0 0.0
        %1978 = vmatprep.subr.mxu0 0.0
        %1979 = vmatpush1.msra.mxu0 0.0
        %1980 = vmatprep.subr.mxu0 0.0
        %1981 = vmatpush1.msra.mxu0 0.0
        %1982 = vmatprep.subr.mxu0 0.0
        %1983 = vmatpush1.msra.mxu0 0.0
        %1984 = vmatprep.subr.mxu0 0.0
        %1985 = vmatpush1.msra.mxu0 0.0
        %1986 = vmatprep.mubr.f32.mxu0 0.0
        %1987 = vmatmul.mubr.f32.gmra.mrb[0].mxu0 %v1920
        %v1988 = vpop.f32.mrb[0].mxu0
        %v1989 = vadd.f32 %v1917, %v1988
        %v1990 = vpop.f32.mrb[0].mxu0
        %1991 = vdwg.mxu0
        %v1992 = vmul.f32 %v1989, 0.5
        %v1993 = vmul.f32 %v1989, 0.70710677
        %v1994 = verf.f32.pop %v1993
        %v1995 = vadd.f32 %v1994, 1.0
        %v1996 = vmul.f32 %v1992, %v1995
        %v1997 = vld [vmem:[%s14] sm:$0xff]
        %v1998 = vld [vmem:[%s14 + $0x8] sm:$0xff]
        %v1999 = vld [vmem:[%s14 + $0x10] sm:$0xff]
        %v2000 = vld [vmem:[%s14 + $0x18] sm:$0xff]
        %v2001 = vld [vmem:[%s14 + $0x20] sm:$0xff]
        %v2002 = vld [vmem:[%s14 + $0x28] sm:$0xff]
        %v2003 = vld [vmem:[%s14 + $0x30] sm:$0xff]
        %v2004 = vld [vmem:[%s14 + $0x38] sm:$0xff]
        %v2005 = vld [vmem:[#allocation16] sm:$0x1]
        %v2007 = vlaneseq
        %v2008 = vshrl.u32 %v2007, 7
        %v2009 = vsub.s32 0, %v2008
        %v2010 = vrot.slane %v2005, %v2009
        %vm2012 = vcmask 523264
        %v2014 = vsel %vm2012, %v1996, 0
        %2016 = vmatprep.subr.mxu0 0.0
        %2017 = vmatpush1.msra.mxu0 %v1997
        %2018 = vmatprep.subr.mxu0 0.0
        %2019 = vmatpush1.msra.mxu0 %v1998
        %2020 = vmatprep.subr.mxu0 0.0
        %2021 = vmatpush1.msra.mxu0 %v1999
        %2022 = vmatprep.subr.mxu0 0.0
        %2023 = vmatpush1.msra.mxu0 %v2000
        %2024 = vmatprep.subr.mxu0 0.0
        %2025 = vmatpush1.msra.mxu0 %v2001
        %2026 = vmatprep.subr.mxu0 0.0
        %2027 = vmatpush1.msra.mxu0 %v2002
        %2028 = vmatprep.subr.mxu0 0.0
        %2029 = vmatpush1.msra.mxu0 %v2003
        %2030 = vmatprep.subr.mxu0 0.0
        %2031 = vmatpush1.msra.mxu0 %v2004
        %2032 = vmatprep.subr.mxu0 0.0
        %2033 = vmatpush1.msra.mxu0 0.0
        %2034 = vmatprep.subr.mxu0 0.0
        %2035 = vmatpush1.msra.mxu0 0.0
        %2036 = vmatprep.subr.mxu0 0.0
        %2037 = vmatpush1.msra.mxu0 0.0
        %2038 = vmatprep.subr.mxu0 0.0
        %2039 = vmatpush1.msra.mxu0 0.0
        %2040 = vmatprep.subr.mxu0 0.0
        %2041 = vmatpush1.msra.mxu0 0.0
        %2042 = vmatprep.subr.mxu0 0.0
        %2043 = vmatpush1.msra.mxu0 0.0
        %2044 = vmatprep.subr.mxu0 0.0
        %2045 = vmatpush1.msra.mxu0 0.0
        %2046 = vmatprep.subr.mxu0 0.0
        %2047 = vmatpush1.msra.mxu0 0.0
        %2048 = vmatprep.subr.mxu0 0.0
        %2049 = vmatpush1.msra.mxu0 0.0
        %2050 = vmatprep.subr.mxu0 0.0
        %2051 = vmatpush1.msra.mxu0 0.0
        %2052 = vmatprep.subr.mxu0 0.0
        %2053 = vmatpush1.msra.mxu0 0.0
        %2054 = vmatprep.subr.mxu0 0.0
        %2055 = vmatpush1.msra.mxu0 0.0
        %2056 = vmatprep.subr.mxu0 0.0
        %2057 = vmatpush1.msra.mxu0 0.0
        %2058 = vmatprep.subr.mxu0 0.0
        %2059 = vmatpush1.msra.mxu0 0.0
        %2060 = vmatprep.subr.mxu0 0.0
        %2061 = vmatpush1.msra.mxu0 0.0
        %2062 = vmatprep.subr.mxu0 0.0
        %2063 = vmatpush1.msra.mxu0 0.0
        %2064 = vmatprep.subr.mxu0 0.0
        %2065 = vmatpush1.msra.mxu0 0.0
        %2066 = vmatprep.subr.mxu0 0.0
        %2067 = vmatpush1.msra.mxu0 0.0
        %2068 = vmatprep.subr.mxu0 0.0
        %2069 = vmatpush1.msra.mxu0 0.0
        %2070 = vmatprep.subr.mxu0 0.0
        %2071 = vmatpush1.msra.mxu0 0.0
        %2072 = vmatprep.subr.mxu0 0.0
        %2073 = vmatpush1.msra.mxu0 0.0
        %2074 = vmatprep.subr.mxu0 0.0
        %2075 = vmatpush1.msra.mxu0 0.0
        %2076 = vmatprep.subr.mxu0 0.0
        %2077 = vmatpush1.msra.mxu0 0.0
        %2078 = vmatprep.subr.mxu0 0.0
        %2079 = vmatpush1.msra.mxu0 0.0
        %2080 = vmatprep.mubr.f32.mxu0 0.0
        %2081 = vmatmul.mubr.f32.gmra.mrb[0].mxu0 %v2014
        %v2082 = vpop.f32.mrb[0].mxu0
        %v2083 = vadd.f32 %v2010, %v2082
        %v2084 = vpop.f32.mrb[0].mxu0
        %2085 = vdwg.mxu0
        %v2086 = vadd.f32 %v2083, %v1907
        %v2087 = vld [vmem:[#allocation18] sm:$0x1]
        %v2088 = vld [vmem:[#allocation19] sm:$0x1]
        %v2089 = vsel %vm989, %v2086, 0.0
        %2090 = vadd.xlane.f32.xlu0 %v2089
        %v2091 = vpop.xlane.xlu0 %2090
        %v2092 = vmul.f32 %v2091, %v993
        %v2093 = vsub.f32 %v2086, %v2092
        %v2094 = vmul.f32 %v2093, %v2093
        %v2095 = vsel %vm989, %v2094, 0.0
        %2096 = vadd.xlane.f32.xlu0 %v2095
        %v2097 = vpop.xlane.xlu0 %2096
        %v2098 = vmul.f32 %v2097, %v993
        %v2099 = vadd.f32 %v2098, 1e-12
        %v2100 = vrsqrt.pop %v2099
        %v2101 = vmul.f32 %v2093, %v2100
        %v2103 = vlaneseq
        %v2104 = vshrl.u32 %v2103, 7
        %v2105 = vsub.s32 0, %v2104
        %v2106 = vrot.slane %v2087, %v2105
        %v2108 = vmul.f32 %v2101, %v2106
        %v2110 = vlaneseq
        %v2111 = vshrl.u32 %v2110, 7
        %v2112 = vsub.s32 0, %v2111
        %v2113 = vrot.slane %v2088, %v2112
        %v2115 = vadd.f32 %v2108, %v2113
        %s2116 = scalar_lea.vmem %s6, 32
        %v2117 = vld [vmem:[%s2116] sm:$0xff]
        %v2118 = vld [vmem:[%s2116 + $0x8] sm:$0xff]
        %v2119 = vld [vmem:[%s2116 + $0x10] sm:$0xff]
        %v2120 = vld [vmem:[%s2116 + $0x18] sm:$0xff]
        %s2121 = scalar_lea.vmem [#allocation9], 1
        %v2122 = vld [vmem:[%s2121] sm:$0x1]
        %v2124 = vlaneseq
        %v2125 = vshrl.u32 %v2124, 7
        %v2126 = vsub.s32 0, %v2125
        %v2127 = vrot.slane %v2122, %v2126
        %v2130 = vsel %vm989, %v2115, 0
        %2132 = vmatprep.subr.mxu0 0.0
        %2133 = vmatpush1.msra.mxu0 %v2117
        %2134 = vmatprep.subr.mxu0 0.0
        %2135 = vmatpush1.msra.mxu0 %v2118
        %2136 = vmatprep.subr.mxu0 0.0
        %2137 = vmatpush1.msra.mxu0 %v2119
        %2138 = vmatprep.subr.mxu0 0.0
        %2139 = vmatpush1.msra.mxu0 %v2120
        %2140 = vmatprep.subr.mxu0 0.0
        %2141 = vmatpush1.msra.mxu0 0.0
        %2142 = vmatprep.subr.mxu0 0.0
        %2143 = vmatpush1.msra.mxu0 0.0
        %2144 = vmatprep.subr.mxu0 0.0
        %2145 = vmatpush1.msra.mxu0 0.0
        %2146 = vmatprep.subr.mxu0 0.0
        %2147 = vmatpush1.msra.mxu0 0.0
        %2148 = vmatprep.subr.mxu0 0.0
        %2149 = vmatpush1.msra.mxu0 0.0
        %2150 = vmatprep.subr.mxu0 0.0
        %2151 = vmatpush1.msra.mxu0 0.0
        %2152 = vmatprep.subr.mxu0 0.0
        %2153 = vmatpush1.msra.mxu0 0.0
        %2154 = vmatprep.subr.mxu0 0.0
        %2155 = vmatpush1.msra.mxu0 0.0
        %2156 = vmatprep.subr.mxu0 0.0
        %2157 = vmatpush1.msra.mxu0 0.0
        %2158 = vmatprep.subr.mxu0 0.0
        %2159 = vmatpush1.msra.mxu0 0.0
        %2160 = vmatprep.subr.mxu0 0.0
        %2161 = vmatpush1.msra.mxu0 0.0
        %2162 = vmatprep.subr.mxu0 0.0
        %2163 = vmatpush1.msra.mxu0 0.0
        %2164 = vmatprep.subr.mxu0 0.0
        %2165 = vmatpush1.msra.mxu0 0.0
        %2166 = vmatprep.subr.mxu0 0.0
        %2167 = vmatpush1.msra.mxu0 0.0
        %2168 = vmatprep.subr.mxu0 0.0
        %2169 = vmatpush1.msra.mxu0 0.0
        %2170 = vmatprep.subr.mxu0 0.0
        %2171 = vmatpush1.msra.mxu0 0.0
        %2172 = vmatprep.subr.mxu0 0.0
        %2173 = vmatpush1.msra.mxu0 0.0
        %2174 = vmatprep.subr.mxu0 0.0
        %2175 = vmatpush1.msra.mxu0 0.0
        %2176 = vmatprep.subr.mxu0 0.0
        %2177 = vmatpush1.msra.mxu0 0.0
        %2178 = vmatprep.subr.mxu0 0.0
        %2179 = vmatpush1.msra.mxu0 0.0
        %2180 = vmatprep.subr.mxu0 0.0
        %2181 = vmatpush1.msra.mxu0 0.0
        %2182 = vmatprep.subr.mxu0 0.0
        %2183 = vmatpush1.msra.mxu0 0.0
        %2184 = vmatprep.subr.mxu0 0.0
        %2185 = vmatpush1.msra.mxu0 0.0
        %2186 = vmatprep.subr.mxu0 0.0
        %2187 = vmatpush1.msra.mxu0 0.0
        %2188 = vmatprep.subr.mxu0 0.0
        %2189 = vmatpush1.msra.mxu0 0.0
        %2190 = vmatprep.subr.mxu0 0.0
        %2191 = vmatpush1.msra.mxu0 0.0
        %2192 = vmatprep.subr.mxu0 0.0
        %2193 = vmatpush1.msra.mxu0 0.0
        %2194 = vmatprep.subr.mxu0 0.0
        %2195 = vmatpush1.msra.mxu0 0.0
        %2196 = vmatprep.mubr.f32.mxu0 0.0
        %2197 = vmatmul.mubr.f32.gmra.mrb[0].mxu0 %v2130
        %v2198 = vpop.f32.mrb[0].mxu0
        %v2199 = vadd.f32 %v2127, %v2198
        %v2200 = vpop.f32.mrb[0].mxu0
        %2201 = vdwg.mxu0
        %2203 = vrot.lane.b32.xlu0 %v2199, 96
        %v2204 = vpop.permute.xlu0 %2203
        %v2205 = vsel %vm1106, %v2199, 0
        %v2207 = vsel %vm1106, %v2204, 0
        %2209 = vmatprep.subr.mxu0 0.0
        %2210 = vmatpush1.xpose.msra.mxu0 %v2207
        %2211 = vmatprep.subr.mxu0 0.0
        %2212 = vmatpush1.xpose.msra.mxu0 0.0
        %2213 = vmatprep.subr.mxu0 0.0
        %2214 = vmatpush1.xpose.msra.mxu0 0.0
        %2215 = vmatprep.subr.mxu0 0.0
        %2216 = vmatpush1.xpose.msra.mxu0 0.0
        %2217 = vmatprep.subr.mxu0 0.0
        %2218 = vmatpush1.xpose.msra.mxu0 0.0
        %2219 = vmatprep.subr.mxu0 0.0
        %2220 = vmatpush1.xpose.msra.mxu0 0.0
        %2221 = vmatprep.subr.mxu0 0.0
        %2222 = vmatpush1.xpose.msra.mxu0 0.0
        %2223 = vmatprep.subr.mxu0 0.0
        %2224 = vmatpush1.xpose.msra.mxu0 0.0
        %2225 = vmatprep.subr.mxu0 0.0
        %2226 = vmatpush1.xpose.msra.mxu0 0.0
        %2227 = vmatprep.subr.mxu0 0.0
        %2228 = vmatpush1.xpose.msra.mxu0 0.0
        %2229 = vmatprep.subr.mxu0 0.0
        %2230 = vmatpush1.xpose.msra.mxu0 0.0
        %2231 = vmatprep.subr.mxu0 0.0
        %2232 = vmatpush1.xpose.msra.mxu0 0.0
        %2233 = vmatprep.subr.mxu0 0.0
        %2234 = vmatpush1.xpose.msra.mxu0 0.0
        %2235 = vmatprep.subr.mxu0 0.0
        %2236 = vmatpush1.xpose.msra.mxu0 0.0
        %2237 = vmatprep.subr.mxu0 0.0
        %2238 = vmatpush1.xpose.msra.mxu0 0.0
        %2239 = vmatprep.subr.mxu0 0.0
        %2240 = vmatpush1.xpose.msra.mxu0 0.0
        %2241 = vmatprep.subr.mxu0 0.0
        %2242 = vmatpush1.xpose.msra.mxu0 0.0
        %2243 = vmatprep.subr.mxu0 0.0
        %2244 = vmatpush1.xpose.msra.mxu0 0.0
        %2245 = vmatprep.subr.mxu0 0.0
        %2246 = vmatpush1.xpose.msra.mxu0 0.0
        %2247 = vmatprep.subr.mxu0 0.0
        %2248 = vmatpush1.xpose.msra.mxu0 0.0
        %2249 = vmatprep.subr.mxu0 0.0
        %2250 = vmatpush1.xpose.msra.mxu0 0.0
        %2251 = vmatprep.subr.mxu0 0.0
        %2252 = vmatpush1.xpose.msra.mxu0 0.0
        %2253 = vmatprep.subr.mxu0 0.0
        %2254 = vmatpush1.xpose.msra.mxu0 0.0
        %2255 = vmatprep.subr.mxu0 0.0
        %2256 = vmatpush1.xpose.msra.mxu0 0.0
        %2257 = vmatprep.subr.mxu0 0.0
        %2258 = vmatpush1.xpose.msra.mxu0 0.0
        %2259 = vmatprep.subr.mxu0 0.0
        %2260 = vmatpush1.xpose.msra.mxu0 0.0
        %2261 = vmatprep.subr.mxu0 0.0
        %2262 = vmatpush1.xpose.msra.mxu0 0.0
        %2263 = vmatprep.subr.mxu0 0.0
        %2264 = vmatpush1.xpose.msra.mxu0 0.0
        %2265 = vmatprep.subr.mxu0 0.0
        %2266 = vmatpush1.xpose.msra.mxu0 0.0
        %2267 = vmatprep.subr.mxu0 0.0
        %2268 = vmatpush1.xpose.msra.mxu0 0.0
        %2269 = vmatprep.subr.mxu0 0.0
        %2270 = vmatpush1.xpose.msra.mxu0 0.0
        %2271 = vmatprep.subr.mxu0 0.0
        %2272 = vmatpush1.xpose.msra.mxu0 0.0
        %2273 = vmatprep.mubr.f32.mxu0 0.0
        %2274 = vmatmul.mubr.f32.gmra.mrb[0].mxu0 %v2205
        %v2275 = vpop.f32.mrb[0].mxu0
        %v2276 = vadd.f32 0.0, %v2275
        %v2277 = vpop.f32.mrb[0].mxu0
        %2278 = vdwg.mxu0
        %v2279 = vmul.f32 %v2276, 0.35355338
        %v2280 = vadd.f32 %v2279, %v1186
        %v2281 = vsel %vm1106, %v2280, -inf
        %2282 = vmax.xlane.f32.xlu0 %v2281
        %v2283 = vpop.xlane.xlu0 %2282
        %v2284 = vsub.f32 %v2280, %v2283
        %v2285 = vmul.f32 %v2284, 1.442695
        %v2286 = vpow.pop %v2285
        %v2287 = vsel %vm1106, %v2286, 0.0
        %2288 = vadd.xlane.f32.xlu0 %v2287
        %v2289 = vpop.xlane.xlu0 %2288
        %v2290 = vrcp.pop %v2289
        %v2291 = vmul.f32 %v2286, %v2290
        %2292 = vrot.lane.b32.xlu0 %v2199, 64
        %v2293 = vpop.permute.xlu0 %2292
        %v2296 = vsel %vm1106, %v2291, 0
        %2298 = vmatprep.subr.mxu0 0.0
        %2299 = vmatpush1.msra.mxu0 %v2293
        %2300 = vmatprep.subr.mxu0 0.0
        %2301 = vmatpush1.msra.mxu0 0.0
        %2302 = vmatprep.subr.mxu0 0.0
        %2303 = vmatpush1.msra.mxu0 0.0
        %2304 = vmatprep.subr.mxu0 0.0
        %2305 = vmatpush1.msra.mxu0 0.0
        %2306 = vmatprep.subr.mxu0 0.0
        %2307 = vmatpush1.msra.mxu0 0.0
        %2308 = vmatprep.subr.mxu0 0.0
        %2309 = vmatpush1.msra.mxu0 0.0
        %2310 = vmatprep.subr.mxu0 0.0
        %2311 = vmatpush1.msra.mxu0 0.0
        %2312 = vmatprep.subr.mxu0 0.0
        %2313 = vmatpush1.msra.mxu0 0.0
        %2314 = vmatprep.subr.mxu0 0.0
        %2315 = vmatpush1.msra.mxu0 0.0
        %2316 = vmatprep.subr.mxu0 0.0
        %2317 = vmatpush1.msra.mxu0 0.0
        %2318 = vmatprep.subr.mxu0 0.0
        %2319 = vmatpush1.msra.mxu0 0.0
        %2320 = vmatprep.subr.mxu0 0.0
        %2321 = vmatpush1.msra.mxu0 0.0
        %2322 = vmatprep.subr.mxu0 0.0
        %2323 = vmatpush1.msra.mxu0 0.0
        %2324 = vmatprep.subr.mxu0 0.0
        %2325 = vmatpush1.msra.mxu0 0.0
        %2326 = vmatprep.subr.mxu0 0.0
        %2327 = vmatpush1.msra.mxu0 0.0
        %2328 = vmatprep.subr.mxu0 0.0
        %2329 = vmatpush1.msra.mxu0 0.0
        %2330 = vmatprep.subr.mxu0 0.0
        %2331 = vmatpush1.msra.mxu0 0.0
        %2332 = vmatprep.subr.mxu0 0.0
        %2333 = vmatpush1.msra.mxu0 0.0
        %2334 = vmatprep.subr.mxu0 0.0
        %2335 = vmatpush1.msra.mxu0 0.0
        %2336 = vmatprep.subr.mxu0 0.0
        %2337 = vmatpush1.msra.mxu0 0.0
        %2338 = vmatprep.subr.mxu0 0.0
        %2339 = vmatpush1.msra.mxu0 0.0
        %2340 = vmatprep.subr.mxu0 0.0
        %2341 = vmatpush1.msra.mxu0 0.0
        %2342 = vmatprep.subr.mxu0 0.0
        %2343 = vmatpush1.msra.mxu0 0.0
        %2344 = vmatprep.subr.mxu0 0.0
        %2345 = vmatpush1.msra.mxu0 0.0
        %2346 = vmatprep.subr.mxu0 0.0
        %2347 = vmatpush1.msra.mxu0 0.0
        %2348 = vmatprep.subr.mxu0 0.0
        %2349 = vmatpush1.msra.mxu0 0.0
        %2350 = vmatprep.subr.mxu0 0.0
        %2351 = vmatpush1.msra.mxu0 0.0
        %2352 = vmatprep.subr.mxu0 0.0
        %2353 = vmatpush1.msra.mxu0 0.0
        %2354 = vmatprep.subr.mxu0 0.0
        %2355 = vmatpush1.msra.mxu0 0.0
        %2356 = vmatprep.subr.mxu0 0.0
        %2357 = vmatpush1.msra.mxu0 0.0
        %2358 = vmatprep.subr.mxu0 0.0
        %2359 = vmatpush1.msra.mxu0 0.0
        %2360 = vmatprep.subr.mxu0 0.0
        %2361 = vmatpush1.msra.mxu0 0.0
        %2362 = vmatprep.mubr.f32.mxu0 0.0
        %2363 = vmatmul.mubr.f32.gmra.mrb[0].mxu0 %v2296
        %v2364 = vpop.f32.mrb[0].mxu0
        %v2365 = vadd.f32 0.0, %v2364
        %v2366 = vpop.f32.mrb[0].mxu0
        %2367 = vdwg.mxu0
        %2368 = vrot.lane.b32.xlu0 %v2199, 120
        %v2369 = vpop.permute.xlu0 %2368
        %2370 = vrot.lane.b32.xlu0 %v2199, 88
        %v2371 = vpop.permute.xlu0 %2370
        %v2372 = vsel %vm1106, %v2369, 0
        %v2374 = vsel %vm1106, %v2371, 0
        %2376 = vmatprep.subr.mxu0 0.0
        %2377 = vmatpush1.xpose.msra.mxu0 %v2374
        %2378 = vmatprep.subr.mxu0 0.0
        %2379 = vmatpush1.xpose.msra.mxu0 0.0
        %2380 = vmatprep.subr.mxu0 0.0
        %2381 = vmatpush1.xpose.msra.mxu0 0.0
        %2382 = vmatprep.subr.mxu0 0.0
        %2383 = vmatpush1.xpose.msra.mxu0 0.0
        %2384 = vmatprep.subr.mxu0 0.0
        %2385 = vmatpush1.xpose.msra.mxu0 0.0
        %2386 = vmatprep.subr.mxu0 0.0
        %2387 = vmatpush1.xpose.msra.mxu0 0.0
        %2388 = vmatprep.subr.mxu0 0.0
        %2389 = vmatpush1.xpose.msra.mxu0 0.0
        %2390 = vmatprep.subr.mxu0 0.0
        %2391 = vmatpush1.xpose.msra.mxu0 0.0
        %2392 = vmatprep.subr.mxu0 0.0
        %2393 = vmatpush1.xpose.msra.mxu0 0.0
        %2394 = vmatprep.subr.mxu0 0.0
        %2395 = vmatpush1.xpose.msra.mxu0 0.0
        %2396 = vmatprep.subr.mxu0 0.0
        %2397 = vmatpush1.xpose.msra.mxu0 0.0
        %2398 = vmatprep.subr.mxu0 0.0
        %2399 = vmatpush1.xpose.msra.mxu0 0.0
        %2400 = vmatprep.subr.mxu0 0.0
        %2401 = vmatpush1.xpose.msra.mxu0 0.0
        %2402 = vmatprep.subr.mxu0 0.0
        %2403 = vmatpush1.xpose.msra.mxu0 0.0
        %2404 = vmatprep.subr.mxu0 0.0
        %2405 = vmatpush1.xpose.msra.mxu0 0.0
        %2406 = vmatprep.subr.mxu0 0.0
        %2407 = vmatpush1.xpose.msra.mxu0 0.0
        %2408 = vmatprep.subr.mxu0 0.0
        %2409 = vmatpush1.xpose.msra.mxu0 0.0
        %2410 = vmatprep.subr.mxu0 0.0
        %2411 = vmatpush1.xpose.msra.mxu0 0.0
        %2412 = vmatprep.subr.mxu0 0.0
        %2413 = vmatpush1.xpose.msra.mxu0 0.0
        %2414 = vmatprep.subr.mxu0 0.0
        %2415 = vmatpush1.xpose.msra.mxu0 0.0
        %2416 = vmatprep.subr.mxu0 0.0
        %2417 = vmatpush1.xpose.msra.mxu0 0.0
        %2418 = vmatprep.subr.mxu0 0.0
        %2419 = vmatpush1.xpose.msra.mxu0 0.0
        %2420 = vmatprep.subr.mxu0 0.0
        %2421 = vmatpush1.xpose.msra.mxu0 0.0
        %2422 = vmatprep.subr.mxu0 0.0
        %2423 = vmatpush1.xpose.msra.mxu0 0.0
        %2424 = vmatprep.subr.mxu0 0.0
        %2425 = vmatpush1.xpose.msra.mxu0 0.0
        %2426 = vmatprep.subr.mxu0 0.0
        %2427 = vmatpush1.xpose.msra.mxu0 0.0
        %2428 = vmatprep.subr.mxu0 0.0
        %2429 = vmatpush1.xpose.msra.mxu0 0.0
        %2430 = vmatprep.subr.mxu0 0.0
        %2431 = vmatpush1.xpose.msra.mxu0 0.0
        %2432 = vmatprep.subr.mxu0 0.0
        %2433 = vmatpush1.xpose.msra.mxu0 0.0
        %2434 = vmatprep.subr.mxu0 0.0
        %2435 = vmatpush1.xpose.msra.mxu0 0.0
        %2436 = vmatprep.subr.mxu0 0.0
        %2437 = vmatpush1.xpose.msra.mxu0 0.0
        %2438 = vmatprep.subr.mxu0 0.0
        %2439 = vmatpush1.xpose.msra.mxu0 0.0
        %2440 = vmatprep.mubr.f32.mxu0 0.0
        %2441 = vmatmul.mubr.f32.gmra.mrb[0].mxu0 %v2372
        %v2442 = vpop.f32.mrb[0].mxu0
        %v2443 = vadd.f32 0.0, %v2442
        %v2444 = vpop.f32.mrb[0].mxu0
        %2445 = vdwg.mxu0
        %v2446 = vmul.f32 %v2443, 0.35355338
        %v2447 = vadd.f32 %v2446, %v1186
        %v2448 = vsel %vm1106, %v2447, -inf
        %2449 = vmax.xlane.f32.xlu0 %v2448
        %v2450 = vpop.xlane.xlu0 %2449
        %v2451 = vsub.f32 %v2447, %v2450
        %v2452 = vmul.f32 %v2451, 1.442695
        %v2453 = vpow.pop %v2452
        %v2454 = vsel %vm1106, %v2453, 0.0
        %2455 = vadd.xlane.f32.xlu0 %v2454
        %v2456 = vpop.xlane.xlu0 %2455
        %v2457 = vrcp.pop %v2456
        %v2458 = vmul.f32 %v2453, %v2457
        %2459 = vrot.lane.b32.xlu0 %v2199, 56
        %v2460 = vpop.permute.xlu0 %2459
        %v2463 = vsel %vm1106, %v2458, 0
        %2465 = vmatprep.subr.mxu0 0.0
        %2466 = vmatpush1.msra.mxu0 %v2460
        %2467 = vmatprep.subr.mxu0 0.0
        %2468 = vmatpush1.msra.mxu0 0.0
        %2469 = vmatprep.subr.mxu0 0.0
        %2470 = vmatpush1.msra.mxu0 0.0
        %2471 = vmatprep.subr.mxu0 0.0
        %2472 = vmatpush1.msra.mxu0 0.0
        %2473 = vmatprep.subr.mxu0 0.0
        %2474 = vmatpush1.msra.mxu0 0.0
        %2475 = vmatprep.subr.mxu0 0.0
        %2476 = vmatpush1.msra.mxu0 0.0
        %2477 = vmatprep.subr.mxu0 0.0
        %2478 = vmatpush1.msra.mxu0 0.0
        %2479 = vmatprep.subr.mxu0 0.0
        %2480 = vmatpush1.msra.mxu0 0.0
        %2481 = vmatprep.subr.mxu0 0.0
        %2482 = vmatpush1.msra.mxu0 0.0
        %2483 = vmatprep.subr.mxu0 0.0
        %2484 = vmatpush1.msra.mxu0 0.0
        %2485 = vmatprep.subr.mxu0 0.0
        %2486 = vmatpush1.msra.mxu0 0.0
        %2487 = vmatprep.subr.mxu0 0.0
        %2488 = vmatpush1.msra.mxu0 0.0
        %2489 = vmatprep.subr.mxu0 0.0
        %2490 = vmatpush1.msra.mxu0 0.0
        %2491 = vmatprep.subr.mxu0 0.0
        %2492 = vmatpush1.msra.mxu0 0.0
        %2493 = vmatprep.subr.mxu0 0.0
        %2494 = vmatpush1.msra.mxu0 0.0
        %2495 = vmatprep.subr.mxu0 0.0
        %2496 = vmatpush1.msra.mxu0 0.0
        %2497 = vmatprep.subr.mxu0 0.0
        %2498 = vmatpush1.msra.mxu0 0.0
        %2499 = vmatprep.subr.mxu0 0.0
        %2500 = vmatpush1.msra.mxu0 0.0
        %2501 = vmatprep.subr.mxu0 0.0
        %2502 = vmatpush1.msra.mxu0 0.0
        %2503 = vmatprep.subr.mxu0 0.0
        %2504 = vmatpush1.msra.mxu0 0.0
        %2505 = vmatprep.subr.mxu0 0.0
        %2506 = vmatpush1.msra.mxu0 0.0
        %2507 = vmatprep.subr.mxu0 0.0
        %2508 = vmatpush1.msra.mxu0 0.0
        %2509 = vmatprep.subr.mxu0 0.0
        %2510 = vmatpush1.msra.mxu0 0.0
        %2511 = vmatprep.subr.mxu0 0.0
        %2512 = vmatpush1.msra.mxu0 0.0
        %2513 = vmatprep.subr.mxu0 0.0
        %2514 = vmatpush1.msra.mxu0 0.0
        %2515 = vmatprep.subr.mxu0 0.0
        %2516 = vmatpush1.msra.mxu0 0.0
        %2517 = vmatprep.subr.mxu0 0.0
        %2518 = vmatpush1.msra.mxu0 0.0
        %2519 = vmatprep.subr.mxu0 0.0
        %2520 = vmatpush1.msra.mxu0 0.0
        %2521 = vmatprep.subr.mxu0 0.0
        %2522 = vmatpush1.msra.mxu0 0.0
        %2523 = vmatprep.subr.mxu0 0.0
        %2524 = vmatpush1.msra.mxu0 0.0
        %2525 = vmatprep.subr.mxu0 0.0
        %2526 = vmatpush1.msra.mxu0 0.0
        %2527 = vmatprep.subr.mxu0 0.0
        %2528 = vmatpush1.msra.mxu0 0.0
        %2529 = vmatprep.mubr.f32.mxu0 0.0
        %2530 = vmatmul.mubr.f32.gmra.mrb[0].mxu0 %v2463
        %v2531 = vpop.f32.mrb[0].mxu0
        %v2532 = vadd.f32 0.0, %v2531
        %v2533 = vpop.f32.mrb[0].mxu0
        %2534 = vdwg.mxu0
        %2535 = vrot.lane.b32.xlu0 %v2199, 112
        %v2536 = vpop.permute.xlu0 %2535
        %2537 = vrot.lane.b32.xlu0 %v2199, 80
        %v2538 = vpop.permute.xlu0 %2537
        %v2539 = vsel %vm1106, %v2536, 0
        %v2541 = vsel %vm1106, %v2538, 0
        %2543 = vmatprep.subr.mxu0 0.0
        %2544 = vmatpush1.xpose.msra.mxu0 %v2541
        %2545 = vmatprep.subr.mxu0 0.0
        %2546 = vmatpush1.xpose.msra.mxu0 0.0
        %2547 = vmatprep.subr.mxu0 0.0
        %2548 = vmatpush1.xpose.msra.mxu0 0.0
        %2549 = vmatprep.subr.mxu0 0.0
        %2550 = vmatpush1.xpose.msra.mxu0 0.0
        %2551 = vmatprep.subr.mxu0 0.0
        %2552 = vmatpush1.xpose.msra.mxu0 0.0
        %2553 = vmatprep.subr.mxu0 0.0
        %2554 = vmatpush1.xpose.msra.mxu0 0.0
        %2555 = vmatprep.subr.mxu0 0.0
        %2556 = vmatpush1.xpose.msra.mxu0 0.0
        %2557 = vmatprep.subr.mxu0 0.0
        %2558 = vmatpush1.xpose.msra.mxu0 0.0
        %2559 = vmatprep.subr.mxu0 0.0
        %2560 = vmatpush1.xpose.msra.mxu0 0.0
        %2561 = vmatprep.subr.mxu0 0.0
        %2562 = vmatpush1.xpose.msra.mxu0 0.0
        %2563 = vmatprep.subr.mxu0 0.0
        %2564 = vmatpush1.xpose.msra.mxu0 0.0
        %2565 = vmatprep.subr.mxu0 0.0
        %2566 = vmatpush1.xpose.msra.mxu0 0.0
        %2567 = vmatprep.subr.mxu0 0.0
        %2568 = vmatpush1.xpose.msra.mxu0 0.0
        %2569 = vmatprep.subr.mxu0 0.0
        %2570 = vmatpush1.xpose.msra.mxu0 0.0
        %2571 = vmatprep.subr.mxu0 0.0
        %2572 = vmatpush1.xpose.msra.mxu0 0.0
        %2573 = vmatprep.subr.mxu0 0.0
        %2574 = vmatpush1.xpose.msra.mxu0 0.0
        %2575 = vmatprep.subr.mxu0 0.0
        %2576 = vmatpush1.xpose.msra.mxu0 0.0
        %2577 = vmatprep.subr.mxu0 0.0
        %2578 = vmatpush1.xpose.msra.mxu0 0.0
        %2579 = vmatprep.subr.mxu0 0.0
        %2580 = vmatpush1.xpose.msra.mxu0 0.0
        %2581 = vmatprep.subr.mxu0 0.0
        %2582 = vmatpush1.xpose.msra.mxu0 0.0
        %2583 = vmatprep.subr.mxu0 0.0
        %2584 = vmatpush1.xpose.msra.mxu0 0.0
        %2585 = vmatprep.subr.mxu0 0.0
        %2586 = vmatpush1.xpose.msra.mxu0 0.0
        %2587 = vmatprep.subr.mxu0 0.0
        %2588 = vmatpush1.xpose.msra.mxu0 0.0
        %2589 = vmatprep.subr.mxu0 0.0
        %2590 = vmatpush1.xpose.msra.mxu0 0.0
        %2591 = vmatprep.subr.mxu0 0.0
        %2592 = vmatpush1.xpose.msra.mxu0 0.0
        %2593 = vmatprep.subr.mxu0 0.0
        %2594 = vmatpush1.xpose.msra.mxu0 0.0
        %2595 = vmatprep.subr.mxu0 0.0
        %2596 = vmatpush1.xpose.msra.mxu0 0.0
        %2597 = vmatprep.subr.mxu0 0.0
        %2598 = vmatpush1.xpose.msra.mxu0 0.0
        %2599 = vmatprep.subr.mxu0 0.0
        %2600 = vmatpush1.xpose.msra.mxu0 0.0
        %2601 = vmatprep.subr.mxu0 0.0
        %2602 = vmatpush1.xpose.msra.mxu0 0.0
        %2603 = vmatprep.subr.mxu0 0.0
        %2604 = vmatpush1.xpose.msra.mxu0 0.0
        %2605 = vmatprep.subr.mxu0 0.0
        %2606 = vmatpush1.xpose.msra.mxu0 0.0
        %2607 = vmatprep.mubr.f32.mxu0 0.0
        %2608 = vmatmul.mubr.f32.gmra.mrb[0].mxu0 %v2539
        %v2609 = vpop.f32.mrb[0].mxu0
        %v2610 = vadd.f32 0.0, %v2609
        %v2611 = vpop.f32.mrb[0].mxu0
        %2612 = vdwg.mxu0
        %v2613 = vmul.f32 %v2610, 0.35355338
        %v2614 = vadd.f32 %v2613, %v1186
        %v2615 = vsel %vm1106, %v2614, -inf
        %2616 = vmax.xlane.f32.xlu0 %v2615
        %v2617 = vpop.xlane.xlu0 %2616
        %v2618 = vsub.f32 %v2614, %v2617
        %v2619 = vmul.f32 %v2618, 1.442695
        %v2620 = vpow.pop %v2619
        %v2621 = vsel %vm1106, %v2620, 0.0
        %2622 = vadd.xlane.f32.xlu0 %v2621
        %v2623 = vpop.xlane.xlu0 %2622
        %v2624 = vrcp.pop %v2623
        %v2625 = vmul.f32 %v2620, %v2624
        %2626 = vrot.lane.b32.xlu0 %v2199, 48
        %v2627 = vpop.permute.xlu0 %2626
        %v2630 = vsel %vm1106, %v2625, 0
        %2632 = vmatprep.subr.mxu0 0.0
        %2633 = vmatpush1.msra.mxu0 %v2627
        %2634 = vmatprep.subr.mxu0 0.0
        %2635 = vmatpush1.msra.mxu0 0.0
        %2636 = vmatprep.subr.mxu0 0.0
        %2637 = vmatpush1.msra.mxu0 0.0
        %2638 = vmatprep.subr.mxu0 0.0
        %2639 = vmatpush1.msra.mxu0 0.0
        %2640 = vmatprep.subr.mxu0 0.0
        %2641 = vmatpush1.msra.mxu0 0.0
        %2642 = vmatprep.subr.mxu0 0.0
        %2643 = vmatpush1.msra.mxu0 0.0
        %2644 = vmatprep.subr.mxu0 0.0
        %2645 = vmatpush1.msra.mxu0 0.0
        %2646 = vmatprep.subr.mxu0 0.0
        %2647 = vmatpush1.msra.mxu0 0.0
        %2648 = vmatprep.subr.mxu0 0.0
        %2649 = vmatpush1.msra.mxu0 0.0
        %2650 = vmatprep.subr.mxu0 0.0
        %2651 = vmatpush1.msra.mxu0 0.0
        %2652 = vmatprep.subr.mxu0 0.0
        %2653 = vmatpush1.msra.mxu0 0.0
        %2654 = vmatprep.subr.mxu0 0.0
        %2655 = vmatpush1.msra.mxu0 0.0
        %2656 = vmatprep.subr.mxu0 0.0
        %2657 = vmatpush1.msra.mxu0 0.0
        %2658 = vmatprep.subr.mxu0 0.0
        %2659 = vmatpush1.msra.mxu0 0.0
        %2660 = vmatprep.subr.mxu0 0.0
        %2661 = vmatpush1.msra.mxu0 0.0
        %2662 = vmatprep.subr.mxu0 0.0
        %2663 = vmatpush1.msra.mxu0 0.0
        %2664 = vmatprep.subr.mxu0 0.0
        %2665 = vmatpush1.msra.mxu0 0.0
        %2666 = vmatprep.subr.mxu0 0.0
        %2667 = vmatpush1.msra.mxu0 0.0
        %2668 = vmatprep.subr.mxu0 0.0
        %2669 = vmatpush1.msra.mxu0 0.0
        %2670 = vmatprep.subr.mxu0 0.0
        %2671 = vmatpush1.msra.mxu0 0.0
        %2672 = vmatprep.subr.mxu0 0.0
        %2673 = vmatpush1.msra.mxu0 0.0
        %2674 = vmatprep.subr.mxu0 0.0
        %2675 = vmatpush1.msra.mxu0 0.0
        %2676 = vmatprep.subr.mxu0 0.0
        %2677 = vmatpush1.msra.mxu0 0.0
        %2678 = vmatprep.subr.mxu0 0.0
        %2679 = vmatpush1.msra.mxu0 0.0
        %2680 = vmatprep.subr.mxu0 0.0
        %2681 = vmatpush1.msra.mxu0 0.0
        %2682 = vmatprep.subr.mxu0 0.0
        %2683 = vmatpush1.msra.mxu0 0.0
        %2684 = vmatprep.subr.mxu0 0.0
        %2685 = vmatpush1.msra.mxu0 0.0
        %2686 = vmatprep.subr.mxu0 0.0
        %2687 = vmatpush1.msra.mxu0 0.0
        %2688 = vmatprep.subr.mxu0 0.0
        %2689 = vmatpush1.msra.mxu0 0.0
        %2690 = vmatprep.subr.mxu0 0.0
        %2691 = vmatpush1.msra.mxu0 0.0
        %2692 = vmatprep.subr.mxu0 0.0
        %2693 = vmatpush1.msra.mxu0 0.0
        %2694 = vmatprep.subr.mxu0 0.0
        %2695 = vmatpush1.msra.mxu0 0.0
        %2696 = vmatprep.mubr.f32.mxu0 0.0
        %2697 = vmatmul.mubr.f32.gmra.mrb[0].mxu0 %v2630
        %v2698 = vpop.f32.mrb[0].mxu0
        %v2699 = vadd.f32 0.0, %v2698
        %v2700 = vpop.f32.mrb[0].mxu0
        %2701 = vdwg.mxu0
        %2702 = vrot.lane.b32.xlu0 %v2199, 104
        %v2703 = vpop.permute.xlu0 %2702
        %2704 = vrot.lane.b32.xlu0 %v2199, 72
        %v2705 = vpop.permute.xlu0 %2704
        %v2706 = vsel %vm1106, %v2703, 0
        %v2708 = vsel %vm1106, %v2705, 0
        %2710 = vmatprep.subr.mxu0 0.0
        %2711 = vmatpush1.xpose.msra.mxu0 %v2708
        %2712 = vmatprep.subr.mxu0 0.0
        %2713 = vmatpush1.xpose.msra.mxu0 0.0
        %2714 = vmatprep.subr.mxu0 0.0
        %2715 = vmatpush1.xpose.msra.mxu0 0.0
        %2716 = vmatprep.subr.mxu0 0.0
        %2717 = vmatpush1.xpose.msra.mxu0 0.0
        %2718 = vmatprep.subr.mxu0 0.0
        %2719 = vmatpush1.xpose.msra.mxu0 0.0
        %2720 = vmatprep.subr.mxu0 0.0
        %2721 = vmatpush1.xpose.msra.mxu0 0.0
        %2722 = vmatprep.subr.mxu0 0.0
        %2723 = vmatpush1.xpose.msra.mxu0 0.0
        %2724 = vmatprep.subr.mxu0 0.0
        %2725 = vmatpush1.xpose.msra.mxu0 0.0
        %2726 = vmatprep.subr.mxu0 0.0
        %2727 = vmatpush1.xpose.msra.mxu0 0.0
        %2728 = vmatprep.subr.mxu0 0.0
        %2729 = vmatpush1.xpose.msra.mxu0 0.0
        %2730 = vmatprep.subr.mxu0 0.0
        %2731 = vmatpush1.xpose.msra.mxu0 0.0
        %2732 = vmatprep.subr.mxu0 0.0
        %2733 = vmatpush1.xpose.msra.mxu0 0.0
        %2734 = vmatprep.subr.mxu0 0.0
        %2735 = vmatpush1.xpose.msra.mxu0 0.0
        %2736 = vmatprep.subr.mxu0 0.0
        %2737 = vmatpush1.xpose.msra.mxu0 0.0
        %2738 = vmatprep.subr.mxu0 0.0
        %2739 = vmatpush1.xpose.msra.mxu0 0.0
        %2740 = vmatprep.subr.mxu0 0.0
        %2741 = vmatpush1.xpose.msra.mxu0 0.0
        %2742 = vmatprep.subr.mxu0 0.0
        %2743 = vmatpush1.xpose.msra.mxu0 0.0
        %2744 = vmatprep.subr.mxu0 0.0
        %2745 = vmatpush1.xpose.msra.mxu0 0.0
        %2746 = vmatprep.subr.mxu0 0.0
        %2747 = vmatpush1.xpose.msra.mxu0 0.0
        %2748 = vmatprep.subr.mxu0 0.0
        %2749 = vmatpush1.xpose.msra.mxu0 0.0
        %2750 = vmatprep.subr.mxu0 0.0
        %2751 = vmatpush1.xpose.msra.mxu0 0.0
        %2752 = vmatprep.subr.mxu0 0.0
        %2753 = vmatpush1.xpose.msra.mxu0 0.0
        %2754 = vmatprep.subr.mxu0 0.0
        %2755 = vmatpush1.xpose.msra.mxu0 0.0
        %2756 = vmatprep.subr.mxu0 0.0
        %2757 = vmatpush1.xpose.msra.mxu0 0.0
        %2758 = vmatprep.subr.mxu0 0.0
        %2759 = vmatpush1.xpose.msra.mxu0 0.0
        %2760 = vmatprep.subr.mxu0 0.0
        %2761 = vmatpush1.xpose.msra.mxu0 0.0
        %2762 = vmatprep.subr.mxu0 0.0
        %2763 = vmatpush1.xpose.msra.mxu0 0.0
        %2764 = vmatprep.subr.mxu0 0.0
        %2765 = vmatpush1.xpose.msra.mxu0 0.0
        %2766 = vmatprep.subr.mxu0 0.0
        %2767 = vmatpush1.xpose.msra.mxu0 0.0
        %2768 = vmatprep.subr.mxu0 0.0
        %2769 = vmatpush1.xpose.msra.mxu0 0.0
        %2770 = vmatprep.subr.mxu0 0.0
        %2771 = vmatpush1.xpose.msra.mxu0 0.0
        %2772 = vmatprep.subr.mxu0 0.0
        %2773 = vmatpush1.xpose.msra.mxu0 0.0
        %2774 = vmatprep.mubr.f32.mxu0 0.0
        %2775 = vmatmul.mubr.f32.gmra.mrb[0].mxu0 %v2706
        %v2776 = vpop.f32.mrb[0].mxu0
        %v2777 = vadd.f32 0.0, %v2776
        %v2778 = vpop.f32.mrb[0].mxu0
        %2779 = vdwg.mxu0
        %v2780 = vmul.f32 %v2777, 0.35355338
        %v2781 = vadd.f32 %v2780, %v1186
        %v2782 = vsel %vm1106, %v2781, -inf
        %2783 = vmax.xlane.f32.xlu0 %v2782
        %v2784 = vpop.xlane.xlu0 %2783
        %v2785 = vsub.f32 %v2781, %v2784
        %v2786 = vmul.f32 %v2785, 1.442695
        %v2787 = vpow.pop %v2786
        %v2788 = vsel %vm1106, %v2787, 0.0
        %2789 = vadd.xlane.f32.xlu0 %v2788
        %v2790 = vpop.xlane.xlu0 %2789
        %v2791 = vrcp.pop %v2790
        %v2792 = vmul.f32 %v2787, %v2791
        %2793 = vrot.lane.b32.xlu0 %v2199, 40
        %v2794 = vpop.permute.xlu0 %2793
        %v2797 = vsel %vm1106, %v2792, 0
        %2799 = vmatprep.subr.mxu0 0.0
        %2800 = vmatpush1.msra.mxu0 %v2794
        %2801 = vmatprep.subr.mxu0 0.0
        %2802 = vmatpush1.msra.mxu0 0.0
        %2803 = vmatprep.subr.mxu0 0.0
        %2804 = vmatpush1.msra.mxu0 0.0
        %2805 = vmatprep.subr.mxu0 0.0
        %2806 = vmatpush1.msra.mxu0 0.0
        %2807 = vmatprep.subr.mxu0 0.0
        %2808 = vmatpush1.msra.mxu0 0.0
        %2809 = vmatprep.subr.mxu0 0.0
        %2810 = vmatpush1.msra.mxu0 0.0
        %2811 = vmatprep.subr.mxu0 0.0
        %2812 = vmatpush1.msra.mxu0 0.0
        %2813 = vmatprep.subr.mxu0 0.0
        %2814 = vmatpush1.msra.mxu0 0.0
        %2815 = vmatprep.subr.mxu0 0.0
        %2816 = vmatpush1.msra.mxu0 0.0
        %2817 = vmatprep.subr.mxu0 0.0
        %2818 = vmatpush1.msra.mxu0 0.0
        %2819 = vmatprep.subr.mxu0 0.0
        %2820 = vmatpush1.msra.mxu0 0.0
        %2821 = vmatprep.subr.mxu0 0.0
        %2822 = vmatpush1.msra.mxu0 0.0
        %2823 = vmatprep.subr.mxu0 0.0
        %2824 = vmatpush1.msra.mxu0 0.0
        %2825 = vmatprep.subr.mxu0 0.0
        %2826 = vmatpush1.msra.mxu0 0.0
        %2827 = vmatprep.subr.mxu0 0.0
        %2828 = vmatpush1.msra.mxu0 0.0
        %2829 = vmatprep.subr.mxu0 0.0
        %2830 = vmatpush1.msra.mxu0 0.0
        %2831 = vmatprep.subr.mxu0 0.0
        %2832 = vmatpush1.msra.mxu0 0.0
        %2833 = vmatprep.subr.mxu0 0.0
        %2834 = vmatpush1.msra.mxu0 0.0
        %2835 = vmatprep.subr.mxu0 0.0
        %2836 = vmatpush1.msra.mxu0 0.0
        %2837 = vmatprep.subr.mxu0 0.0
        %2838 = vmatpush1.msra.mxu0 0.0
        %2839 = vmatprep.subr.mxu0 0.0
        %2840 = vmatpush1.msra.mxu0 0.0
        %2841 = vmatprep.subr.mxu0 0.0
        %2842 = vmatpush1.msra.mxu0 0.0
        %2843 = vmatprep.subr.mxu0 0.0
        %2844 = vmatpush1.msra.mxu0 0.0
        %2845 = vmatprep.subr.mxu0 0.0
        %2846 = vmatpush1.msra.mxu0 0.0
        %2847 = vmatprep.subr.mxu0 0.0
        %2848 = vmatpush1.msra.mxu0 0.0
        %2849 = vmatprep.subr.mxu0 0.0
        %2850 = vmatpush1.msra.mxu0 0.0
        %2851 = vmatprep.subr.mxu0 0.0
        %2852 = vmatpush1.msra.mxu0 0.0
        %2853 = vmatprep.subr.mxu0 0.0
        %2854 = vmatpush1.msra.mxu0 0.0
        %2855 = vmatprep.subr.mxu0 0.0
        %2856 = vmatpush1.msra.mxu0 0.0
        %2857 = vmatprep.subr.mxu0 0.0
        %2858 = vmatpush1.msra.mxu0 0.0
        %2859 = vmatprep.subr.mxu0 0.0
        %2860 = vmatpush1.msra.mxu0 0.0
        %2861 = vmatprep.subr.mxu0 0.0
        %2862 = vmatpush1.msra.mxu0 0.0
        %2863 = vmatprep.mubr.f32.mxu0 0.0
        %2864 = vmatmul.mubr.f32.gmra.mrb[0].mxu0 %v2797
        %v2865 = vpop.f32.mrb[0].mxu0
        %v2866 = vadd.f32 0.0, %v2865
        %v2867 = vpop.f32.mrb[0].mxu0
        %2868 = vdwg.mxu0
        %2870 = vrot.lane.b32.xlu0 %v2532, 8
        %v2871 = vpop.permute.xlu0 %2870
        %2874 = vrot.lane.b32.xlu0 %v2699, 16
        %v2875 = vpop.permute.xlu0 %2874
        %2878 = vrot.lane.b32.xlu0 %v2866, 24
        %v2879 = vpop.permute.xlu0 %2878
        %v2881 = vsel %vm1106, %v2365, %v2871
        %v2882 = vsel %vm1790, %v2881, %v2875
        %v2883 = vsel %vm1792, %v2882, %v2879
        %s2884 = scalar_lea.vmem %s8, 32
        %v2885 = vld [vmem:[%s2884] sm:$0xff]
        %v2886 = vld [vmem:[%s2884 + $0x8] sm:$0xff]
        %v2887 = vld [vmem:[%s2884 + $0x10] sm:$0xff]
        %v2888 = vld [vmem:[%s2884 + $0x18] sm:$0xff]
        %s2889 = scalar_lea.vmem [#allocation10], 1
        %v2890 = vld [vmem:[%s2889] sm:$0x1]
        %v2892 = vlaneseq
        %v2893 = vshrl.u32 %v2892, 7
        %v2894 = vsub.s32 0, %v2893
        %v2895 = vrot.slane %v2890, %v2894
        %v2898 = vsel %vm989, %v2883, 0
        %2900 = vmatprep.subr.mxu0 0.0
        %2901 = vmatpush1.msra.mxu0 %v2885
        %2902 = vmatprep.subr.mxu0 0.0
        %2903 = vmatpush1.msra.mxu0 %v2886
        %2904 = vmatprep.subr.mxu0 0.0
        %2905 = vmatpush1.msra.mxu0 %v2887
        %2906 = vmatprep.subr.mxu0 0.0
        %2907 = vmatpush1.msra.mxu0 %v2888
        %2908 = vmatprep.subr.mxu0 0.0
        %2909 = vmatpush1.msra.mxu0 0.0
        %2910 = vmatprep.subr.mxu0 0.0
        %2911 = vmatpush1.msra.mxu0 0.0
        %2912 = vmatprep.subr.mxu0 0.0
        %2913 = vmatpush1.msra.mxu0 0.0
        %2914 = vmatprep.subr.mxu0 0.0
        %2915 = vmatpush1.msra.mxu0 0.0
        %2916 = vmatprep.subr.mxu0 0.0
        %2917 = vmatpush1.msra.mxu0 0.0
        %2918 = vmatprep.subr.mxu0 0.0
        %2919 = vmatpush1.msra.mxu0 0.0
        %2920 = vmatprep.subr.mxu0 0.0
        %2921 = vmatpush1.msra.mxu0 0.0
        %2922 = vmatprep.subr.mxu0 0.0
        %2923 = vmatpush1.msra.mxu0 0.0
        %2924 = vmatprep.subr.mxu0 0.0
        %2925 = vmatpush1.msra.mxu0 0.0
        %2926 = vmatprep.subr.mxu0 0.0
        %2927 = vmatpush1.msra.mxu0 0.0
        %2928 = vmatprep.subr.mxu0 0.0
        %2929 = vmatpush1.msra.mxu0 0.0
        %2930 = vmatprep.subr.mxu0 0.0
        %2931 = vmatpush1.msra.mxu0 0.0
        %2932 = vmatprep.subr.mxu0 0.0
        %2933 = vmatpush1.msra.mxu0 0.0
        %2934 = vmatprep.subr.mxu0 0.0
        %2935 = vmatpush1.msra.mxu0 0.0
        %2936 = vmatprep.subr.mxu0 0.0
        %2937 = vmatpush1.msra.mxu0 0.0
        %2938 = vmatprep.subr.mxu0 0.0
        %2939 = vmatpush1.msra.mxu0 0.0
        %2940 = vmatprep.subr.mxu0 0.0
        %2941 = vmatpush1.msra.mxu0 0.0
        %2942 = vmatprep.subr.mxu0 0.0
        %2943 = vmatpush1.msra.mxu0 0.0
        %2944 = vmatprep.subr.mxu0 0.0
        %2945 = vmatpush1.msra.mxu0 0.0
        %2946 = vmatprep.subr.mxu0 0.0
        %2947 = vmatpush1.msra.mxu0 0.0
        %2948 = vmatprep.subr.mxu0 0.0
        %2949 = vmatpush1.msra.mxu0 0.0
        %2950 = vmatprep.subr.mxu0 0.0
        %2951 = vmatpush1.msra.mxu0 0.0
        %2952 = vmatprep.subr.mxu0 0.0
        %2953 = vmatpush1.msra.mxu0 0.0
        %2954 = vmatprep.subr.mxu0 0.0
        %2955 = vmatpush1.msra.mxu0 0.0
        %2956 = vmatprep.subr.mxu0 0.0
        %2957 = vmatpush1.msra.mxu0 0.0
        %2958 = vmatprep.subr.mxu0 0.0
        %2959 = vmatpush1.msra.mxu0 0.0
        %2960 = vmatprep.subr.mxu0 0.0
        %2961 = vmatpush1.msra.mxu0 0.0
        %2962 = vmatprep.subr.mxu0 0.0
        %2963 = vmatpush1.msra.mxu0 0.0
        %2964 = vmatprep.mubr.f32.mxu0 0.0
        %2965 = vmatmul.mubr.f32.gmra.mrb[0].mxu0 %v2898
        %v2966 = vpop.f32.mrb[0].mxu0
        %v2967 = vadd.f32 %v2895, %v2966
        %v2968 = vpop.f32.mrb[0].mxu0
        %2969 = vdwg.mxu0
        %v2970 = vadd.f32 %v2967, %v2115
        %s2971 = scalar_lea.vmem [#allocation12], 1
        %v2972 = vld [vmem:[%s2971] sm:$0x1]
        %s2973 = scalar_lea.vmem [#allocation13], 1
        %v2974 = vld [vmem:[%s2973] sm:$0x1]
        %v2975 = vsel %vm989, %v2970, 0.0
        %2976 = vadd.xlane.f32.xlu0 %v2975
        %v2977 = vpop.xlane.xlu0 %2976
        %v2978 = vmul.f32 %v2977, %v993
        %v2979 = vsub.f32 %v2970, %v2978
        %v2980 = vmul.f32 %v2979, %v2979
        %v2981 = vsel %vm989, %v2980, 0.0
        %2982 = vadd.xlane.f32.xlu0 %v2981
        %v2983 = vpop.xlane.xlu0 %2982
        %v2984 = vmul.f32 %v2983, %v993
        %v2985 = vadd.f32 %v2984, 1e-12
        %v2986 = vrsqrt.pop %v2985
        %v2987 = vmul.f32 %v2979, %v2986
        %v2989 = vlaneseq
        %v2990 = vshrl.u32 %v2989, 7
        %v2991 = vsub.s32 0, %v2990
        %v2992 = vrot.slane %v2972, %v2991
        %v2994 = vmul.f32 %v2987, %v2992
        %v2996 = vlaneseq
        %v2997 = vshrl.u32 %v2996, 7
        %v2998 = vsub.s32 0, %v2997
        %v2999 = vrot.slane %v2974, %v2998
        %v3001 = vadd.f32 %v2994, %v2999
        %s3002 = scalar_lea.vmem %s12, 32
        %v3003 = vld [vmem:[%s3002] sm:$0xff]
        %v3004 = vld [vmem:[%s3002 + $0x8] sm:$0xff]
        %v3005 = vld [vmem:[%s3002 + $0x10] sm:$0xff]
        %v3006 = vld [vmem:[%s3002 + $0x18] sm:$0xff]
        %s3007 = scalar_lea.vmem [#allocation15], 1
        %v3008 = vld [vmem:[%s3007] sm:$0x1]
        %v3010 = vlaneseq
        %v3011 = vshrl.u32 %v3010, 7
        %v3012 = vsub.s32 0, %v3011
        %v3013 = vrot.slane %v3008, %v3012
        %v3016 = vsel %vm989, %v3001, 0
        %3018 = vmatprep.subr.mxu0 0.0
        %3019 = vmatpush1.msra.mxu0 %v3003
        %3020 = vmatprep.subr.mxu0 0.0
        %3021 = vmatpush1.msra.mxu0 %v3004
        %3022 = vmatprep.subr.mxu0 0.0
        %3023 = vmatpush1.msra.mxu0 %v3005
        %3024 = vmatprep.subr.mxu0 0.0
        %3025 = vmatpush1.msra.mxu0 %v3006
        %3026 = vmatprep.subr.mxu0 0.0
        %3027 = vmatpush1.msra.mxu0 0.0
        %3028 = vmatprep.subr.mxu0 0.0
        %3029 = vmatpush1.msra.mxu0 0.0
        %3030 = vmatprep.subr.mxu0 0.0
        %3031 = vmatpush1.msra.mxu0 0.0
        %3032 = vmatprep.subr.mxu0 0.0
        %3033 = vmatpush1.msra.mxu0 0.0
        %3034 = vmatprep.subr.mxu0 0.0
        %3035 = vmatpush1.msra.mxu0 0.0
        %3036 = vmatprep.subr.mxu0 0.0
        %3037 = vmatpush1.msra.mxu0 0.0
        %3038 = vmatprep.subr.mxu0 0.0
        %3039 = vmatpush1.msra.mxu0 0.0
        %3040 = vmatprep.subr.mxu0 0.0
        %3041 = vmatpush1.msra.mxu0 0.0
        %3042 = vmatprep.subr.mxu0 0.0
        %3043 = vmatpush1.msra.mxu0 0.0
        %3044 = vmatprep.subr.mxu0 0.0
        %3045 = vmatpush1.msra.mxu0 0.0
        %3046 = vmatprep.subr.mxu0 0.0
        %3047 = vmatpush1.msra.mxu0 0.0
        %3048 = vmatprep.subr.mxu0 0.0
        %3049 = vmatpush1.msra.mxu0 0.0
        %3050 = vmatprep.subr.mxu0 0.0
        %3051 = vmatpush1.msra.mxu0 0.0
        %3052 = vmatprep.subr.mxu0 0.0
        %3053 = vmatpush1.msra.mxu0 0.0
        %3054 = vmatprep.subr.mxu0 0.0
        %3055 = vmatpush1.msra.mxu0 0.0
        %3056 = vmatprep.subr.mxu0 0.0
        %3057 = vmatpush1.msra.mxu0 0.0
        %3058 = vmatprep.subr.mxu0 0.0
        %3059 = vmatpush1.msra.mxu0 0.0
        %3060 = vmatprep.subr.mxu0 0.0
        %3061 = vmatpush1.msra.mxu0 0.0
        %3062 = vmatprep.subr.mxu0 0.0
        %3063 = vmatpush1.msra.mxu0 0.0
        %3064 = vmatprep.subr.mxu0 0.0
        %3065 = vmatpush1.msra.mxu0 0.0
        %3066 = vmatprep.subr.mxu0 0.0
        %3067 = vmatpush1.msra.mxu0 0.0
        %3068 = vmatprep.subr.mxu0 0.0
        %3069 = vmatpush1.msra.mxu0 0.0
        %3070 = vmatprep.subr.mxu0 0.0
        %3071 = vmatpush1.msra.mxu0 0.0
        %3072 = vmatprep.subr.mxu0 0.0
        %3073 = vmatpush1.msra.mxu0 0.0
        %3074 = vmatprep.subr.mxu0 0.0
        %3075 = vmatpush1.msra.mxu0 0.0
        %3076 = vmatprep.subr.mxu0 0.0
        %3077 = vmatpush1.msra.mxu0 0.0
        %3078 = vmatprep.subr.mxu0 0.0
        %3079 = vmatpush1.msra.mxu0 0.0
        %3080 = vmatprep.subr.mxu0 0.0
        %3081 = vmatpush1.msra.mxu0 0.0
        %3082 = vmatprep.mubr.f32.mxu0 0.0
        %3083 = vmatmul.mubr.f32.gmra.mrb[0].mxu0 %v3016
        %v3084 = vpop.f32.mrb[0].mxu0
        %v3085 = vadd.f32 %v3013, %v3084
        %v3086 = vpop.f32.mrb[0].mxu0
        %3087 = vdwg.mxu0
        %v3088 = vmul.f32 %v3085, 0.5
        %v3089 = vmul.f32 %v3085, 0.70710677
        %v3090 = verf.f32.pop %v3089
        %v3091 = vadd.f32 %v3090, 1.0
        %v3092 = vmul.f32 %v3088, %v3091
        %s3093 = scalar_lea.vmem %s14, 64
        %v3094 = vld [vmem:[%s3093] sm:$0xff]
        %v3095 = vld [vmem:[%s3093 + $0x8] sm:$0xff]
        %v3096 = vld [vmem:[%s3093 + $0x10] sm:$0xff]
        %v3097 = vld [vmem:[%s3093 + $0x18] sm:$0xff]
        %v3098 = vld [vmem:[%s3093 + $0x20] sm:$0xff]
        %v3099 = vld [vmem:[%s3093 + $0x28] sm:$0xff]
        %v3100 = vld [vmem:[%s3093 + $0x30] sm:$0xff]
        %v3101 = vld [vmem:[%s3093 + $0x38] sm:$0xff]
        %s3102 = scalar_lea.vmem [#allocation16], 1
        %v3103 = vld [vmem:[%s3102] sm:$0x1]
        %v3105 = vlaneseq
        %v3106 = vshrl.u32 %v3105, 7
        %v3107 = vsub.s32 0, %v3106
        %v3108 = vrot.slane %v3103, %v3107
        %v3111 = vsel %vm2012, %v3092, 0
        %3113 = vmatprep.subr.mxu0 0.0
        %3114 = vmatpush1.msra.mxu0 %v3094
        %3115 = vmatprep.subr.mxu0 0.0
        %3116 = vmatpush1.msra.mxu0 %v3095
        %3117 = vmatprep.subr.mxu0 0.0
        %3118 = vmatpush1.msra.mxu0 %v3096
        %3119 = vmatprep.subr.mxu0 0.0
        %3120 = vmatpush1.msra.mxu0 %v3097
        %3121 = vmatprep.subr.mxu0 0.0
        %3122 = vmatpush1.msra.mxu0 %v3098
        %3123 = vmatprep.subr.mxu0 0.0
        %3124 = vmatpush1.msra.mxu0 %v3099
        %3125 = vmatprep.subr.mxu0 0.0
        %3126 = vmatpush1.msra.mxu0 %v3100
        %3127 = vmatprep.subr.mxu0 0.0
        %3128 = vmatpush1.msra.mxu0 %v3101
        %3129 = vmatprep.subr.mxu0 0.0
        %3130 = vmatpush1.msra.mxu0 0.0
        %3131 = vmatprep.subr.mxu0 0.0
        %3132 = vmatpush1.msra.mxu0 0.0
        %3133 = vmatprep.subr.mxu0 0.0
        %3134 = vmatpush1.msra.mxu0 0.0
        %3135 = vmatprep.subr.mxu0 0.0
        %3136 = vmatpush1.msra.mxu0 0.0
        %3137 = vmatprep.subr.mxu0 0.0
        %3138 = vmatpush1.msra.mxu0 0.0
        %3139 = vmatprep.subr.mxu0 0.0
        %3140 = vmatpush1.msra.mxu0 0.0
        %3141 = vmatprep.subr.mxu0 0.0
        %3142 = vmatpush1.msra.mxu0 0.0
        %3143 = vmatprep.subr.mxu0 0.0
        %3144 = vmatpush1.msra.mxu0 0.0
        %3145 = vmatprep.subr.mxu0 0.0
        %3146 = vmatpush1.msra.mxu0 0.0
        %3147 = vmatprep.subr.mxu0 0.0
        %3148 = vmatpush1.msra.mxu0 0.0
        %3149 = vmatprep.subr.mxu0 0.0
        %3150 = vmatpush1.msra.mxu0 0.0
        %3151 = vmatprep.subr.mxu0 0.0
        %3152 = vmatpush1.msra.mxu0 0.0
        %3153 = vmatprep.subr.mxu0 0.0
        %3154 = vmatpush1.msra.mxu0 0.0
        %3155 = vmatprep.subr.mxu0 0.0
        %3156 = vmatpush1.msra.mxu0 0.0
        %3157 = vmatprep.subr.mxu0 0.0
        %3158 = vmatpush1.msra.mxu0 0.0
        %3159 = vmatprep.subr.mxu0 0.0
        %3160 = vmatpush1.msra.mxu0 0.0
        %3161 = vmatprep.subr.mxu0 0.0
        %3162 = vmatpush1.msra.mxu0 0.0
        %3163 = vmatprep.subr.mxu0 0.0
        %3164 = vmatpush1.msra.mxu0 0.0
        %3165 = vmatprep.subr.mxu0 0.0
        %3166 = vmatpush1.msra.mxu0 0.0
        %3167 = vmatprep.subr.mxu0 0.0
        %3168 = vmatpush1.msra.mxu0 0.0
        %3169 = vmatprep.subr.mxu0 0.0
        %3170 = vmatpush1.msra.mxu0 0.0
        %3171 = vmatprep.subr.mxu0 0.0
        %3172 = vmatpush1.msra.mxu0 0.0
        %3173 = vmatprep.subr.mxu0 0.0
        %3174 = vmatpush1.msra.mxu0 0.0
        %3175 = vmatprep.subr.mxu0 0.0
        %3176 = vmatpush1.msra.mxu0 0.0
        %3177 = vmatprep.mubr.f32.mxu0 0.0
        %3178 = vmatmul.mubr.f32.gmra.mrb[0].mxu0 %v3111
        %v3179 = vpop.f32.mrb[0].mxu0
        %v3180 = vadd.f32 %v3108, %v3179
        %v3181 = vpop.f32.mrb[0].mxu0
        %3182 = vdwg.mxu0
        %v3183 = vadd.f32 %v3180, %v3001
        %s3184 = scalar_lea.vmem [#allocation18], 1
        %v3185 = vld [vmem:[%s3184] sm:$0x1]
        %s3186 = scalar_lea.vmem [#allocation19], 1
        %v3187 = vld [vmem:[%s3186] sm:$0x1]
        %v3188 = vsel %vm989, %v3183, 0.0
        %3189 = vadd.xlane.f32.xlu0 %v3188
        %v3190 = vpop.xlane.xlu0 %3189
        %v3191 = vmul.f32 %v3190, %v993
        %v3192 = vsub.f32 %v3183, %v3191
        %v3193 = vmul.f32 %v3192, %v3192
        %v3194 = vsel %vm989, %v3193, 0.0
        %3195 = vadd.xlane.f32.xlu0 %v3194
        %v3196 = vpop.xlane.xlu0 %3195
        %v3197 = vmul.f32 %v3196, %v993
        %v3198 = vadd.f32 %v3197, 1e-12
        %v3199 = vrsqrt.pop %v3198
        %v3200 = vmul.f32 %v3192, %v3199
        %v3202 = vlaneseq
        %v3203 = vshrl.u32 %v3202, 7
        %v3204 = vsub.s32 0, %v3203
        %v3205 = vrot.slane %v3185, %v3204
        %v3207 = vmul.f32 %v3200, %v3205
        %v3209 = vlaneseq
        %v3210 = vshrl.u32 %v3209, 7
        %v3211 = vsub.s32 0, %v3210
        %v3212 = vrot.slane %v3187, %v3211
        %v3214 = vadd.f32 %v3207, %v3212
        %v3215 = vld [vmem:[#allocation21] sm:$0xff]
        %v3216 = vld [vmem:[#allocation21 + $0x8] sm:$0xff]
        %v3217 = vld [vmem:[#allocation21 + $0x10] sm:$0xff]
        %v3218 = vld [vmem:[#allocation21 + $0x18] sm:$0xff]
        %v3219 = vld [vmem:[#allocation22] sm:$0x1]
        %v3221 = vlaneseq
        %v3222 = vshrl.u32 %v3221, 7
        %v3223 = vsub.s32 0, %v3222
        %v3224 = vrot.slane %v3219, %v3223
        %v3227 = vsel %vm989, %v3214, 0
        %3229 = vmatprep.subr.mxu0 0.0
        %3230 = vmatpush1.msra.mxu0 %v3215
        %3231 = vmatprep.subr.mxu0 0.0
        %3232 = vmatpush1.msra.mxu0 %v3216
        %3233 = vmatprep.subr.mxu0 0.0
        %3234 = vmatpush1.msra.mxu0 %v3217
        %3235 = vmatprep.subr.mxu0 0.0
        %3236 = vmatpush1.msra.mxu0 %v3218
        %3237 = vmatprep.subr.mxu0 0.0
        %3238 = vmatpush1.msra.mxu0 0.0
        %3239 = vmatprep.subr.mxu0 0.0
        %3240 = vmatpush1.msra.mxu0 0.0
        %3241 = vmatprep.subr.mxu0 0.0
        %3242 = vmatpush1.msra.mxu0 0.0
        %3243 = vmatprep.subr.mxu0 0.0
        %3244 = vmatpush1.msra.mxu0 0.0
        %3245 = vmatprep.subr.mxu0 0.0
        %3246 = vmatpush1.msra.mxu0 0.0
        %3247 = vmatprep.subr.mxu0 0.0
        %3248 = vmatpush1.msra.mxu0 0.0
        %3249 = vmatprep.subr.mxu0 0.0
        %3250 = vmatpush1.msra.mxu0 0.0
        %3251 = vmatprep.subr.mxu0 0.0
        %3252 = vmatpush1.msra.mxu0 0.0
        %3253 = vmatprep.subr.mxu0 0.0
        %3254 = vmatpush1.msra.mxu0 0.0
        %3255 = vmatprep.subr.mxu0 0.0
        %3256 = vmatpush1.msra.mxu0 0.0
        %3257 = vmatprep.subr.mxu0 0.0
        %3258 = vmatpush1.msra.mxu0 0.0
        %3259 = vmatprep.subr.mxu0 0.0
        %3260 = vmatpush1.msra.mxu0 0.0
        %3261 = vmatprep.subr.mxu0 0.0
        %3262 = vmatpush1.msra.mxu0 0.0
        %3263 = vmatprep.subr.mxu0 0.0
        %3264 = vmatpush1.msra.mxu0 0.0
        %3265 = vmatprep.subr.mxu0 0.0
        %3266 = vmatpush1.msra.mxu0 0.0
        %3267 = vmatprep.subr.mxu0 0.0
        %3268 = vmatpush1.msra.mxu0 0.0
        %3269 = vmatprep.subr.mxu0 0.0
        %3270 = vmatpush1.msra.mxu0 0.0
        %3271 = vmatprep.subr.mxu0 0.0
        %3272 = vmatpush1.msra.mxu0 0.0
        %3273 = vmatprep.subr.mxu0 0.0
        %3274 = vmatpush1.msra.mxu0 0.0
        %3275 = vmatprep.subr.mxu0 0.0
        %3276 = vmatpush1.msra.mxu0 0.0
        %3277 = vmatprep.subr.mxu0 0.0
        %3278 = vmatpush1.msra.mxu0 0.0
        %3279 = vmatprep.subr.mxu0 0.0
        %3280 = vmatpush1.msra.mxu0 0.0
        %3281 = vmatprep.subr.mxu0 0.0
        %3282 = vmatpush1.msra.mxu0 0.0
        %3283 = vmatprep.subr.mxu0 0.0
        %3284 = vmatpush1.msra.mxu0 0.0
        %3285 = vmatprep.subr.mxu0 0.0
        %3286 = vmatpush1.msra.mxu0 0.0
        %3287 = vmatprep.subr.mxu0 0.0
        %3288 = vmatpush1.msra.mxu0 0.0
        %3289 = vmatprep.subr.mxu0 0.0
        %3290 = vmatpush1.msra.mxu0 0.0
        %3291 = vmatprep.subr.mxu0 0.0
        %3292 = vmatpush1.msra.mxu0 0.0
        %3293 = vmatprep.mubr.f32.mxu0 0.0
        %3294 = vmatmul.mubr.f32.gmra.mrb[0].mxu0 %v3227
        %v3295 = vpop.f32.mrb[0].mxu0
        %v3296 = vadd.f32 %v3224, %v3295
        %v3297 = vpop.f32.mrb[0].mxu0
        %3298 = vdwg.mxu0
        %v3299 = vmul.f32 %v3296, 0.5
        %v3300 = vmul.f32 %v3296, 0.70710677
        %v3301 = verf.f32.pop %v3300
        %v3302 = vadd.f32 %v3301, 1.0
        %v3303 = vmul.f32 %v3299, %v3302
        %v3304 = vld [vmem:[#allocation24] sm:$0x1]
        %v3305 = vld [vmem:[#allocation25] sm:$0x1]
        %v3306 = vsel %vm989, %v3303, 0.0
        %3307 = vadd.xlane.f32.xlu0 %v3306
        %v3308 = vpop.xlane.xlu0 %3307
        %v3309 = vmul.f32 %v3308, %v993
        %v3310 = vsub.f32 %v3303, %v3309
        %v3311 = vmul.f32 %v3310, %v3310
        %v3312 = vsel %vm989, %v3311, 0.0
        %3313 = vadd.xlane.f32.xlu0 %v3312
        %v3314 = vpop.xlane.xlu0 %3313
        %v3315 = vmul.f32 %v3314, %v993
        %v3316 = vadd.f32 %v3315, 1e-12
        %v3317 = vrsqrt.pop %v3316
        %v3318 = vmul.f32 %v3310, %v3317
        %v3320 = vlaneseq
        %v3321 = vshrl.u32 %v3320, 7
        %v3322 = vsub.s32 0, %v3321
        %v3323 = vrot.slane %v3304, %v3322
        %v3325 = vmul.f32 %v3318, %v3323
        %v3327 = vlaneseq
        %v3328 = vshrl.u32 %v3327, 7
        %v3329 = vsub.s32 0, %v3328
        %v3330 = vrot.slane %v3305, %v3329
        %v3332 = vadd.f32 %v3325, %v3330
        %v3333 = vld [vmem:[#allocation27] sm:$0xff]
        %v3334 = vld [vmem:[#allocation27 + $0x8] sm:$0xff]
        %v3335 = vld [vmem:[#allocation27 + $0x10] sm:$0xff]
        %v3336 = vld [vmem:[#allocation27 + $0x18] sm:$0xff]
        %v3337 = vld [vmem:[#allocation28] sm:$0x1]
        %v3339 = vlaneseq
        %v3340 = vshrl.u32 %v3339, 7
        %v3341 = vsub.s32 0, %v3340
        %v3342 = vrot.slane %v3337, %v3341
        %v3345 = vsel %vm989, %v3332, 0
        %3347 = vmatprep.subr.mxu0 0.0
        %3348 = vmatpush1.msra.mxu0 %v3333
        %3349 = vmatprep.subr.mxu0 0.0
        %3350 = vmatpush1.msra.mxu0 %v3334
        %3351 = vmatprep.subr.mxu0 0.0
        %3352 = vmatpush1.msra.mxu0 %v3335
        %3353 = vmatprep.subr.mxu0 0.0
        %3354 = vmatpush1.msra.mxu0 %v3336
        %3355 = vmatprep.subr.mxu0 0.0
        %3356 = vmatpush1.msra.mxu0 0.0
        %3357 = vmatprep.subr.mxu0 0.0
        %3358 = vmatpush1.msra.mxu0 0.0
        %3359 = vmatprep.subr.mxu0 0.0
        %3360 = vmatpush1.msra.mxu0 0.0
        %3361 = vmatprep.subr.mxu0 0.0
        %3362 = vmatpush1.msra.mxu0 0.0
        %3363 = vmatprep.subr.mxu0 0.0
        %3364 = vmatpush1.msra.mxu0 0.0
        %3365 = vmatprep.subr.mxu0 0.0
        %3366 = vmatpush1.msra.mxu0 0.0
        %3367 = vmatprep.subr.mxu0 0.0
        %3368 = vmatpush1.msra.mxu0 0.0
        %3369 = vmatprep.subr.mxu0 0.0
        %3370 = vmatpush1.msra.mxu0 0.0
        %3371 = vmatprep.subr.mxu0 0.0
        %3372 = vmatpush1.msra.mxu0 0.0
        %3373 = vmatprep.subr.mxu0 0.0
        %3374 = vmatpush1.msra.mxu0 0.0
        %3375 = vmatprep.subr.mxu0 0.0
        %3376 = vmatpush1.msra.mxu0 0.0
        %3377 = vmatprep.subr.mxu0 0.0
        %3378 = vmatpush1.msra.mxu0 0.0
        %3379 = vmatprep.subr.mxu0 0.0
        %3380 = vmatpush1.msra.mxu0 0.0
        %3381 = vmatprep.subr.mxu0 0.0
        %3382 = vmatpush1.msra.mxu0 0.0
        %3383 = vmatprep.subr.mxu0 0.0
        %3384 = vmatpush1.msra.mxu0 0.0
        %3385 = vmatprep.subr.mxu0 0.0
        %3386 = vmatpush1.msra.mxu0 0.0
        %3387 = vmatprep.subr.mxu0 0.0
        %3388 = vmatpush1.msra.mxu0 0.0
        %3389 = vmatprep.subr.mxu0 0.0
        %3390 = vmatpush1.msra.mxu0 0.0
        %3391 = vmatprep.subr.mxu0 0.0
        %3392 = vmatpush1.msra.mxu0 0.0
        %3393 = vmatprep.subr.mxu0 0.0
        %3394 = vmatpush1.msra.mxu0 0.0
        %3395 = vmatprep.subr.mxu0 0.0
        %3396 = vmatpush1.msra.mxu0 0.0
        %3397 = vmatprep.subr.mxu0 0.0
        %3398 = vmatpush1.msra.mxu0 0.0
        %3399 = vmatprep.subr.mxu0 0.0
        %3400 = vmatpush1.msra.mxu0 0.0
        %3401 = vmatprep.subr.mxu0 0.0
        %3402 = vmatpush1.msra.mxu0 0.0
        %3403 = vmatprep.subr.mxu0 0.0
        %3404 = vmatpush1.msra.mxu0 0.0
        %3405 = vmatprep.subr.mxu0 0.0
        %3406 = vmatpush1.msra.mxu0 0.0
        %3407 = vmatprep.subr.mxu0 0.0
        %3408 = vmatpush1.msra.mxu0 0.0
        %3409 = vmatprep.subr.mxu0 0.0
        %3410 = vmatpush1.msra.mxu0 0.0
        %3411 = vmatprep.mubr.f32.mxu0 0.0
        %3412 = vmatmul.mubr.f32.gmra.mrb[0].mxu0 %v3345
        %v3413 = vpop.f32.mrb[0].mxu0
        %v3414 = vadd.f32 %v3342, %v3413
        %v3415 = vpop.f32.mrb[0].mxu0
        %3416 = vdwg.mxu0
        %3417 = vst [vmem:[%s968] sm:$0xff] %v3414
        %3418 = vmax.xlane.f32.xlu0 %v3414
        %v3419 = vpop.xlane.xlu0 %3418
        %v3420 = vsub.f32 %v3414, %v3419
        %v3421 = vmul.f32 %v3420, 1.442695
        %v3422 = vpow.pop %v3421
        %3423 = vadd.xlane.f32.xlu0 %v3422
        %v3424 = vpop.xlane.xlu0 %3423
        %v3425 = vlog2.pop %v3424
        %v3426 = vmul.f32 %v3425, 0.6931472
        %v3427 = vadd.f32 %v3419, %v3426
        %v3428 = vlaneseq
        %v3429 = vand.u32 %v3428, 127
        %v3430 = vlaneseq
        %v3431 = vshrl.u32 %v3430, 7
        %s3432 = smul.u32 %s55, 128
        %s3433 = sld [smem:[#allocation3 + %s3432]]
        %vm3434 = vcmp.eq.s32.totalorder %v3431, 0
        %v3435 = vstv %s3433
        %vm3436 = vcmp.eq.s32.totalorder %v3429, %v3435
        %vm3437 = vmand %vm3434, %vm3436
        %v3438 = vsel %vm3437, 1.0, 0.0
        %p3439 = scmp.ne.s32.totalorder %s3433, 4294967196
        %s3440 = scalar_select %p3439, 1, 0
        %s3441 = scvt.s32.f32 %s3440
        %v3442 = vstv %s3441
        %v3443 = vsel %vm3434, %v3442, 0.0
        %s3444 = sadd.s32 %s3432, 1
        %s3445 = sld [smem:[#allocation3 + %s3444]]
        %vm3446 = vcmp.eq.s32.totalorder %v3431, 1
        %v3447 = vstv %s3445
        %vm3448 = vcmp.eq.s32.totalorder %v3429, %v3447
        %vm3449 = vmand %vm3446, %vm3448
        %v3450 = vsel %vm3449, 1.0, %v3438
        %p3451 = scmp.ne.s32.totalorder %s3445, 4294967196
        %s3452 = scalar_select %p3451, 1, 0
        %s3453 = scvt.s32.f32 %s3452
        %v3454 = vstv %s3453
        %v3455 = vsel %vm3446, %v3454, %v3443
        %s3456 = sadd.s32 %s3432, 2
        %s3457 = sld [smem:[#allocation3 + %s3456]]
        %vm3458 = vcmp.eq.s32.totalorder %v3431, 2
        %v3459 = vstv %s3457
        %vm3460 = vcmp.eq.s32.totalorder %v3429, %v3459
        %vm3461 = vmand %vm3458, %vm3460
        %v3462 = vsel %vm3461, 1.0, %v3450
        %p3463 = scmp.ne.s32.totalorder %s3457, 4294967196
        %s3464 = scalar_select %p3463, 1, 0
        %s3465 = scvt.s32.f32 %s3464
        %v3466 = vstv %s3465
        %v3467 = vsel %vm3458, %v3466, %v3455
        %s3468 = sadd.s32 %s3432, 3
        %s3469 = sld [smem:[#allocation3 + %s3468]]
        %vm3470 = vcmp.eq.s32.totalorder %v3431, 3
        %v3471 = vstv %s3469
        %vm3472 = vcmp.eq.s32.totalorder %v3429, %v3471
        %vm3473 = vmand %vm3470, %vm3472
        %v3474 = vsel %vm3473, 1.0, %v3462
        %p3475 = scmp.ne.s32.totalorder %s3469, 4294967196
        %s3476 = scalar_select %p3475, 1, 0
        %s3477 = scvt.s32.f32 %s3476
        %v3478 = vstv %s3477
        %v3479 = vsel %vm3470, %v3478, %v3467
        %s3480 = sadd.s32 %s3432, 4
        %s3481 = sld [smem:[#allocation3 + %s3480]]
        %vm3482 = vcmp.eq.s32.totalorder %v3431, 4
        %v3483 = vstv %s3481
        %vm3484 = vcmp.eq.s32.totalorder %v3429, %v3483
        %vm3485 = vmand %vm3482, %vm3484
        %v3486 = vsel %vm3485, 1.0, %v3474
        %p3487 = scmp.ne.s32.totalorder %s3481, 4294967196
        %s3488 = scalar_select %p3487, 1, 0
        %s3489 = scvt.s32.f32 %s3488
        %v3490 = vstv %s3489
        %v3491 = vsel %vm3482, %v3490, %v3479
        %s3492 = sadd.s32 %s3432, 5
        %s3493 = sld [smem:[#allocation3 + %s3492]]
        %vm3494 = vcmp.eq.s32.totalorder %v3431, 5
        %v3495 = vstv %s3493
        %vm3496 = vcmp.eq.s32.totalorder %v3429, %v3495
        %vm3497 = vmand %vm3494, %vm3496
        %v3498 = vsel %vm3497, 1.0, %v3486
        %p3499 = scmp.ne.s32.totalorder %s3493, 4294967196
        %s3500 = scalar_select %p3499, 1, 0
        %s3501 = scvt.s32.f32 %s3500
        %v3502 = vstv %s3501
        %v3503 = vsel %vm3494, %v3502, %v3491
        %s3504 = sadd.s32 %s3432, 6
        %s3505 = sld [smem:[#allocation3 + %s3504]]
        %vm3506 = vcmp.eq.s32.totalorder %v3431, 6
        %v3507 = vstv %s3505
        %vm3508 = vcmp.eq.s32.totalorder %v3429, %v3507
        %vm3509 = vmand %vm3506, %vm3508
        %v3510 = vsel %vm3509, 1.0, %v3498
        %p3511 = scmp.ne.s32.totalorder %s3505, 4294967196
        %s3512 = scalar_select %p3511, 1, 0
        %s3513 = scvt.s32.f32 %s3512
        %v3514 = vstv %s3513
        %v3515 = vsel %vm3506, %v3514, %v3503
        %s3516 = sadd.s32 %s3432, 7
        %s3517 = sld [smem:[#allocation3 + %s3516]]
        %vm3518 = vcmp.eq.s32.totalorder %v3431, 7
        %v3519 = vstv %s3517
        %vm3520 = vcmp.eq.s32.totalorder %v3429, %v3519
        %vm3521 = vmand %vm3518, %vm3520
        %v3522 = vsel %vm3521, 1.0, %v3510
        %p3523 = scmp.ne.s32.totalorder %s3517, 4294967196
        %s3524 = scalar_select %p3523, 1, 0
        %s3525 = scvt.s32.f32 %s3524
        %v3526 = vstv %s3525
        %v3527 = vsel %vm3518, %v3526, %v3515
        %v3528 = vmul.f32 %v3414, %v3522
        %3529 = vadd.xlane.f32.xlu0 %v3528
        %v3530 = vpop.xlane.xlu0 %3529
        %v3531 = vsub.f32 %v3427, %v3530
        %v3532 = vmul.f32 %v3531, %v3527
        %vm3533 = vcmask 7168
        %v3534 = vsel %vm3533, %v3532, 0.0
        %3535 = vadd.xlane.f32.xlu0 %v3534
        %v3536 = vpop.xlane.xlu0 %3535
        %v3537 = vrot.slane %v3536, 4
        %v3538 = vadd.f32 %v3536, %v3537
        %v3539 = vrot.slane %v3538, 2
        %v3540 = vadd.f32 %v3538, %v3539
        %v3541 = vrot.slane %v3540, 1
        %v3542 = vadd.f32 %v3540, %v3541
        %s3543 = vtos %v3542
        %v3544 = vsel %vm3533, %v3527, 0.0
        %3545 = vadd.xlane.f32.xlu0 %v3544
        %v3546 = vpop.xlane.xlu0 %3545
        %v3547 = vrot.slane %v3546, 4
        %v3548 = vadd.f32 %v3546, %v3547
        %v3549 = vrot.slane %v3548, 2
        %v3550 = vadd.f32 %v3548, %v3549
        %v3551 = vrot.slane %v3550, 1
        %v3552 = vadd.f32 %v3550, %v3551
        %s3553 = vtos %v3552
        %vm3554 = vcmp.eq.s32.totalorder %v3429, 0
        %vm3555 = vcmp.eq.s32.totalorder %v3429, 1
        %v3556 = vstv %s3553
        %v3557 = vsel %vm3555, %v3556, 0.0
        %v3558 = vstv %s3543
        %v3559 = vsel %vm3554, %v3558, %v3557
        %3560 = vst [vmem:[%s983] sm:$0x1] %v3559
        %s3561 = sand.u32 %s556, 1
        %s3562 = scalar_lea.sflag [#allocation6], %s3561
        %s3563 = sand.u32 %s556, 1
        %s3564 = smul.addr %s3563, 8
        %s3565 = scalar_lea.vmem [#allocation30], %s3564
        %p3566 = scmp.lt.s32.totalorder %s55, 1
        %s3567 = scalar_select %p3566, %s55, 1
        %s3568 = scalar_lea.vmem %s25, %s3567
        // Predicated region
        $region177: #{inversion_plm_forward.1} parent=111 // pred_check
          %p3569 = pneg %p566
        $region178: #{inversion_plm_forward.1} parent=111 // pred_check_branch
          %3571 = sbr.rel (%p3569) target = $region180
        $region179: #{inversion_plm_forward.1} parent=111 // pred_region
          %s3573 = ssub.s32 128, 128
          %3574 = vsyncadd %s3562, %s3573
          %s3575 = smul.addr %s55, 128
          %s3576 = scalar_lea.hbm %s24, %s3575
          %s3578 = sshll.u32 %s3565, 4
          %s3579 = int_to_ptr.vmem [resolvable:$true] %s3578
          %3581 = dma.vmem_to_hbm [thread:$0]  %s3579, 128, %s3576, %s3562
        $region180: #{inversion_plm_forward.1} parent=111 // pred_fallthru
          _
        // Predicated region
        $region181: #{inversion_plm_forward.1} parent=111 // pred_check
          %p3582 = pneg %p592
        $region182: #{inversion_plm_forward.1} parent=111 // pred_check_branch
          %3584 = sbr.rel (%p3582) target = $region184
        $region183: #{inversion_plm_forward.1} parent=111 // pred_region
          _
        $region184: #{inversion_plm_forward.1} parent=111 // pred_fallthru
          _
      $region112: #{inversion_plm_forward.1} parent=5 // pred_fallthru
        _
      %p3585 = scmp.le.s32.totalorder 2, %s50
      // Predicated region
      $region185: #{inversion_plm_forward.1} parent=5 // pred_check
        %p3586 = pneg %p3585
      $region186: #{inversion_plm_forward.1} parent=5 // pred_check_branch
        %3588 = sbr.rel (%p3586) target = $region188
      $region187: #{inversion_plm_forward.1} parent=5 // pred_region
        %s3589 = ssub.s32 %s50, 2
        // Predicated region
        $region189: #{inversion_plm_forward.1} parent=187 // pred_check
          %p3590 = pneg %p572
        $region190: #{inversion_plm_forward.1} parent=187 // pred_check_branch
          %3592 = sbr.rel (%p3590) target = $region192
        $region191: #{inversion_plm_forward.1} parent=187 // pred_region
          %s3593 = sand.u32 %s557, 1
          %s3594 = scalar_lea.sflag [#allocation6], %s3593
          %s3595 = sand.u32 %s557, 1
          %s3596 = smul.addr %s3595, 8
          %s3597 = scalar_lea.vmem [#allocation30], %s3596
          %3598 = dma.done %s3594, 128
        $region192: #{inversion_plm_forward.1} parent=187 // pred_fallthru
          _
        // Predicated region
        $region193: #{inversion_plm_forward.1} parent=187 // pred_check
          %p3599 = pneg %p598
        $region194: #{inversion_plm_forward.1} parent=187 // pred_check_branch
          %3601 = sbr.rel (%p3599) target = $region196
        $region195: #{inversion_plm_forward.1} parent=187 // pred_region
          %p3602 = scmp.lt.s32.totalorder %s56, 1
          %s3603 = scalar_select %p3602, %s56, 1
          %s3604 = scalar_lea.vmem %s25, %s3603
        $region196: #{inversion_plm_forward.1} parent=187 // pred_fallthru
          _
      $region188: #{inversion_plm_forward.1} parent=5 // pred_fallthru
        _
    $region6: #{inversion_plm_forward.1} parent=1 // loop_footer
      %s54 = sadd.s32 1, %s50
    $region7: #{inversion_plm_forward.1} parent=1 // loop_footer_branch
      %49 = sbr.rel target = $region3
    $region8: #{inversion_plm_forward.1} parent=1 // loop_exit
      _
    %3605 = vsyncpa [#allocation5], 1
    %s3606 = scalar_lea.sflag [#allocation5], 1
    %3607 = vsyncpa %s3606, 1
    %3608 = vsyncpa [#allocation8], 1
    %3609 = vsyncpa [#allocation11], 1
    %3610 = vsyncpa [#allocation14], 1
    %3611 = vsyncpa [#allocation17], 1
    %3612 = vsyncpa [#allocation20], 1
    %3613 = vsyncpa [#allocation23], 1
    %3614 = vsyncpa [#allocation26], 1
    %3615 = vsyncpa [#allocation29], 1
    %3616 = vsyncpa [#allocation6], 1
    %s3617 = scalar_lea.sflag [#allocation6], 1
    %3618 = vsyncpa %s3617, 1

</llo_original>
